<compile_context>
chip_gen: v7x
topology: tpu7x:2x2x1
jax: 0.10.0
libtpu: 0.0.40
codegen_flags: <defaults>
</compile_context>

<pallas_src>
import jax
import jax.numpy as jnp
from jax import lax
from jax.experimental import pallas as pl
from jax.experimental.pallas import tpu as pltpu

BN_EPS = 1e-5
H1, H2 = 183, 82       # hidden widths fixed by the PyTorch module
AE_OUT = 512           # fixed by linear3 (82 + 512)


def _ceil128(n):
    return ((n + 127) // 128) * 128


def _round_bf16(w):
    return jnp.asarray(w, jnp.float32).astype(jnp.bfloat16)


def _pad2d(x, rows, cols):
    r, c = x.shape
    return jnp.pad(x, ((0, rows - r), (0, cols - c)))


def _pad_row(v, cols):
    v = jnp.reshape(jnp.asarray(v, jnp.float32), (-1,))
    return jnp.pad(v, (0, cols - v.shape[0]))


def _make_kernel(dims, group_size, groups_per_block):
    nin_p, h1p, h2p, aein_p, aeh, aeo, nop = dims
    inv_b = 1.0 / float(group_size)
    gpb = groups_per_block

    def bn_relu(h, gamma, beta):
        # Train-mode BatchNorm per BN group of `group_size` rows. group_size == 8 rows
        # is exactly one vreg's sublanes, so the (gpb, 8, N) reshape + axis=1 reduce is
        # layout-free. All stats math stays in f32.
        n = h.shape[-1]
        hr = h.reshape(gpb, group_size, n)
        m = jnp.sum(hr, axis=1, keepdims=True) * inv_b
        v = jnp.sum(hr * hr, axis=1, keepdims=True) * inv_b - m * m
        v = jnp.maximum(v, 0.0)                      # guard E[h^2]-m^2 cancellation
        s = gamma.reshape(1, 1, n) * lax.rsqrt(v + BN_EPS)   # folded BN scale
        hn = (hr - m) * s + beta.reshape(1, 1, n)
        return jnp.maximum(hn, 0.0).reshape(h.shape)

    def kernel(xb_ref, gb_ref, xa_ref,
               w1_ref, w2_ref, wa1_ref, wa2_ref, w3a_ref, w3b_ref,
               pv_ref, out_ref):
        # Packed per-feature parameter rows (single (8, 512) f32 tile, one DMA).
        pv = pv_ref[...]
        g1, be1 = pv[0:1, :h1p], pv[1:2, :h1p]
        g2, be2 = pv[2:3, :h2p], pv[3:4, :h2p]
        b3, wgn = pv[4:5, :nop], pv[5:6, :nop]
        ba1, ba2 = pv[6:7, :aeh], pv[7:8, :aeo]

        # ---- linear1 (bias dropped: cancelled by train-mode BN) + BN + ReLU ----
        # xb_ref / weights are bf16 -> native MXU path, f32 accumulation.
        h1 = jnp.dot(xb_ref[...], w1_ref[...], preferred_element_type=jnp.float32)
        h1 = bn_relu(h1, g1, be1)

        # ---- linear2 + BN + ReLU ----
        h2 = jnp.dot(h1.astype(jnp.bfloat16), w2_ref[...],
                     preferred_element_type=jnp.float32)
        h2 = bn_relu(h2, g2, be2)

        # ---- modelAE(xa): Linear -> ReLU -> Linear(512)  (.detach(): forward only) ----
        a1 = jnp.maximum(
            jnp.dot(xa_ref[...], wa1_ref[...], preferred_element_type=jnp.float32) + ba1,
            0.0)
        ae = jnp.dot(a1.astype(jnp.bfloat16), wa2_ref[...],
                     preferred_element_type=jnp.float32) + ba2

        # ---- linear3 on cat([h2, ae]) as split matmul, + krn*gb gate + ReLU ----
        o = (jnp.dot(h2.astype(jnp.bfloat16), w3a_ref[...],
                     preferred_element_type=jnp.float32)
             + jnp.dot(ae.astype(jnp.bfloat16), w3b_ref[...],
                       preferred_element_type=jnp.float32)
             + b3 + wgn * gb_ref[...])
        out_ref[...] = jnp.maximum(o, 0.0)

    return kernel


def prepare_params(raw, n_inputs, n_outputs, ae_in, ae_hidden, ae_out):
    assert ae_out == AE_OUT, "AE output width fixed at 512 by linear3"
    nin_p  = _ceil128(n_inputs)
    h1p    = _ceil128(H1)
    h2p    = _ceil128(H2)
    aein_p = _ceil128(ae_in)
    aeh    = _ceil128(ae_hidden)
    aeo    = _ceil128(ae_out)
    nop    = _ceil128(n_outputs)
    pack_w = max(h1p, h2p, nop, aeh, aeo)

    w3 = raw["w3"]
    prepared = {
        "dims": (nin_p, h1p, h2p, aein_p, aeh, aeo, nop),
        "n_outputs": n_outputs,
        "w1":  _round_bf16(_pad2d(raw["w1"],  nin_p, h1p)),
        "w2":  _round_bf16(_pad2d(raw["w2"],  h1p,   h2p)),
        "wa1": _round_bf16(_pad2d(raw["wa1"], aein_p, aeh)),
        "wa2": _round_bf16(_pad2d(raw["wa2"], aeh,   aeo)),
        "w3a": _round_bf16(_pad2d(w3[:H2, :], h2p,   nop)),
        "w3b": _round_bf16(_pad2d(w3[H2:, :], aeo,   nop)),
    }
    # One packed (8, pack_w) f32 array holding every small per-feature row.
    pv = jnp.zeros((8, pack_w), jnp.float32)
    pv = pv.at[0, :h1p].set(_pad_row(raw["g1"],  h1p))
    pv = pv.at[1, :h1p].set(_pad_row(raw["be1"], h1p))
    pv = pv.at[2, :h2p].set(_pad_row(raw["g2"],  h2p))
    pv = pv.at[3, :h2p].set(_pad_row(raw["be2"], h2p))
    pv = pv.at[4, :nop].set(_pad_row(raw["b3"],  nop))
    pv = pv.at[5, :nop].set(_pad_row(raw["wgn"], nop))
    pv = pv.at[6, :aeh].set(_pad_row(raw["ba1"], aeh))
    pv = pv.at[7, :aeo].set(_pad_row(raw["ba2"], aeo))
    prepared["pvec"] = pv
    return prepared


def prepare_inputs(xb, gb, xa, prepared):
    """Pad feature dims to 128-multiples once; store MXU inputs (xb, xa) bf16 host-side.
    gb stays f32 (it is only used in the f32 elementwise epilogue)."""
    nin_p, _, _, aein_p, _, _, nop = prepared["dims"]
    n = xb.shape[0]
    xb_p = _pad2d(jnp.asarray(xb, jnp.float32), n, nin_p).astype(jnp.bfloat16)
    gb_p = _pad2d(jnp.asarray(gb, jnp.float32), n, nop)
    xa_p = _pad2d(jnp.asarray(xa, jnp.float32), n, aein_p).astype(jnp.bfloat16)
    return xb_p, gb_p, xa_p


def deep_sf_ae_ensemble_forward(xb_p, gb_p, xa_p, prepared, *, group_size,
                                groups_per_block=None):
    """xb_p/gb_p/xa_p are pre-padded (see prepare_inputs), shape (G*group_size, feat_p).
    Each group of `group_size` rows is one independent DeepSF_AE_Ensemble forward
    (its own train-mode BN statistics).  Returns the PADDED (n_total, nop) output;
    callers that need exactly n_outputs columns slice it themselves."""
    nin_p, h1p, h2p, aein_p, aeh, aeo, nop = prepared["dims"]
    n_total = xb_p.shape[0]
    assert group_size % 8 == 0, "BN group must be sublane aligned"
    assert n_total % group_size == 0, "rows must be a whole number of BN groups"
    n_groups = n_total // group_size

    if groups_per_block is None:
        # Aim for >= 256 rows per block (fills the MXU M dimension on v6e/v7x) while
        # keeping >= 2 parallel grid steps so both v7x TensorCores get work.
        target = max(1, 256 // group_size)
        groups_per_block = min(target, n_groups // 2) if n_groups >= 2 else 1
        groups_per_block = max(groups_per_block, 1)
        while n_groups % groups_per_block:
            groups_per_block -= 1
    assert n_groups % groups_per_block == 0
    rows = groups_per_block * group_size
    grid = (n_groups // groups_per_block,)

    kernel = _make_kernel(prepared["dims"], group_size, groups_per_block)

    def act_spec(cols):
        return pl.BlockSpec((rows, cols), lambda g: (g, 0))

    def const_spec(shape):  # block index constant -> fetched once, VMEM-resident
        return pl.BlockSpec(shape, lambda g: (0, 0))

    args = (
        xb_p, gb_p, xa_p,
        prepared["w1"], prepared["w2"], prepared["wa1"], prepared["wa2"],
        prepared["w3a"], prepared["w3b"], prepared["pvec"],
    )
    in_specs = [
        act_spec(nin_p), act_spec(nop), act_spec(aein_p),
        const_spec(prepared["w1"].shape), const_spec(prepared["w2"].shape),
        const_spec(prepared["wa1"].shape), const_spec(prepared["wa2"].shape),
        const_spec(prepared["w3a"].shape), const_spec(prepared["w3b"].shape),
        const_spec(prepared["pvec"].shape),
    ]
    out = pl.pallas_call(
        kernel,
        out_shape=jax.ShapeDtypeStruct((n_total, nop), jnp.float32),
        grid=grid,
        in_specs=in_specs,
        out_specs=pl.BlockSpec((rows, nop), lambda g: (g, 0)),
        compiler_params=pltpu.CompilerParams(
            dimension_semantics=("parallel",),  # independent groups -> megacore sharding
        ),
    )(*args)
    return out


def _reference_forward(xb, gb, xa, raw, group_size):
    # Faithful per-group module forward (incl. the pre-BN biases, real concat for
    # linear3, two-pass variance).  It mirrors the kernel's mixed-precision policy:
    # bf16 operands into every matmul with f32 accumulation, f32 elementwise.
    def bf(a):
        return jnp.asarray(a, jnp.float32).astype(jnp.bfloat16)

    def mm(a, w):
        return jnp.dot(bf(a), bf(w), preferred_element_type=jnp.float32)

    def bn(h, g, b):
        m = jnp.mean(h, axis=0, keepdims=True)
        v = jnp.mean((h - m) ** 2, axis=0, keepdims=True)
        return (h - m) / jnp.sqrt(v + BN_EPS) * g + b

    def one_group(xb_g, gb_g, xa_g):
        h1 = jnp.maximum(bn(mm(xb_g, raw["w1"]) + raw["b1"], raw["g1"], raw["be1"]), 0.0)
        h2 = jnp.maximum(bn(mm(h1, raw["w2"]) + raw["b2"], raw["g2"], raw["be2"]), 0.0)
        a1 = jnp.maximum(mm(xa_g, raw["wa1"]) + raw["ba1"], 0.0)
        ae = mm(a1, raw["wa2"]) + raw["ba2"]
        x = jnp.concatenate([h2, ae], axis=1)
        o = mm(x, raw["w3"]) + raw["b3"] + raw["wgn"] * gb_g
        return jnp.maximum(o, 0.0)

    G = xb.shape[0] // group_size
    xbr = xb.reshape(G, group_size, -1)
    gbr = gb.reshape(G, group_size, -1)
    xar = xa.reshape(G, group_size, -1)
    return jax.vmap(one_group)(xbr, gbr, xar).reshape(xb.shape[0], -1)


def _init_raw_params(key, n_inputs, n_outputs, ae_in, ae_hidden, ae_out):
    ks = jax.random.split(key, 6)

    def lin(k, fan_in, fan_out):
        kw, kb = jax.random.split(k)
        bound = float(fan_in) ** -0.5
        w = jax.random.uniform(kw, (fan_in, fan_out), jnp.float32, -bound, bound)
        b = jax.random.uniform(kb, (fan_out,), jnp.float32, -bound, bound)
        return w, b

    w1, b1 = lin(ks[0], n_inputs, H1)
    w2, b2 = lin(ks[1], H1, H2)
    w3, b3 = lin(ks[2], H2 + ae_out, n_outputs)
    wa1, ba1 = lin(ks[3], ae_in, ae_hidden)
    wa2, ba2 = lin(ks[4], ae_hidden, ae_out)
    wgn = jax.random.normal(ks[5], (n_outputs,), jnp.float32)
    return dict(
        w1=w1, b1=b1, g1=jnp.ones((H1,), jnp.float32), be1=jnp.zeros((H1,), jnp.float32),
        w2=w2, b2=b2, g2=jnp.ones((H2,), jnp.float32), be2=jnp.zeros((H2,), jnp.float32),
        w3=w3, b3=b3, wgn=wgn,
        wa1=wa1, ba1=ba1, wa2=wa2, ba2=ba2,
    )


if __name__ == "__main__":
    B = 8            # rows per BN batch (one module forward); BN couples these rows
    G = 64           # independent forwards fused into one pallas_call
    n_inputs, n_outputs = 32, 16
    ae_in, ae_hidden, ae_out = 64, 128, 512   # 512 fixed by linear3 (82 + 512)
    # TODO(synk): BatchNorm running-mean/var updates (train-mode side effect) are not modeled.
    # TODO(synk): modelAE architecture is not specified by the module; synthesized as
    #             Linear->ReLU->Linear(512) (output width fixed by linear3's fan-in).

    key = jax.random.PRNGKey(0)
    k_xb, k_gb, k_xa, k_p = jax.random.split(key, 4)
    xb = jax.random.normal(k_xb, (G * B, n_inputs), jnp.float32)
    gb = jax.random.normal(k_gb, (G * B, n_outputs), jnp.float32)
    xa = jax.random.normal(k_xa, (G * B, ae_in), jnp.float32)

    raw = _init_raw_params(k_p, n_inputs, n_outputs, ae_in, ae_hidden, ae_out)
    prepared = prepare_params(raw, n_inputs, n_outputs, ae_in, ae_hidden, ae_out)
    xb_p, gb_p, xa_p = prepare_inputs(xb, gb, xa, prepared)

    out_padded = deep_sf_ae_ensemble_forward(xb_p, gb_p, xa_p, prepared, group_size=B)
    out_padded = jax.block_until_ready(out_padded)
    out = out_padded[:, :n_outputs]          # demo-only slice; padded output is lane-dense

    ref = _reference_forward(xb, gb, xa, raw, B)
    assert out.shape == (G * B, n_outputs)
    max_err = jnp.max(jnp.abs(out - ref))
    assert jnp.allclose(out, ref, rtol=2e-3, atol=2e-3), (
        f"mismatch vs reference (max abs err {max_err})")

    print("KERNEL_OK")
</pallas_src>

<mosaic_0001>
module attributes {stable_mosaic.version = 11 : i64} {
  func.func @kernel(%arg0: i32, %arg1: memref<256x128xbf16, #tpu.memory_space<vmem>>, %arg2: memref<256x128xf32, #tpu.memory_space<vmem>>, %arg3: memref<256x128xbf16, #tpu.memory_space<vmem>>, %arg4: memref<128x256xbf16, #tpu.memory_space<vmem>>, %arg5: memref<256x128xbf16, #tpu.memory_space<vmem>>, %arg6: memref<128x128xbf16, #tpu.memory_space<vmem>>, %arg7: memref<128x512xbf16, #tpu.memory_space<vmem>>, %arg8: memref<128x128xbf16, #tpu.memory_space<vmem>>, %arg9: memref<512x128xbf16, #tpu.memory_space<vmem>>, %arg10: memref<8x512xf32, #tpu.memory_space<vmem>>, %arg11: memref<256x128xf32, #tpu.memory_space<vmem>>) attributes {dimension_semantics = [#tpu.dimension_semantics<parallel>], iteration_bounds = array<i64: 2>, scalar_prefetch = 0 : i64, scratch_operands = 0 : i64, tpu.core_type = #tpu.core_type<tc>, window_params = [{transform_indices = @transform_0, window_bounds = array<i64: 256, 128>}, {transform_indices = @transform_1, window_bounds = array<i64: 256, 128>}, {transform_indices = @transform_2, window_bounds = array<i64: 256, 128>}, {pipeline_mode = #tpu.pipeline_mode<synchronous>, transform_indices = @transform_3, window_bounds = array<i64: 128, 256>}, {pipeline_mode = #tpu.pipeline_mode<synchronous>, transform_indices = @transform_4, window_bounds = array<i64: 256, 128>}, {pipeline_mode = #tpu.pipeline_mode<synchronous>, transform_indices = @transform_5, window_bounds = array<i64: 128, 128>}, {pipeline_mode = #tpu.pipeline_mode<synchronous>, transform_indices = @transform_6, window_bounds = array<i64: 128, 512>}, {pipeline_mode = #tpu.pipeline_mode<synchronous>, transform_indices = @transform_7, window_bounds = array<i64: 128, 128>}, {pipeline_mode = #tpu.pipeline_mode<synchronous>, transform_indices = @transform_8, window_bounds = array<i64: 512, 128>}, {pipeline_mode = #tpu.pipeline_mode<synchronous>, transform_indices = @transform_9, window_bounds = array<i64: 8, 512>}, {transform_indices = @transform_10, window_bounds = array<i64: 256, 128>}]} {
    %c0 = arith.constant 0 : index
    %c0_0 = arith.constant 0 : index
    %0 = vector.load %arg10[%c0, %c0_0] : memref<8x512xf32, #tpu.memory_space<vmem>>, vector<8x512xf32>
    %1 = vector.extract_strided_slice %0 {offsets = [0, 0], sizes = [1, 256], strides = [1, 1]} : vector<8x512xf32> to vector<1x256xf32>
    %2 = vector.extract_strided_slice %0 {offsets = [1, 0], sizes = [1, 256], strides = [1, 1]} : vector<8x512xf32> to vector<1x256xf32>
    %3 = vector.extract_strided_slice %0 {offsets = [2, 0], sizes = [1, 128], strides = [1, 1]} : vector<8x512xf32> to vector<1x128xf32>
    %4 = vector.extract_strided_slice %0 {offsets = [3, 0], sizes = [1, 128], strides = [1, 1]} : vector<8x512xf32> to vector<1x128xf32>
    %5 = vector.extract_strided_slice %0 {offsets = [4, 0], sizes = [1, 128], strides = [1, 1]} : vector<8x512xf32> to vector<1x128xf32>
    %6 = vector.extract_strided_slice %0 {offsets = [5, 0], sizes = [1, 128], strides = [1, 1]} : vector<8x512xf32> to vector<1x128xf32>
    %7 = vector.extract_strided_slice %0 {offsets = [6, 0], sizes = [1, 128], strides = [1, 1]} : vector<8x512xf32> to vector<1x128xf32>
    %8 = vector.extract_strided_slice %0 {offsets = [7, 0], sizes = [1, 512], strides = [1, 1]} : vector<8x512xf32> to vector<1x512xf32>
    %c0_1 = arith.constant 0 : index
    %c0_2 = arith.constant 0 : index
    %9 = vector.load %arg1[%c0_1, %c0_2] : memref<256x128xbf16, #tpu.memory_space<vmem>>, vector<256x128xbf16>
    %c0_3 = arith.constant 0 : index
    %c0_4 = arith.constant 0 : index
    %10 = vector.load %arg4[%c0_3, %c0_4] : memref<128x256xbf16, #tpu.memory_space<vmem>>, vector<128x256xbf16>
    %cst = arith.constant dense<0.000000e+00> : vector<256x256xf32>
    %11 = tpu.matmul %9, %10, %cst {dimension_numbers = #tpu.dot_dimension_numbers<[1], [0], [0], [1], [0, 0, 1, 1], [], []>} : vector<256x128xbf16>, vector<128x256xbf16>, vector<256x256xf32> -> vector<256x256xf32>
    %12 = vector.shape_cast %11 : vector<256x256xf32> to vector<32x8x256xf32>
    %cst_5 = arith.constant dense<0.000000e+00> : vector<32x256xf32>
    %13 = vector.multi_reduction <add>, %12, %cst_5 [1] : vector<32x8x256xf32> to vector<32x256xf32>
    %14 = vector.shape_cast %13 : vector<32x256xf32> to vector<32x1x256xf32>
    %cst_6 = arith.constant 1.250000e-01 : f32
    %15 = vector.broadcast %cst_6 : f32 to vector<32x1x256xf32>
    %16 = arith.mulf %14, %15 : vector<32x1x256xf32>
    %17 = arith.mulf %12, %12 : vector<32x8x256xf32>
    %cst_7 = arith.constant dense<0.000000e+00> : vector<32x256xf32>
    %18 = vector.multi_reduction <add>, %17, %cst_7 [1] : vector<32x8x256xf32> to vector<32x256xf32>
    %19 = vector.shape_cast %18 : vector<32x256xf32> to vector<32x1x256xf32>
    %cst_8 = arith.constant 1.250000e-01 : f32
    %20 = vector.broadcast %cst_8 : f32 to vector<32x1x256xf32>
    %21 = arith.mulf %19, %20 : vector<32x1x256xf32>
    %22 = arith.mulf %16, %16 : vector<32x1x256xf32>
    %23 = arith.subf %21, %22 : vector<32x1x256xf32>
    %cst_9 = arith.constant 0.000000e+00 : f32
    %24 = vector.broadcast %cst_9 : f32 to vector<32x1x256xf32>
    %25 = arith.maximumf %23, %24 : vector<32x1x256xf32>
    %26 = vector.shape_cast %1 : vector<1x256xf32> to vector<1x1x256xf32>
    %cst_10 = arith.constant 9.99999974E-6 : f32
    %27 = vector.broadcast %cst_10 : f32 to vector<32x1x256xf32>
    %28 = arith.addf %25, %27 : vector<32x1x256xf32>
    %29 = math.rsqrt %28 : vector<32x1x256xf32>
    %30 = vector.broadcast %26 : vector<1x1x256xf32> to vector<32x1x256xf32>
    %31 = arith.mulf %30, %29 : vector<32x1x256xf32>
    %32 = vector.broadcast %16 : vector<32x1x256xf32> to vector<32x8x256xf32>
    %33 = arith.subf %12, %32 : vector<32x8x256xf32>
    %34 = vector.broadcast %31 : vector<32x1x256xf32> to vector<32x8x256xf32>
    %35 = arith.mulf %33, %34 : vector<32x8x256xf32>
    %36 = vector.shape_cast %2 : vector<1x256xf32> to vector<1x1x256xf32>
    %37 = vector.broadcast %36 : vector<1x1x256xf32> to vector<32x8x256xf32>
    %38 = arith.addf %35, %37 : vector<32x8x256xf32>
    %cst_11 = arith.constant 0.000000e+00 : f32
    %39 = vector.broadcast %cst_11 : f32 to vector<32x8x256xf32>
    %40 = arith.maximumf %38, %39 : vector<32x8x256xf32>
    %41 = vector.shape_cast %40 : vector<32x8x256xf32> to vector<256x256xf32>
    %42 = arith.truncf %41 : vector<256x256xf32> to vector<256x256xbf16>
    %c0_12 = arith.constant 0 : index
    %c0_13 = arith.constant 0 : index
    %43 = vector.load %arg5[%c0_12, %c0_13] : memref<256x128xbf16, #tpu.memory_space<vmem>>, vector<256x128xbf16>
    %cst_14 = arith.constant dense<0.000000e+00> : vector<256x128xf32>
    %44 = tpu.matmul %42, %43, %cst_14 {dimension_numbers = #tpu.dot_dimension_numbers<[1], [0], [0], [1], [0, 0, 1, 1], [], []>} : vector<256x256xbf16>, vector<256x128xbf16>, vector<256x128xf32> -> vector<256x128xf32>
    %45 = vector.shape_cast %44 : vector<256x128xf32> to vector<32x8x128xf32>
    %cst_15 = arith.constant dense<0.000000e+00> : vector<32x128xf32>
    %46 = vector.multi_reduction <add>, %45, %cst_15 [1] : vector<32x8x128xf32> to vector<32x128xf32>
    %47 = vector.shape_cast %46 : vector<32x128xf32> to vector<32x1x128xf32>
    %cst_16 = arith.constant 1.250000e-01 : f32
    %48 = vector.broadcast %cst_16 : f32 to vector<32x1x128xf32>
    %49 = arith.mulf %47, %48 : vector<32x1x128xf32>
    %50 = arith.mulf %45, %45 : vector<32x8x128xf32>
    %cst_17 = arith.constant dense<0.000000e+00> : vector<32x128xf32>
    %51 = vector.multi_reduction <add>, %50, %cst_17 [1] : vector<32x8x128xf32> to vector<32x128xf32>
    %52 = vector.shape_cast %51 : vector<32x128xf32> to vector<32x1x128xf32>
    %cst_18 = arith.constant 1.250000e-01 : f32
    %53 = vector.broadcast %cst_18 : f32 to vector<32x1x128xf32>
    %54 = arith.mulf %52, %53 : vector<32x1x128xf32>
    %55 = arith.mulf %49, %49 : vector<32x1x128xf32>
    %56 = arith.subf %54, %55 : vector<32x1x128xf32>
    %cst_19 = arith.constant 0.000000e+00 : f32
    %57 = vector.broadcast %cst_19 : f32 to vector<32x1x128xf32>
    %58 = arith.maximumf %56, %57 : vector<32x1x128xf32>
    %59 = vector.shape_cast %3 : vector<1x128xf32> to vector<1x1x128xf32>
    %cst_20 = arith.constant 9.99999974E-6 : f32
    %60 = vector.broadcast %cst_20 : f32 to vector<32x1x128xf32>
    %61 = arith.addf %58, %60 : vector<32x1x128xf32>
    %62 = math.rsqrt %61 : vector<32x1x128xf32>
    %63 = vector.broadcast %59 : vector<1x1x128xf32> to vector<32x1x128xf32>
    %64 = arith.mulf %63, %62 : vector<32x1x128xf32>
    %65 = vector.broadcast %49 : vector<32x1x128xf32> to vector<32x8x128xf32>
    %66 = arith.subf %45, %65 : vector<32x8x128xf32>
    %67 = vector.broadcast %64 : vector<32x1x128xf32> to vector<32x8x128xf32>
    %68 = arith.mulf %66, %67 : vector<32x8x128xf32>
    %69 = vector.shape_cast %4 : vector<1x128xf32> to vector<1x1x128xf32>
    %70 = vector.broadcast %69 : vector<1x1x128xf32> to vector<32x8x128xf32>
    %71 = arith.addf %68, %70 : vector<32x8x128xf32>
    %cst_21 = arith.constant 0.000000e+00 : f32
    %72 = vector.broadcast %cst_21 : f32 to vector<32x8x128xf32>
    %73 = arith.maximumf %71, %72 : vector<32x8x128xf32>
    %74 = vector.shape_cast %73 : vector<32x8x128xf32> to vector<256x128xf32>
    %c0_22 = arith.constant 0 : index
    %c0_23 = arith.constant 0 : index
    %75 = vector.load %arg3[%c0_22, %c0_23] : memref<256x128xbf16, #tpu.memory_space<vmem>>, vector<256x128xbf16>
    %c0_24 = arith.constant 0 : index
    %c0_25 = arith.constant 0 : index
    %76 = vector.load %arg6[%c0_24, %c0_25] : memref<128x128xbf16, #tpu.memory_space<vmem>>, vector<128x128xbf16>
    %cst_26 = arith.constant dense<0.000000e+00> : vector<256x128xf32>
    %77 = tpu.matmul %75, %76, %cst_26 {dimension_numbers = #tpu.dot_dimension_numbers<[1], [0], [0], [1], [0, 0, 1, 1], [], []>} : vector<256x128xbf16>, vector<128x128xbf16>, vector<256x128xf32> -> vector<256x128xf32>
    %78 = vector.broadcast %7 : vector<1x128xf32> to vector<256x128xf32>
    %79 = arith.addf %77, %78 : vector<256x128xf32>
    %cst_27 = arith.constant 0.000000e+00 : f32
    %80 = vector.broadcast %cst_27 : f32 to vector<256x128xf32>
    %81 = arith.maximumf %79, %80 : vector<256x128xf32>
    %82 = arith.truncf %81 : vector<256x128xf32> to vector<256x128xbf16>
    %c0_28 = arith.constant 0 : index
    %c0_29 = arith.constant 0 : index
    %83 = vector.load %arg7[%c0_28, %c0_29] : memref<128x512xbf16, #tpu.memory_space<vmem>>, vector<128x512xbf16>
    %cst_30 = arith.constant dense<0.000000e+00> : vector<256x512xf32>
    %84 = tpu.matmul %82, %83, %cst_30 {dimension_numbers = #tpu.dot_dimension_numbers<[1], [0], [0], [1], [0, 0, 1, 1], [], []>} : vector<256x128xbf16>, vector<128x512xbf16>, vector<256x512xf32> -> vector<256x512xf32>
    %85 = vector.broadcast %8 : vector<1x512xf32> to vector<256x512xf32>
    %86 = arith.addf %84, %85 : vector<256x512xf32>
    %87 = arith.truncf %74 : vector<256x128xf32> to vector<256x128xbf16>
    %c0_31 = arith.constant 0 : index
    %c0_32 = arith.constant 0 : index
    %88 = vector.load %arg8[%c0_31, %c0_32] : memref<128x128xbf16, #tpu.memory_space<vmem>>, vector<128x128xbf16>
    %cst_33 = arith.constant dense<0.000000e+00> : vector<256x128xf32>
    %89 = tpu.matmul %87, %88, %cst_33 {dimension_numbers = #tpu.dot_dimension_numbers<[1], [0], [0], [1], [0, 0, 1, 1], [], []>} : vector<256x128xbf16>, vector<128x128xbf16>, vector<256x128xf32> -> vector<256x128xf32>
    %90 = arith.truncf %86 : vector<256x512xf32> to vector<256x512xbf16>
    %c0_34 = arith.constant 0 : index
    %c0_35 = arith.constant 0 : index
    %91 = vector.load %arg9[%c0_34, %c0_35] : memref<512x128xbf16, #tpu.memory_space<vmem>>, vector<512x128xbf16>
    %cst_36 = arith.constant dense<0.000000e+00> : vector<256x128xf32>
    %92 = tpu.matmul %90, %91, %cst_36 {dimension_numbers = #tpu.dot_dimension_numbers<[1], [0], [0], [1], [0, 0, 1, 1], [], []>} : vector<256x512xbf16>, vector<512x128xbf16>, vector<256x128xf32> -> vector<256x128xf32>
    %93 = arith.addf %89, %92 : vector<256x128xf32>
    %94 = vector.broadcast %5 : vector<1x128xf32> to vector<256x128xf32>
    %95 = arith.addf %93, %94 : vector<256x128xf32>
    %c0_37 = arith.constant 0 : index
    %c0_38 = arith.constant 0 : index
    %96 = vector.load %arg2[%c0_37, %c0_38] : memref<256x128xf32, #tpu.memory_space<vmem>>, vector<256x128xf32>
    %97 = vector.broadcast %6 : vector<1x128xf32> to vector<256x128xf32>
    %98 = arith.mulf %97, %96 : vector<256x128xf32>
    %99 = arith.addf %95, %98 : vector<256x128xf32>
    %cst_39 = arith.constant 0.000000e+00 : f32
    %100 = vector.broadcast %cst_39 : f32 to vector<256x128xf32>
    %101 = arith.maximumf %99, %100 : vector<256x128xf32>
    %c0_40 = arith.constant 0 : index
    %c0_41 = arith.constant 0 : index
    %102 = vector.load %arg11[%c0_40, %c0_41] : memref<256x128xf32, #tpu.memory_space<vmem>>, vector<256x128xf32>
    tpu.vector_store %arg11[%c0_40, %c0_41], %101 {strides = array<i32>} : memref<256x128xf32, #tpu.memory_space<vmem>>, vector<256x128xf32>,
    return
  }
  func.func @transform_0(%arg0: i32) -> (i32, i32) {
    %c0_i32 = arith.constant 0 : i32
    %c0_i32_0 = arith.constant 0 : i32
    return %arg0, %c0_i32 : i32, i32
  }
  func.func @transform_1(%arg0: i32) -> (i32, i32) {
    %c0_i32 = arith.constant 0 : i32
    %c0_i32_0 = arith.constant 0 : i32
    return %arg0, %c0_i32 : i32, i32
  }
  func.func @transform_2(%arg0: i32) -> (i32, i32) {
    %c0_i32 = arith.constant 0 : i32
    %c0_i32_0 = arith.constant 0 : i32
    return %arg0, %c0_i32 : i32, i32
  }
  func.func @transform_3(%arg0: i32) -> (i32, i32) {
    %c0_i32 = arith.constant 0 : i32
    %c0_i32_0 = arith.constant 0 : i32
    %c0_i32_1 = arith.constant 0 : i32
    return %c0_i32, %c0_i32_0 : i32, i32
  }
  func.func @transform_4(%arg0: i32) -> (i32, i32) {
    %c0_i32 = arith.constant 0 : i32
    %c0_i32_0 = arith.constant 0 : i32
    %c0_i32_1 = arith.constant 0 : i32
    return %c0_i32, %c0_i32_0 : i32, i32
  }
  func.func @transform_5(%arg0: i32) -> (i32, i32) {
    %c0_i32 = arith.constant 0 : i32
    %c0_i32_0 = arith.constant 0 : i32
    %c0_i32_1 = arith.constant 0 : i32
    return %c0_i32, %c0_i32_0 : i32, i32
  }
  func.func @transform_6(%arg0: i32) -> (i32, i32) {
    %c0_i32 = arith.constant 0 : i32
    %c0_i32_0 = arith.constant 0 : i32
    %c0_i32_1 = arith.constant 0 : i32
    return %c0_i32, %c0_i32_0 : i32, i32
  }
  func.func @transform_7(%arg0: i32) -> (i32, i32) {
    %c0_i32 = arith.constant 0 : i32
    %c0_i32_0 = arith.constant 0 : i32
    %c0_i32_1 = arith.constant 0 : i32
    return %c0_i32, %c0_i32_0 : i32, i32
  }
  func.func @transform_8(%arg0: i32) -> (i32, i32) {
    %c0_i32 = arith.constant 0 : i32
    %c0_i32_0 = arith.constant 0 : i32
    %c0_i32_1 = arith.constant 0 : i32
    return %c0_i32, %c0_i32_0 : i32, i32
  }
  func.func @transform_9(%arg0: i32) -> (i32, i32) {
    %c0_i32 = arith.constant 0 : i32
    %c0_i32_0 = arith.constant 0 : i32
    %c0_i32_1 = arith.constant 0 : i32
    return %c0_i32, %c0_i32_0 : i32, i32
  }
  func.func @transform_10(%arg0: i32) -> (i32, i32) {
    %c0_i32 = arith.constant 0 : i32
    %c0_i32_0 = arith.constant 0 : i32
    return %arg0, %c0_i32 : i32, i32
  }
}

</mosaic_0001>

<llo_original>
// kernel: tpu_custom_call.1
$region0: #{tpu_custom_call.1}
  #allocation0 [shape = 'u32[]', space=smem, size = 0x4, offset = 0x4, fixed_abs, tag = 'smem constant byte address 0x4 - core index']
  #allocation1 [shape = 'u32[144,128]{1,0:T(1,128)}', space=vmem, size = 0x12000, scoped, tag = 'internal scratch']
  %s0 = inlined_call_operand.hbm [shape: bf16[512,128], index: 0, kind: input, shape index: {}]
  %s1 = inlined_call_operand.hbm [shape: f32[512,128], index: 1, kind: input, shape index: {}]
  %s2 = inlined_call_operand.hbm [shape: bf16[512,128], index: 2, kind: input, shape index: {}]
  %s3 = inlined_call_operand.hbm [shape: bf16[128,256], index: 3, kind: input, shape index: {}]
  %s4 = inlined_call_operand.hbm [shape: bf16[256,128], index: 4, kind: input, shape index: {}]
  %s5 = inlined_call_operand.hbm [shape: bf16[128,128], index: 5, kind: input, shape index: {}]
  %s6 = inlined_call_operand.hbm [shape: bf16[128,512], index: 6, kind: input, shape index: {}]
  %s7 = inlined_call_operand.hbm [shape: bf16[128,128], index: 7, kind: input, shape index: {}]
  %s8 = inlined_call_operand.hbm [shape: bf16[512,128], index: 8, kind: input, shape index: {}]
  %s9 = inlined_call_operand.vmem [shape: f32[8,512], index: 9, kind: input, shape index: {}]
  %s10 = inlined_call_operand.hbm [shape: f32[512,128], index: 10, kind: output, shape index: {}]
  %s11 = sld [smem:[#allocation0]]
  $region109: #{tpu_custom_call.1} parent=0
    _
  %s13 = ssub.s32 1, %s11
  %s14 = scalar_select 0, %s13, %s11
  $region1: #{tpu_custom_call.1} parent=0
    #allocation2 [shape = 'u8[131072]{0}', space=vmem, size = 0x20000, scoped, tag = 'input window, operand 0']
    #allocation3 [shape = 's32[2]{0}', space=sflag, size = 0x8, scoped, tag = 'scoped memory for tpu_custom_call.1']
    #allocation4 [shape = 's32[2]{0}', space=sflag, size = 0x8, scoped, tag = 'scoped memory for tpu_custom_call.1']
    #allocation5 [shape = 'u8[262144]{0}', space=vmem, size = 0x40000, scoped, tag = 'input window, operand 1']
    #allocation6 [shape = 's32[2]{0}', space=sflag, size = 0x8, scoped, tag = 'scoped memory for tpu_custom_call.1']
    #allocation7 [shape = 'u8[131072]{0}', space=vmem, size = 0x20000, scoped, tag = 'input window, operand 2']
    #allocation8 [shape = 'u8[65536]{0}', space=vmem, size = 0x10000, scoped, tag = 'input window, operand 3, single buffered']
    #allocation9 [shape = 's32[1]{0}', space=sflag, size = 0x4, scoped, tag = 'scoped memory for tpu_custom_call.1']
    #allocation10 [shape = 'u8[65536]{0}', space=vmem, size = 0x10000, scoped, tag = 'input window, operand 4, single buffered']
    #allocation11 [shape = 'u8[32768]{0}', space=vmem, size = 0x8000, scoped, tag = 'input window, operand 5, single buffered']
    #allocation12 [shape = 's32[1]{0}', space=sflag, size = 0x4, scoped, tag = 'scoped memory for tpu_custom_call.1']
    #allocation13 [shape = 'u8[131072]{0}', space=vmem, size = 0x20000, scoped, tag = 'input window, operand 6, single buffered']
    #allocation14 [shape = 'u8[32768]{0}', space=vmem, size = 0x8000, scoped, tag = 'input window, operand 7, single buffered']
    #allocation15 [shape = 's32[1]{0}', space=sflag, size = 0x4, scoped, tag = 'scoped memory for tpu_custom_call.1']
    #allocation16 [shape = 'u8[131072]{0}', space=vmem, size = 0x20000, scoped, tag = 'input window, operand 8, single buffered']
    #allocation17 [shape = 'u8[262144]{0}', space=vmem, size = 0x40000, scoped, tag = 'output window, operand 0']
    %15 = vsyncpa [#allocation3], 0
    %s16 = scalar_lea.sflag [#allocation3], 1
    %17 = vsyncpa %s16, 0
    %18 = vsyncpa [#allocation6], 0
    %s19 = scalar_lea.sflag [#allocation6], 1
    %20 = vsyncpa %s19, 0
    %21 = vsyncpa [#allocation9], 0
    %22 = vsyncpa [#allocation12], 0
    %23 = vsyncpa [#allocation15], 0
    %24 = vsyncpa [#allocation4], 0
    %s25 = scalar_lea.sflag [#allocation4], 1
    %26 = vsyncpa %s25, 0
    loop: start=0, step=1, limit=4
    $region2: #{tpu_custom_call.1} parent=1 // loop_pre_header
      _
    $region3: #{tpu_custom_call.1} parent=1 // loop_header
      %s28 = sphi 0, %s32
      %p29 = scmp.ge.s32.totalorder %s28, 4
      %s38 = sphi 0, %s40
      %s41 = sphi 0, %s38
      %s42 = sphi 0, %s41
      %s58 = sphi 0, %s42
      %s64 = sphi 0, %s66
      %s67 = sphi 0, %s64
      %s68 = sphi 0, %s67
      %s84 = sphi 0, %s68
      %s90 = sphi 0, %s92
      %s93 = sphi 0, %s90
      %s94 = sphi 0, %s93
      %s110 = sphi 0, %s94
      %s114 = sphi 0, %s114
      %s116 = sphi 0, %s114
      %s117 = sphi 0, %s116
      %s131 = sphi 0, %s117
      %s135 = sphi 0, %s135
      %s137 = sphi 0, %s135
      %s138 = sphi 0, %s137
      %s152 = sphi 0, %s138
      %s156 = sphi 0, %s156
      %s158 = sphi 0, %s156
      %s159 = sphi 0, %s158
      %s173 = sphi 0, %s159
      %s177 = sphi 0, %s177
      %s179 = sphi 0, %s177
      %s180 = sphi 0, %s179
      %s194 = sphi 0, %s180
      %s198 = sphi 0, %s198
      %s200 = sphi 0, %s198
      %s201 = sphi 0, %s200
      %s215 = sphi 0, %s201
      %s219 = sphi 0, %s219
      %s221 = sphi 0, %s219
      %s222 = sphi 0, %s221
      %s236 = sphi 0, %s222
      %s240 = sphi 0, %s240
      %s242 = sphi 0, %s240
      %s243 = sphi 0, %s242
      %s257 = sphi 0, %s243
      %s263 = sphi 0, %s265
      %s266 = sphi 0, %s263
      %s267 = sphi 0, %s266
      %s283 = sphi 0, %s267
    $region4: #{tpu_custom_call.1} parent=1 // loop_header_branch
      %31 = sbr.rel (%p29) target = $region8
    $region5: #{tpu_custom_call.1} parent=1 // loop_body
      %s33 = ssub.s32 %s28, 1
      %s34 = ssub.s32 %s28, 2
      %s35 = sadd.s32 %s28, 1
      %s36 = ssub.s32 %s28, %s35
      %p37 = scmp.eq.s32.totalorder %s36, 0
      %s39 = sadd.s32 %s38, 1
      %s40 = scalar_select %p37, %s38, %s39
      %p43 = pneg %p37
      %p44 = scmp.eq.s32.totalorder %s28, 1
      %p45 = por %p43, %p44
      %p46 = scmp.ne.s32.totalorder %s38, %s41
      %p47 = scmp.eq.s32.totalorder %s28, 0
      %p48 = por %p46, %p47
      %p49 = scmp.ne.s32.totalorder %s38, %s41
      %p50 = scmp.eq.s32.totalorder %s33, 1
      %p51 = por %p49, %p50
      %p52 = scmp.ne.s32.totalorder %s41, %s42
      %p53 = scmp.eq.s32.totalorder %s33, 0
      %p54 = por %p52, %p53
      %p55 = scmp.ne.s32.totalorder %s41, %s42
      %p56 = scmp.eq.s32.totalorder %s34, 1
      %p57 = por %p55, %p56
      %p59 = scmp.ne.s32.totalorder %s42, %s58
      %p60 = scmp.eq.s32.totalorder %s34, 0
      %p61 = por %p59, %p60
      %s62 = ssub.s32 %s28, %s35
      %p63 = scmp.eq.s32.totalorder %s62, 0
      %s65 = sadd.s32 %s64, 1
      %s66 = scalar_select %p63, %s64, %s65
      %p69 = pneg %p63
      %p70 = scmp.eq.s32.totalorder %s28, 1
      %p71 = por %p69, %p70
      %p72 = scmp.ne.s32.totalorder %s64, %s67
      %p73 = scmp.eq.s32.totalorder %s28, 0
      %p74 = por %p72, %p73
      %p75 = scmp.ne.s32.totalorder %s64, %s67
      %p76 = scmp.eq.s32.totalorder %s33, 1
      %p77 = por %p75, %p76
      %p78 = scmp.ne.s32.totalorder %s67, %s68
      %p79 = scmp.eq.s32.totalorder %s33, 0
      %p80 = por %p78, %p79
      %p81 = scmp.ne.s32.totalorder %s67, %s68
      %p82 = scmp.eq.s32.totalorder %s34, 1
      %p83 = por %p81, %p82
      %p85 = scmp.ne.s32.totalorder %s68, %s84
      %p86 = scmp.eq.s32.totalorder %s34, 0
      %p87 = por %p85, %p86
      %s88 = ssub.s32 %s28, %s35
      %p89 = scmp.eq.s32.totalorder %s88, 0
      %s91 = sadd.s32 %s90, 1
      %s92 = scalar_select %p89, %s90, %s91
      %p95 = pneg %p89
      %p96 = scmp.eq.s32.totalorder %s28, 1
      %p97 = por %p95, %p96
      %p98 = scmp.ne.s32.totalorder %s90, %s93
      %p99 = scmp.eq.s32.totalorder %s28, 0
      %p100 = por %p98, %p99
      %p101 = scmp.ne.s32.totalorder %s90, %s93
      %p102 = scmp.eq.s32.totalorder %s33, 1
      %p103 = por %p101, %p102
      %p104 = scmp.ne.s32.totalorder %s93, %s94
      %p105 = scmp.eq.s32.totalorder %s33, 0
      %p106 = por %p104, %p105
      %p107 = scmp.ne.s32.totalorder %s93, %s94
      %p108 = scmp.eq.s32.totalorder %s34, 1
      %p109 = por %p107, %p108
      %p111 = scmp.ne.s32.totalorder %s94, %s110
      %p112 = scmp.eq.s32.totalorder %s34, 0
      %p113 = por %p111, %p112
      %s115 = sadd.s32 %s114, 1
      %p118 = scmp.eq.s32.totalorder %s28, 1
      %p119 = scmp.ne.s32.totalorder %s114, %s116
      %p120 = scmp.eq.s32.totalorder %s28, 0
      %p121 = por %p119, %p120
      %p122 = scmp.ne.s32.totalorder %s114, %s116
      %p123 = scmp.eq.s32.totalorder %s33, 1
      %p124 = por %p122, %p123
      %p125 = scmp.ne.s32.totalorder %s116, %s117
      %p126 = scmp.eq.s32.totalorder %s33, 0
      %p127 = por %p125, %p126
      %p128 = scmp.ne.s32.totalorder %s116, %s117
      %p129 = scmp.eq.s32.totalorder %s34, 1
      %p130 = por %p128, %p129
      %p132 = scmp.ne.s32.totalorder %s117, %s131
      %p133 = scmp.eq.s32.totalorder %s34, 0
      %p134 = por %p132, %p133
      %s136 = sadd.s32 %s135, 1
      %p139 = scmp.eq.s32.totalorder %s28, 1
      %p140 = scmp.ne.s32.totalorder %s135, %s137
      %p141 = scmp.eq.s32.totalorder %s28, 0
      %p142 = por %p140, %p141
      %p143 = scmp.ne.s32.totalorder %s135, %s137
      %p144 = scmp.eq.s32.totalorder %s33, 1
      %p145 = por %p143, %p144
      %p146 = scmp.ne.s32.totalorder %s137, %s138
      %p147 = scmp.eq.s32.totalorder %s33, 0
      %p148 = por %p146, %p147
      %p149 = scmp.ne.s32.totalorder %s137, %s138
      %p150 = scmp.eq.s32.totalorder %s34, 1
      %p151 = por %p149, %p150
      %p153 = scmp.ne.s32.totalorder %s138, %s152
      %p154 = scmp.eq.s32.totalorder %s34, 0
      %p155 = por %p153, %p154
      %s157 = sadd.s32 %s156, 1
      %p160 = scmp.eq.s32.totalorder %s28, 1
      %p161 = scmp.ne.s32.totalorder %s156, %s158
      %p162 = scmp.eq.s32.totalorder %s28, 0
      %p163 = por %p161, %p162
      %p164 = scmp.ne.s32.totalorder %s156, %s158
      %p165 = scmp.eq.s32.totalorder %s33, 1
      %p166 = por %p164, %p165
      %p167 = scmp.ne.s32.totalorder %s158, %s159
      %p168 = scmp.eq.s32.totalorder %s33, 0
      %p169 = por %p167, %p168
      %p170 = scmp.ne.s32.totalorder %s158, %s159
      %p171 = scmp.eq.s32.totalorder %s34, 1
      %p172 = por %p170, %p171
      %p174 = scmp.ne.s32.totalorder %s159, %s173
      %p175 = scmp.eq.s32.totalorder %s34, 0
      %p176 = por %p174, %p175
      %s178 = sadd.s32 %s177, 1
      %p181 = scmp.eq.s32.totalorder %s28, 1
      %p182 = scmp.ne.s32.totalorder %s177, %s179
      %p183 = scmp.eq.s32.totalorder %s28, 0
      %p184 = por %p182, %p183
      %p185 = scmp.ne.s32.totalorder %s177, %s179
      %p186 = scmp.eq.s32.totalorder %s33, 1
      %p187 = por %p185, %p186
      %p188 = scmp.ne.s32.totalorder %s179, %s180
      %p189 = scmp.eq.s32.totalorder %s33, 0
      %p190 = por %p188, %p189
      %p191 = scmp.ne.s32.totalorder %s179, %s180
      %p192 = scmp.eq.s32.totalorder %s34, 1
      %p193 = por %p191, %p192
      %p195 = scmp.ne.s32.totalorder %s180, %s194
      %p196 = scmp.eq.s32.totalorder %s34, 0
      %p197 = por %p195, %p196
      %s199 = sadd.s32 %s198, 1
      %p202 = scmp.eq.s32.totalorder %s28, 1
      %p203 = scmp.ne.s32.totalorder %s198, %s200
      %p204 = scmp.eq.s32.totalorder %s28, 0
      %p205 = por %p203, %p204
      %p206 = scmp.ne.s32.totalorder %s198, %s200
      %p207 = scmp.eq.s32.totalorder %s33, 1
      %p208 = por %p206, %p207
      %p209 = scmp.ne.s32.totalorder %s200, %s201
      %p210 = scmp.eq.s32.totalorder %s33, 0
      %p211 = por %p209, %p210
      %p212 = scmp.ne.s32.totalorder %s200, %s201
      %p213 = scmp.eq.s32.totalorder %s34, 1
      %p214 = por %p212, %p213
      %p216 = scmp.ne.s32.totalorder %s201, %s215
      %p217 = scmp.eq.s32.totalorder %s34, 0
      %p218 = por %p216, %p217
      %s220 = sadd.s32 %s219, 1
      %p223 = scmp.eq.s32.totalorder %s28, 1
      %p224 = scmp.ne.s32.totalorder %s219, %s221
      %p225 = scmp.eq.s32.totalorder %s28, 0
      %p226 = por %p224, %p225
      %p227 = scmp.ne.s32.totalorder %s219, %s221
      %p228 = scmp.eq.s32.totalorder %s33, 1
      %p229 = por %p227, %p228
      %p230 = scmp.ne.s32.totalorder %s221, %s222
      %p231 = scmp.eq.s32.totalorder %s33, 0
      %p232 = por %p230, %p231
      %p233 = scmp.ne.s32.totalorder %s221, %s222
      %p234 = scmp.eq.s32.totalorder %s34, 1
      %p235 = por %p233, %p234
      %p237 = scmp.ne.s32.totalorder %s222, %s236
      %p238 = scmp.eq.s32.totalorder %s34, 0
      %p239 = por %p237, %p238
      %s241 = sadd.s32 %s240, 1
      %p244 = scmp.eq.s32.totalorder %s28, 1
      %p245 = scmp.ne.s32.totalorder %s240, %s242
      %p246 = scmp.eq.s32.totalorder %s28, 0
      %p247 = por %p245, %p246
      %p248 = scmp.ne.s32.totalorder %s240, %s242
      %p249 = scmp.eq.s32.totalorder %s33, 1
      %p250 = por %p248, %p249
      %p251 = scmp.ne.s32.totalorder %s242, %s243
      %p252 = scmp.eq.s32.totalorder %s33, 0
      %p253 = por %p251, %p252
      %p254 = scmp.ne.s32.totalorder %s242, %s243
      %p255 = scmp.eq.s32.totalorder %s34, 1
      %p256 = por %p254, %p255
      %p258 = scmp.ne.s32.totalorder %s243, %s257
      %p259 = scmp.eq.s32.totalorder %s34, 0
      %p260 = por %p258, %p259
      %s261 = ssub.s32 %s28, %s35
      %p262 = scmp.eq.s32.totalorder %s261, 0
      %s264 = sadd.s32 %s263, 1
      %s265 = scalar_select %p262, %s263, %s264
      %p268 = pneg %p262
      %p269 = scmp.eq.s32.totalorder %s28, 1
      %p270 = por %p268, %p269
      %p271 = scmp.ne.s32.totalorder %s263, %s266
      %p272 = scmp.eq.s32.totalorder %s28, 0
      %p273 = por %p271, %p272
      %p274 = scmp.ne.s32.totalorder %s263, %s266
      %p275 = scmp.eq.s32.totalorder %s33, 1
      %p276 = por %p274, %p275
      %p277 = scmp.ne.s32.totalorder %s266, %s267
      %p278 = scmp.eq.s32.totalorder %s33, 0
      %p279 = por %p277, %p278
      %p280 = scmp.ne.s32.totalorder %s266, %s267
      %p281 = scmp.eq.s32.totalorder %s34, 1
      %p282 = por %p280, %p281
      %p284 = scmp.ne.s32.totalorder %s267, %s283
      %p285 = scmp.eq.s32.totalorder %s34, 0
      %p286 = por %p284, %p285
      %p287 = scmp.le.s32.totalorder 1, %s28
      %p288 = scmp.lt.s32.totalorder %s28, 3
      %p289 = pnand %p287, %p288
      %p290 = pneg %p289
      // Predicated region
      $region9: #{tpu_custom_call.1} parent=5 // pred_check
        _
      $region10: #{tpu_custom_call.1} parent=5 // pred_check_branch
        %292 = sbr.rel (%p289) target = $region12
      $region11: #{tpu_custom_call.1} parent=5 // pred_region
        %s293 = ssub.s32 %s28, 1
        // Predicated region
        $region13: #{tpu_custom_call.1} parent=11 // pred_check
          %p294 = pneg %p127
        $region14: #{tpu_custom_call.1} parent=11 // pred_check_branch
          %296 = sbr.rel (%p294) target = $region16
        $region15: #{tpu_custom_call.1} parent=11 // pred_region
          %s298 = ssub.s32 2048, 2048
          %299 = vsyncadd [#allocation9], %s298
          %s300 = sshll.u32 [#allocation8], 4
          %s301 = int_to_ptr.vmem [resolvable:$true] %s300
          %306 = dma.hbm_to_vmem [thread:$0]  %s3, 2048, %s301, [#allocation9], 128, 128, 8
        $region16: #{tpu_custom_call.1} parent=11 // pred_fallthru
          _
        // Predicated region
        $region17: #{tpu_custom_call.1} parent=11 // pred_check
          %p307 = pneg %p148
        $region18: #{tpu_custom_call.1} parent=11 // pred_check_branch
          %309 = sbr.rel (%p307) target = $region20
        $region19: #{tpu_custom_call.1} parent=11 // pred_region
          %s311 = ssub.s32 2048, 2048
          %312 = vsyncadd [#allocation9], %s311
          %s313 = sshll.u32 [#allocation10], 4
          %s314 = int_to_ptr.vmem [resolvable:$true] %s313
          %319 = dma.hbm_to_vmem [thread:$0]  %s4, 2048, %s314, [#allocation9], 64, 64, 4
        $region20: #{tpu_custom_call.1} parent=11 // pred_fallthru
          _
        // Predicated region
        $region21: #{tpu_custom_call.1} parent=11 // pred_check
          %p320 = pneg %p169
        $region22: #{tpu_custom_call.1} parent=11 // pred_check_branch
          %322 = sbr.rel (%p320) target = $region24
        $region23: #{tpu_custom_call.1} parent=11 // pred_region
          %s324 = ssub.s32 1024, 1024
          %325 = vsyncadd [#allocation12], %s324
          %s326 = sshll.u32 [#allocation11], 4
          %s327 = int_to_ptr.vmem [resolvable:$true] %s326
          %332 = dma.hbm_to_vmem [thread:$0]  %s5, 1024, %s327, [#allocation12], 64, 64, 4
        $region24: #{tpu_custom_call.1} parent=11 // pred_fallthru
          _
        // Predicated region
        $region25: #{tpu_custom_call.1} parent=11 // pred_check
          %p333 = pneg %p190
        $region26: #{tpu_custom_call.1} parent=11 // pred_check_branch
          %335 = sbr.rel (%p333) target = $region28
        $region27: #{tpu_custom_call.1} parent=11 // pred_region
          %s337 = ssub.s32 4096, 4096
          %338 = vsyncadd [#allocation12], %s337
          %s339 = sshll.u32 [#allocation13], 4
          %s340 = int_to_ptr.vmem [resolvable:$true] %s339
          %345 = dma.hbm_to_vmem [thread:$0]  %s6, 4096, %s340, [#allocation12], 256, 256, 16
        $region28: #{tpu_custom_call.1} parent=11 // pred_fallthru
          _
        // Predicated region
        $region29: #{tpu_custom_call.1} parent=11 // pred_check
          %p346 = pneg %p211
        $region30: #{tpu_custom_call.1} parent=11 // pred_check_branch
          %348 = sbr.rel (%p346) target = $region32
        $region31: #{tpu_custom_call.1} parent=11 // pred_region
          %s350 = ssub.s32 1024, 1024
          %351 = vsyncadd [#allocation15], %s350
          %s352 = sshll.u32 [#allocation14], 4
          %s353 = int_to_ptr.vmem [resolvable:$true] %s352
          %358 = dma.hbm_to_vmem [thread:$0]  %s7, 1024, %s353, [#allocation15], 64, 64, 4
        $region32: #{tpu_custom_call.1} parent=11 // pred_fallthru
          _
        // Predicated region
        $region33: #{tpu_custom_call.1} parent=11 // pred_check
          %p359 = pneg %p232
        $region34: #{tpu_custom_call.1} parent=11 // pred_check_branch
          %361 = sbr.rel (%p359) target = $region36
        $region35: #{tpu_custom_call.1} parent=11 // pred_region
          %s363 = ssub.s32 4096, 4096
          %364 = vsyncadd [#allocation15], %s363
          %s365 = sshll.u32 [#allocation16], 4
          %s366 = int_to_ptr.vmem [resolvable:$true] %s365
          %371 = dma.hbm_to_vmem [thread:$0]  %s8, 4096, %s366, [#allocation15], 64, 64, 4
        $region36: #{tpu_custom_call.1} parent=11 // pred_fallthru
          _
        // Predicated region
        $region37: #{tpu_custom_call.1} parent=11 // pred_check
          %p372 = pneg %p253
        $region38: #{tpu_custom_call.1} parent=11 // pred_check_branch
          %374 = sbr.rel (%p372) target = $region40
        $region39: #{tpu_custom_call.1} parent=11 // pred_region
          _
        $region40: #{tpu_custom_call.1} parent=11 // pred_fallthru
          _
      $region12: #{tpu_custom_call.1} parent=5 // pred_fallthru
        _
      %p375 = scmp.lt.s32.totalorder %s28, 2
      // Predicated region
      $region41: #{tpu_custom_call.1} parent=5 // pred_check
        %p376 = pneg %p375
      $region42: #{tpu_custom_call.1} parent=5 // pred_check_branch
        %378 = sbr.rel (%p376) target = $region44
      $region43: #{tpu_custom_call.1} parent=5 // pred_region
        // Predicated region
        $region45: #{tpu_custom_call.1} parent=43 // pred_check
          %p379 = pneg %p48
        $region46: #{tpu_custom_call.1} parent=43 // pred_check_branch
          %381 = sbr.rel (%p379) target = $region48
        $region47: #{tpu_custom_call.1} parent=43 // pred_region
          %s382 = sand.u32 %s38, 1
          %s383 = scalar_lea.sflag [#allocation3], %s382
          %s384 = sand.u32 %s38, 1
          %s385 = smul.addr %s384, 128
          %s386 = scalar_lea.vmem [#allocation2], %s385
          %s387 = smul.u32 32, %s28
          %s389 = ssub.s32 2048, 2048
          %390 = vsyncadd %s383, %s389
          %s391 = smul.addr %s387, 64
          %s392 = scalar_lea.hbm %s0, %s391
          %s393 = sshll.u32 %s386, 4
          %s394 = int_to_ptr.vmem [resolvable:$true] %s393
          %399 = dma.hbm_to_vmem [thread:$0]  %s392, 2048, %s394, %s383, 64, 64, 4
        $region48: #{tpu_custom_call.1} parent=43 // pred_fallthru
          _
        // Predicated region
        $region49: #{tpu_custom_call.1} parent=43 // pred_check
          %p400 = pneg %p74
        $region50: #{tpu_custom_call.1} parent=43 // pred_check_branch
          %402 = sbr.rel (%p400) target = $region52
        $region51: #{tpu_custom_call.1} parent=43 // pred_region
          %s403 = sand.u32 %s28, 1
          %s404 = scalar_lea.sflag [#allocation6], %s403
          %s405 = sand.u32 %s64, 1
          %s406 = smul.addr %s405, 256
          %s407 = scalar_lea.vmem [#allocation5], %s406
          %s408 = smul.u32 32, %s28
          %s410 = ssub.s32 4096, 4096
          %411 = vsyncadd %s404, %s410
          %s412 = smul.addr %s408, 128
          %s413 = scalar_lea.hbm %s1, %s412
          %s414 = sshll.u32 %s407, 4
          %s415 = int_to_ptr.vmem [resolvable:$true] %s414
          %420 = dma.hbm_to_vmem [thread:$0]  %s413, 4096, %s415, %s404, 128, 128, 8
        $region52: #{tpu_custom_call.1} parent=43 // pred_fallthru
          _
        // Predicated region
        $region53: #{tpu_custom_call.1} parent=43 // pred_check
          %p421 = pneg %p100
        $region54: #{tpu_custom_call.1} parent=43 // pred_check_branch
          %423 = sbr.rel (%p421) target = $region56
        $region55: #{tpu_custom_call.1} parent=43 // pred_region
          %s424 = sand.u32 %s28, 1
          %s425 = scalar_lea.sflag [#allocation6], %s424
          %s426 = sand.u32 %s90, 1
          %s427 = smul.addr %s426, 128
          %s428 = scalar_lea.vmem [#allocation7], %s427
          %s429 = smul.u32 32, %s28
          %s431 = ssub.s32 2048, 2048
          %432 = vsyncadd %s425, %s431
          %s433 = smul.addr %s429, 64
          %s434 = scalar_lea.hbm %s2, %s433
          %s435 = sshll.u32 %s428, 4
          %s436 = int_to_ptr.vmem [resolvable:$true] %s435
          %441 = dma.hbm_to_vmem [thread:$0]  %s434, 2048, %s436, %s425, 64, 64, 4
        $region56: #{tpu_custom_call.1} parent=43 // pred_fallthru
          _
      $region44: #{tpu_custom_call.1} parent=5 // pred_fallthru
        _
      %p442 = scmp.le.s32.totalorder 1, %s28
      %p443 = scmp.lt.s32.totalorder %s28, 3
      %p444 = pnand %p442, %p443
      %p445 = pneg %p444
      // Predicated region
      $region57: #{tpu_custom_call.1} parent=5 // pred_check
        _
      $region58: #{tpu_custom_call.1} parent=5 // pred_check_branch
        %447 = sbr.rel (%p444) target = $region60
      $region59: #{tpu_custom_call.1} parent=5 // pred_region
        %s448 = ssub.s32 %s28, 1
        %s449 = sand.u32 %s41, 1
        %s450 = scalar_lea.sflag [#allocation3], %s449
        %s451 = sand.u32 %s41, 1
        %s452 = smul.addr %s451, 128
        %s453 = scalar_lea.vmem [#allocation2], %s452
        // Predicated region
        $region61: #{tpu_custom_call.1} parent=59 // pred_check
          %p454 = pneg %p54
        $region62: #{tpu_custom_call.1} parent=59 // pred_check_branch
          %456 = sbr.rel (%p454) target = $region64
        $region63: #{tpu_custom_call.1} parent=59 // pred_region
          %457 = dma.done %s450, 2048
        $region64: #{tpu_custom_call.1} parent=59 // pred_fallthru
          _
        %s458 = sand.u32 %s33, 1
        %s459 = scalar_lea.sflag [#allocation6], %s458
        %s460 = sand.u32 %s67, 1
        %s461 = smul.addr %s460, 256
        %s462 = scalar_lea.vmem [#allocation5], %s461
        // Predicated region
        $region65: #{tpu_custom_call.1} parent=59 // pred_check
          %p463 = pneg %p80
        $region66: #{tpu_custom_call.1} parent=59 // pred_check_branch
          %465 = sbr.rel (%p463) target = $region68
        $region67: #{tpu_custom_call.1} parent=59 // pred_region
          %466 = dma.done %s459, 4096
        $region68: #{tpu_custom_call.1} parent=59 // pred_fallthru
          _
        %s467 = sand.u32 %s33, 1
        %s468 = scalar_lea.sflag [#allocation6], %s467
        %s469 = sand.u32 %s93, 1
        %s470 = smul.addr %s469, 128
        %s471 = scalar_lea.vmem [#allocation7], %s470
        // Predicated region
        $region69: #{tpu_custom_call.1} parent=59 // pred_check
          %p472 = pneg %p106
        $region70: #{tpu_custom_call.1} parent=59 // pred_check_branch
          %474 = sbr.rel (%p472) target = $region72
        $region71: #{tpu_custom_call.1} parent=59 // pred_region
          %475 = dma.done %s468, 2048
        $region72: #{tpu_custom_call.1} parent=59 // pred_fallthru
          _
        // Predicated region
        $region73: #{tpu_custom_call.1} parent=59 // pred_check
          %p476 = pneg %p127
        $region74: #{tpu_custom_call.1} parent=59 // pred_check_branch
          %478 = sbr.rel (%p476) target = $region76
        $region75: #{tpu_custom_call.1} parent=59 // pred_region
          %479 = dma.done [#allocation9], 2048
        $region76: #{tpu_custom_call.1} parent=59 // pred_fallthru
          _
        // Predicated region
        $region77: #{tpu_custom_call.1} parent=59 // pred_check
          %p480 = pneg %p148
        $region78: #{tpu_custom_call.1} parent=59 // pred_check_branch
          %482 = sbr.rel (%p480) target = $region80
        $region79: #{tpu_custom_call.1} parent=59 // pred_region
          %483 = dma.done [#allocation9], 2048
        $region80: #{tpu_custom_call.1} parent=59 // pred_fallthru
          _
        // Predicated region
        $region81: #{tpu_custom_call.1} parent=59 // pred_check
          %p484 = pneg %p169
        $region82: #{tpu_custom_call.1} parent=59 // pred_check_branch
          %486 = sbr.rel (%p484) target = $region84
        $region83: #{tpu_custom_call.1} parent=59 // pred_region
          %487 = dma.done [#allocation12], 1024
        $region84: #{tpu_custom_call.1} parent=59 // pred_fallthru
          _
        // Predicated region
        $region85: #{tpu_custom_call.1} parent=59 // pred_check
          %p488 = pneg %p190
        $region86: #{tpu_custom_call.1} parent=59 // pred_check_branch
          %490 = sbr.rel (%p488) target = $region88
        $region87: #{tpu_custom_call.1} parent=59 // pred_region
          %491 = dma.done [#allocation12], 4096
        $region88: #{tpu_custom_call.1} parent=59 // pred_fallthru
          _
        // Predicated region
        $region89: #{tpu_custom_call.1} parent=59 // pred_check
          %p492 = pneg %p211
        $region90: #{tpu_custom_call.1} parent=59 // pred_check_branch
          %494 = sbr.rel (%p492) target = $region92
        $region91: #{tpu_custom_call.1} parent=59 // pred_region
          %495 = dma.done [#allocation15], 1024
        $region92: #{tpu_custom_call.1} parent=59 // pred_fallthru
          _
        // Predicated region
        $region93: #{tpu_custom_call.1} parent=59 // pred_check
          %p496 = pneg %p232
        $region94: #{tpu_custom_call.1} parent=59 // pred_check_branch
          %498 = sbr.rel (%p496) target = $region96
        $region95: #{tpu_custom_call.1} parent=59 // pred_region
          %499 = dma.done [#allocation15], 4096
        $region96: #{tpu_custom_call.1} parent=59 // pred_fallthru
          _
        %s500 = sand.u32 %s41, 1
        %s501 = scalar_lea.sflag [#allocation3], %s500
        %s502 = sand.u32 %s41, 1
        %s503 = smul.addr %s502, 128
        %s504 = scalar_lea.vmem [#allocation2], %s503
        %p505 = pneg %p54
        %p506 = pneg %p51
        %s507 = sand.u32 %s33, 1
        %s508 = scalar_lea.sflag [#allocation6], %s507
        %s509 = sand.u32 %s67, 1
        %s510 = smul.addr %s509, 256
        %s511 = scalar_lea.vmem [#allocation5], %s510
        %p512 = pneg %p80
        %p513 = pneg %p77
        %s514 = sand.u32 %s33, 1
        %s515 = scalar_lea.sflag [#allocation6], %s514
        %s516 = sand.u32 %s93, 1
        %s517 = smul.addr %s516, 128
        %s518 = scalar_lea.vmem [#allocation7], %s517
        %p519 = pneg %p106
        %p520 = pneg %p103
        %p521 = pneg %p127
        %p522 = pneg %p124
        %p523 = pneg %p148
        %p524 = pneg %p145
        %p525 = pneg %p169
        %p526 = pneg %p166
        %p527 = pneg %p190
        %p528 = pneg %p187
        %p529 = pneg %p211
        %p530 = pneg %p208
        %p531 = pneg %p232
        %p532 = pneg %p229
        %p533 = pneg %p253
        %p534 = pneg %p250
        %p535 = pneg %p279
        %p536 = pneg %p276
        %s537 = sand.u32 %s266, 1
        %s538 = scalar_lea.sflag [#allocation4], %s537
        %s539 = sand.u32 %s266, 1
        %s540 = smul.addr %s539, 256
        %s541 = scalar_lea.vmem [#allocation17], %s540
        %s542 = smul.u32 32, %s33
        %s543 = smul.u32 32, %s33
        %s544 = smul.u32 32, %s33
        %s545 = smul.u32 32, %s33
        %v547 = vld [vmem:[%s9] sm:$0xff]
        %v548 = vld [vmem:[%s9 + $0x8] sm:$0xff]
        %v549 = vld [vmem:[%s9 + $0x10] sm:$0xff]
        %v550 = vld [vmem:[%s9 + $0x18] sm:$0xff]
        %v551 = vld [vmem:[%s453] sm:$0xf]
        %v552 = vld [vmem:[%s453 + $0x4] sm:$0xf]
        %v553 = vld [vmem:[%s453 + $0x8] sm:$0xf]
        %v554 = vld [vmem:[%s453 + $0xc] sm:$0xf]
        %v555 = vld [vmem:[%s453 + $0x10] sm:$0xf]
        %v556 = vld [vmem:[%s453 + $0x14] sm:$0xf]
        %v557 = vld [vmem:[%s453 + $0x18] sm:$0xf]
        %v558 = vld [vmem:[%s453 + $0x1c] sm:$0xf]
        %v559 = vld [vmem:[%s453 + $0x20] sm:$0xf]
        %v560 = vld [vmem:[%s453 + $0x24] sm:$0xf]
        %v561 = vld [vmem:[%s453 + $0x28] sm:$0xf]
        %v562 = vld [vmem:[%s453 + $0x2c] sm:$0xf]
        %v563 = vld [vmem:[%s453 + $0x30] sm:$0xf]
        %v564 = vld [vmem:[%s453 + $0x34] sm:$0xf]
        %v565 = vld [vmem:[%s453 + $0x38] sm:$0xf]
        %v566 = vld [vmem:[%s453 + $0x3c] sm:$0xf]
        %v567 = vld [vmem:[%s453 + $0x40] sm:$0xf]
        %v568 = vld [vmem:[%s453 + $0x44] sm:$0xf]
        %v569 = vld [vmem:[%s453 + $0x48] sm:$0xf]
        %v570 = vld [vmem:[%s453 + $0x4c] sm:$0xf]
        %v571 = vld [vmem:[%s453 + $0x50] sm:$0xf]
        %v572 = vld [vmem:[%s453 + $0x54] sm:$0xf]
        %v573 = vld [vmem:[%s453 + $0x58] sm:$0xf]
        %v574 = vld [vmem:[%s453 + $0x5c] sm:$0xf]
        %v575 = vld [vmem:[%s453 + $0x60] sm:$0xf]
        %v576 = vld [vmem:[%s453 + $0x64] sm:$0xf]
        %v577 = vld [vmem:[%s453 + $0x68] sm:$0xf]
        %v578 = vld [vmem:[%s453 + $0x6c] sm:$0xf]
        %v579 = vld [vmem:[%s453 + $0x70] sm:$0xf]
        %v580 = vld [vmem:[%s453 + $0x74] sm:$0xf]
        %v581 = vld [vmem:[%s453 + $0x78] sm:$0xf]
        %v582 = vld [vmem:[%s453 + $0x7c] sm:$0xf]
        %v583 = vld [vmem:[#allocation8] sm:$0xff]
        %v584 = vld [vmem:[#allocation8 + $0x8] sm:$0xff]
        %v585 = vld [vmem:[#allocation8 + $0x10] sm:$0xff]
        %v586 = vld [vmem:[#allocation8 + $0x18] sm:$0xff]
        %v587 = vld [vmem:[#allocation8 + $0x20] sm:$0xff]
        %v588 = vld [vmem:[#allocation8 + $0x28] sm:$0xff]
        %v589 = vld [vmem:[#allocation8 + $0x30] sm:$0xff]
        %v590 = vld [vmem:[#allocation8 + $0x38] sm:$0xff]
        %v591 = vld [vmem:[#allocation8 + $0x40] sm:$0xff]
        %v592 = vld [vmem:[#allocation8 + $0x48] sm:$0xff]
        %v593 = vld [vmem:[#allocation8 + $0x50] sm:$0xff]
        %v594 = vld [vmem:[#allocation8 + $0x58] sm:$0xff]
        %v595 = vld [vmem:[#allocation8 + $0x60] sm:$0xff]
        %v596 = vld [vmem:[#allocation8 + $0x68] sm:$0xff]
        %v597 = vld [vmem:[#allocation8 + $0x70] sm:$0xff]
        %v598 = vld [vmem:[#allocation8 + $0x78] sm:$0xff]
        %v631 = vunpack.c.l.b16 %v551
        %v632 = vunpack.c.l.b16 %v552
        %v633 = vunpack.c.l.b16 %v553
        %v634 = vunpack.c.l.b16 %v554
        %v635 = vunpack.c.l.b16 %v555
        %v636 = vunpack.c.l.b16 %v556
        %v637 = vunpack.c.l.b16 %v557
        %v638 = vunpack.c.l.b16 %v558
        %v639 = vunpack.c.l.b16 %v559
        %v640 = vunpack.c.l.b16 %v560
        %v641 = vunpack.c.l.b16 %v561
        %v642 = vunpack.c.l.b16 %v562
        %v643 = vunpack.c.l.b16 %v563
        %v644 = vunpack.c.l.b16 %v564
        %v645 = vunpack.c.l.b16 %v565
        %v646 = vunpack.c.l.b16 %v566
        %v647 = vunpack.c.l.b16 %v567
        %v648 = vunpack.c.l.b16 %v568
        %v649 = vunpack.c.l.b16 %v569
        %v650 = vunpack.c.l.b16 %v570
        %v651 = vunpack.c.l.b16 %v571
        %v652 = vunpack.c.l.b16 %v572
        %v653 = vunpack.c.l.b16 %v573
        %v654 = vunpack.c.l.b16 %v574
        %v655 = vunpack.c.l.b16 %v575
        %v656 = vunpack.c.l.b16 %v576
        %v657 = vunpack.c.l.b16 %v577
        %v658 = vunpack.c.l.b16 %v578
        %v659 = vunpack.c.l.b16 %v579
        %v660 = vunpack.c.l.b16 %v580
        %v661 = vunpack.c.l.b16 %v581
        %v662 = vunpack.c.l.b16 %v582
        %v663 = vpack.c.b16 %v632, %v631
        %v664 = vpack.c.b16 %v634, %v633
        %v665 = vpack.c.b16 %v636, %v635
        %v666 = vpack.c.b16 %v638, %v637
        %v667 = vpack.c.b16 %v640, %v639
        %v668 = vpack.c.b16 %v642, %v641
        %v669 = vpack.c.b16 %v644, %v643
        %v670 = vpack.c.b16 %v646, %v645
        %v671 = vpack.c.b16 %v648, %v647
        %v672 = vpack.c.b16 %v650, %v649
        %v673 = vpack.c.b16 %v652, %v651
        %v674 = vpack.c.b16 %v654, %v653
        %v675 = vpack.c.b16 %v656, %v655
        %v676 = vpack.c.b16 %v658, %v657
        %v677 = vpack.c.b16 %v660, %v659
        %v678 = vpack.c.b16 %v662, %v661
        %v711 = vunpack.c.l.b16 %v583
        %v712 = vunpack.c.h.b16 %v583
        %v713 = vunpack.c.l.b16 %v584
        %v714 = vunpack.c.h.b16 %v584
        %v715 = vunpack.c.l.b16 %v585
        %v716 = vunpack.c.h.b16 %v585
        %v717 = vunpack.c.l.b16 %v586
        %v718 = vunpack.c.h.b16 %v586
        %v719 = vunpack.c.l.b16 %v587
        %v720 = vunpack.c.h.b16 %v587
        %v721 = vunpack.c.l.b16 %v588
        %v722 = vunpack.c.h.b16 %v588
        %v723 = vunpack.c.l.b16 %v589
        %v724 = vunpack.c.h.b16 %v589
        %v725 = vunpack.c.l.b16 %v590
        %v726 = vunpack.c.h.b16 %v590
        %v727 = vunpack.c.l.b16 %v591
        %v728 = vunpack.c.h.b16 %v591
        %v729 = vunpack.c.l.b16 %v592
        %v730 = vunpack.c.h.b16 %v592
        %v731 = vunpack.c.l.b16 %v593
        %v732 = vunpack.c.h.b16 %v593
        %v733 = vunpack.c.l.b16 %v594
        %v734 = vunpack.c.h.b16 %v594
        %v735 = vunpack.c.l.b16 %v595
        %v736 = vunpack.c.h.b16 %v595
        %v737 = vunpack.c.l.b16 %v596
        %v738 = vunpack.c.h.b16 %v596
        %v739 = vunpack.c.l.b16 %v597
        %v740 = vunpack.c.h.b16 %v597
        %v741 = vunpack.c.l.b16 %v598
        %v742 = vunpack.c.h.b16 %v598
        %v743 = vpack.c.b16 %v713, %v711
        %v744 = vpack.c.b16 %v714, %v712
        %v745 = vpack.c.b16 %v717, %v715
        %v746 = vpack.c.b16 %v718, %v716
        %v747 = vpack.c.b16 %v721, %v719
        %v748 = vpack.c.b16 %v722, %v720
        %v749 = vpack.c.b16 %v725, %v723
        %v750 = vpack.c.b16 %v726, %v724
        %v751 = vpack.c.b16 %v729, %v727
        %v752 = vpack.c.b16 %v730, %v728
        %v753 = vpack.c.b16 %v733, %v731
        %v754 = vpack.c.b16 %v734, %v732
        %v755 = vpack.c.b16 %v737, %v735
        %v756 = vpack.c.b16 %v738, %v736
        %v757 = vpack.c.b16 %v741, %v739
        %v758 = vpack.c.b16 %v742, %v740
        %775 = vmatprep.subr.bf16.mxu0 %v744
        %776 = vmatpush1.bf16.msra.mxu0 %v743
        %777 = vmatprep.subr.bf16.mxu0 %v746
        %778 = vmatpush1.bf16.msra.mxu0 %v745
        %779 = vmatprep.subr.bf16.mxu0 %v748
        %780 = vmatpush1.bf16.msra.mxu0 %v747
        %781 = vmatprep.subr.bf16.mxu0 %v750
        %782 = vmatpush1.bf16.msra.mxu0 %v749
        %783 = vmatprep.subr.bf16.mxu0 %v752
        %784 = vmatpush1.bf16.msra.mxu0 %v751
        %785 = vmatprep.subr.bf16.mxu0 %v754
        %786 = vmatpush1.bf16.msra.mxu0 %v753
        %787 = vmatprep.subr.bf16.mxu0 %v756
        %788 = vmatpush1.bf16.msra.mxu0 %v755
        %789 = vmatprep.subr.bf16.mxu0 %v758
        %790 = vmatpush1.bf16.msra.mxu0 %v757
        %791 = vmatprep.subr.bf16.mxu0 0
        %792 = vmatpush1.bf16.msra.mxu0 0
        %793 = vmatprep.subr.bf16.mxu0 0
        %794 = vmatpush1.bf16.msra.mxu0 0
        %795 = vmatprep.subr.bf16.mxu0 0
        %796 = vmatpush1.bf16.msra.mxu0 0
        %797 = vmatprep.subr.bf16.mxu0 0
        %798 = vmatpush1.bf16.msra.mxu0 0
        %799 = vmatprep.subr.bf16.mxu0 0
        %800 = vmatpush1.bf16.msra.mxu0 0
        %801 = vmatprep.subr.bf16.mxu0 0
        %802 = vmatpush1.bf16.msra.mxu0 0
        %803 = vmatprep.subr.bf16.mxu0 0
        %804 = vmatpush1.bf16.msra.mxu0 0
        %805 = vmatprep.subr.bf16.mxu0 0
        %806 = vmatpush1.bf16.msra.mxu0 0
        %807 = vmatprep.mubr.bf16.mxu0 0
        %808 = vmatmul.mubr.bf16.gmra.mrb[0].mxu0 %v663
        %v809 = vpop.f32.mrb[0].mxu0
        %v810 = vadd.f32 0.0, %v809
        %v811 = vpop.f32.mrb[0].mxu0
        %v812 = vadd.f32 0.0, %v811
        %v813 = vpop.f32.mrb[0].mxu0
        %v814 = vadd.f32 0.0, %v813
        %v815 = vpop.f32.mrb[0].mxu0
        %v816 = vadd.f32 0.0, %v815
        %817 = vmatprep.mubr.bf16.mxu0 0
        %818 = vmatmul.mubr.bf16.gmra.mrb[0].mxu0 %v664
        %v819 = vpop.f32.mrb[0].mxu0
        %v820 = vadd.f32 0.0, %v819
        %v821 = vpop.f32.mrb[0].mxu0
        %v822 = vadd.f32 0.0, %v821
        %v823 = vpop.f32.mrb[0].mxu0
        %v824 = vadd.f32 0.0, %v823
        %v825 = vpop.f32.mrb[0].mxu0
        %v826 = vadd.f32 0.0, %v825
        %827 = vmatprep.mubr.bf16.mxu0 0
        %828 = vmatmul.mubr.bf16.gmra.mrb[0].mxu0 %v665
        %v829 = vpop.f32.mrb[0].mxu0
        %v830 = vadd.f32 0.0, %v829
        %v831 = vpop.f32.mrb[0].mxu0
        %v832 = vadd.f32 0.0, %v831
        %v833 = vpop.f32.mrb[0].mxu0
        %v834 = vadd.f32 0.0, %v833
        %v835 = vpop.f32.mrb[0].mxu0
        %v836 = vadd.f32 0.0, %v835
        %837 = vmatprep.mubr.bf16.mxu0 0
        %838 = vmatmul.mubr.bf16.gmra.mrb[0].mxu0 %v666
        %v839 = vpop.f32.mrb[0].mxu0
        %v840 = vadd.f32 0.0, %v839
        %v841 = vpop.f32.mrb[0].mxu0
        %v842 = vadd.f32 0.0, %v841
        %v843 = vpop.f32.mrb[0].mxu0
        %v844 = vadd.f32 0.0, %v843
        %v845 = vpop.f32.mrb[0].mxu0
        %v846 = vadd.f32 0.0, %v845
        %847 = vmatprep.mubr.bf16.mxu0 0
        %848 = vmatmul.mubr.bf16.gmra.mrb[0].mxu0 %v667
        %v849 = vpop.f32.mrb[0].mxu0
        %v850 = vadd.f32 0.0, %v849
        %v851 = vpop.f32.mrb[0].mxu0
        %v852 = vadd.f32 0.0, %v851
        %v853 = vpop.f32.mrb[0].mxu0
        %v854 = vadd.f32 0.0, %v853
        %v855 = vpop.f32.mrb[0].mxu0
        %v856 = vadd.f32 0.0, %v855
        %857 = vmatprep.mubr.bf16.mxu0 0
        %858 = vmatmul.mubr.bf16.gmra.mrb[0].mxu0 %v668
        %v859 = vpop.f32.mrb[0].mxu0
        %v860 = vadd.f32 0.0, %v859
        %v861 = vpop.f32.mrb[0].mxu0
        %v862 = vadd.f32 0.0, %v861
        %v863 = vpop.f32.mrb[0].mxu0
        %v864 = vadd.f32 0.0, %v863
        %v865 = vpop.f32.mrb[0].mxu0
        %v866 = vadd.f32 0.0, %v865
        %867 = vmatprep.mubr.bf16.mxu0 0
        %868 = vmatmul.mubr.bf16.gmra.mrb[0].mxu0 %v669
        %v869 = vpop.f32.mrb[0].mxu0
        %v870 = vadd.f32 0.0, %v869
        %v871 = vpop.f32.mrb[0].mxu0
        %v872 = vadd.f32 0.0, %v871
        %v873 = vpop.f32.mrb[0].mxu0
        %v874 = vadd.f32 0.0, %v873
        %v875 = vpop.f32.mrb[0].mxu0
        %v876 = vadd.f32 0.0, %v875
        %877 = vmatprep.mubr.bf16.mxu0 0
        %878 = vmatmul.mubr.bf16.gmra.mrb[0].mxu0 %v670
        %v879 = vpop.f32.mrb[0].mxu0
        %v880 = vadd.f32 0.0, %v879
        %v881 = vpop.f32.mrb[0].mxu0
        %v882 = vadd.f32 0.0, %v881
        %v883 = vpop.f32.mrb[0].mxu0
        %v884 = vadd.f32 0.0, %v883
        %v885 = vpop.f32.mrb[0].mxu0
        %v886 = vadd.f32 0.0, %v885
        %887 = vmatprep.mubr.bf16.mxu0 0
        %888 = vmatmul.mubr.bf16.gmra.mrb[0].mxu0 %v671
        %v889 = vpop.f32.mrb[0].mxu0
        %v890 = vadd.f32 0.0, %v889
        %v891 = vpop.f32.mrb[0].mxu0
        %v892 = vadd.f32 0.0, %v891
        %v893 = vpop.f32.mrb[0].mxu0
        %v894 = vadd.f32 0.0, %v893
        %v895 = vpop.f32.mrb[0].mxu0
        %v896 = vadd.f32 0.0, %v895
        %897 = vmatprep.mubr.bf16.mxu0 0
        %898 = vmatmul.mubr.bf16.gmra.mrb[0].mxu0 %v672
        %v899 = vpop.f32.mrb[0].mxu0
        %v900 = vadd.f32 0.0, %v899
        %v901 = vpop.f32.mrb[0].mxu0
        %v902 = vadd.f32 0.0, %v901
        %v903 = vpop.f32.mrb[0].mxu0
        %v904 = vadd.f32 0.0, %v903
        %v905 = vpop.f32.mrb[0].mxu0
        %v906 = vadd.f32 0.0, %v905
        %907 = vmatprep.mubr.bf16.mxu0 0
        %908 = vmatmul.mubr.bf16.gmra.mrb[0].mxu0 %v673
        %v909 = vpop.f32.mrb[0].mxu0
        %v910 = vadd.f32 0.0, %v909
        %v911 = vpop.f32.mrb[0].mxu0
        %v912 = vadd.f32 0.0, %v911
        %v913 = vpop.f32.mrb[0].mxu0
        %v914 = vadd.f32 0.0, %v913
        %v915 = vpop.f32.mrb[0].mxu0
        %v916 = vadd.f32 0.0, %v915
        %917 = vmatprep.mubr.bf16.mxu0 0
        %918 = vmatmul.mubr.bf16.gmra.mrb[0].mxu0 %v674
        %v919 = vpop.f32.mrb[0].mxu0
        %v920 = vadd.f32 0.0, %v919
        %v921 = vpop.f32.mrb[0].mxu0
        %v922 = vadd.f32 0.0, %v921
        %v923 = vpop.f32.mrb[0].mxu0
        %v924 = vadd.f32 0.0, %v923
        %v925 = vpop.f32.mrb[0].mxu0
        %v926 = vadd.f32 0.0, %v925
        %927 = vmatprep.mubr.bf16.mxu0 0
        %928 = vmatmul.mubr.bf16.gmra.mrb[0].mxu0 %v675
        %v929 = vpop.f32.mrb[0].mxu0
        %v930 = vadd.f32 0.0, %v929
        %v931 = vpop.f32.mrb[0].mxu0
        %v932 = vadd.f32 0.0, %v931
        %v933 = vpop.f32.mrb[0].mxu0
        %v934 = vadd.f32 0.0, %v933
        %v935 = vpop.f32.mrb[0].mxu0
        %v936 = vadd.f32 0.0, %v935
        %937 = vmatprep.mubr.bf16.mxu0 0
        %938 = vmatmul.mubr.bf16.gmra.mrb[0].mxu0 %v676
        %v939 = vpop.f32.mrb[0].mxu0
        %v940 = vadd.f32 0.0, %v939
        %v941 = vpop.f32.mrb[0].mxu0
        %v942 = vadd.f32 0.0, %v941
        %v943 = vpop.f32.mrb[0].mxu0
        %v944 = vadd.f32 0.0, %v943
        %v945 = vpop.f32.mrb[0].mxu0
        %v946 = vadd.f32 0.0, %v945
        %947 = vmatprep.mubr.bf16.mxu0 0
        %948 = vmatmul.mubr.bf16.gmra.mrb[0].mxu0 %v677
        %v949 = vpop.f32.mrb[0].mxu0
        %v950 = vadd.f32 0.0, %v949
        %v951 = vpop.f32.mrb[0].mxu0
        %v952 = vadd.f32 0.0, %v951
        %v953 = vpop.f32.mrb[0].mxu0
        %v954 = vadd.f32 0.0, %v953
        %v955 = vpop.f32.mrb[0].mxu0
        %v956 = vadd.f32 0.0, %v955
        %957 = vmatprep.mubr.bf16.mxu0 0
        %958 = vmatmul.mubr.bf16.gmra.mrb[0].mxu0 %v678
        %v959 = vpop.f32.mrb[0].mxu0
        %v960 = vadd.f32 0.0, %v959
        %v961 = vpop.f32.mrb[0].mxu0
        %v962 = vadd.f32 0.0, %v961
        %v963 = vpop.f32.mrb[0].mxu0
        %v964 = vadd.f32 0.0, %v963
        %v965 = vpop.f32.mrb[0].mxu0
        %v966 = vadd.f32 0.0, %v965
        %967 = vdwg.mxu0
        %v968 = vrot.slane %v810, 4
        %v969 = vadd.f32 %v810, %v968
        %v970 = vrot.slane %v969, 2
        %v971 = vadd.f32 %v969, %v970
        %v972 = vrot.slane %v971, 1
        %v973 = vadd.f32 %v971, %v972
        %v974 = vrot.slane %v812, 4
        %v975 = vadd.f32 %v812, %v974
        %v976 = vrot.slane %v975, 2
        %v977 = vadd.f32 %v975, %v976
        %v978 = vrot.slane %v977, 1
        %v979 = vadd.f32 %v977, %v978
        %v980 = vrot.slane %v814, 4
        %v981 = vadd.f32 %v814, %v980
        %v982 = vrot.slane %v981, 2
        %v983 = vadd.f32 %v981, %v982
        %v984 = vrot.slane %v983, 1
        %v985 = vadd.f32 %v983, %v984
        %v986 = vrot.slane %v816, 4
        %v987 = vadd.f32 %v816, %v986
        %v988 = vrot.slane %v987, 2
        %v989 = vadd.f32 %v987, %v988
        %v990 = vrot.slane %v989, 1
        %v991 = vadd.f32 %v989, %v990
        %v992 = vrot.slane %v820, 4
        %v993 = vadd.f32 %v820, %v992
        %v994 = vrot.slane %v993, 2
        %v995 = vadd.f32 %v993, %v994
        %v996 = vrot.slane %v995, 1
        %v997 = vadd.f32 %v995, %v996
        %v998 = vrot.slane %v822, 4
        %v999 = vadd.f32 %v822, %v998
        %v1000 = vrot.slane %v999, 2
        %v1001 = vadd.f32 %v999, %v1000
        %v1002 = vrot.slane %v1001, 1
        %v1003 = vadd.f32 %v1001, %v1002
        %v1004 = vrot.slane %v824, 4
        %v1005 = vadd.f32 %v824, %v1004
        %v1006 = vrot.slane %v1005, 2
        %v1007 = vadd.f32 %v1005, %v1006
        %v1008 = vrot.slane %v1007, 1
        %v1009 = vadd.f32 %v1007, %v1008
        %v1010 = vrot.slane %v826, 4
        %v1011 = vadd.f32 %v826, %v1010
        %v1012 = vrot.slane %v1011, 2
        %v1013 = vadd.f32 %v1011, %v1012
        %v1014 = vrot.slane %v1013, 1
        %v1015 = vadd.f32 %v1013, %v1014
        %v1016 = vrot.slane %v830, 4
        %v1017 = vadd.f32 %v830, %v1016
        %v1018 = vrot.slane %v1017, 2
        %v1019 = vadd.f32 %v1017, %v1018
        %v1020 = vrot.slane %v1019, 1
        %v1021 = vadd.f32 %v1019, %v1020
        %v1022 = vrot.slane %v832, 4
        %v1023 = vadd.f32 %v832, %v1022
        %v1024 = vrot.slane %v1023, 2
        %v1025 = vadd.f32 %v1023, %v1024
        %v1026 = vrot.slane %v1025, 1
        %v1027 = vadd.f32 %v1025, %v1026
        %v1028 = vrot.slane %v834, 4
        %v1029 = vadd.f32 %v834, %v1028
        %v1030 = vrot.slane %v1029, 2
        %v1031 = vadd.f32 %v1029, %v1030
        %v1032 = vrot.slane %v1031, 1
        %v1033 = vadd.f32 %v1031, %v1032
        %v1034 = vrot.slane %v836, 4
        %v1035 = vadd.f32 %v836, %v1034
        %v1036 = vrot.slane %v1035, 2
        %v1037 = vadd.f32 %v1035, %v1036
        %v1038 = vrot.slane %v1037, 1
        %v1039 = vadd.f32 %v1037, %v1038
        %v1040 = vrot.slane %v840, 4
        %v1041 = vadd.f32 %v840, %v1040
        %v1042 = vrot.slane %v1041, 2
        %v1043 = vadd.f32 %v1041, %v1042
        %v1044 = vrot.slane %v1043, 1
        %v1045 = vadd.f32 %v1043, %v1044
        %v1046 = vrot.slane %v842, 4
        %v1047 = vadd.f32 %v842, %v1046
        %v1048 = vrot.slane %v1047, 2
        %v1049 = vadd.f32 %v1047, %v1048
        %v1050 = vrot.slane %v1049, 1
        %v1051 = vadd.f32 %v1049, %v1050
        %v1052 = vrot.slane %v844, 4
        %v1053 = vadd.f32 %v844, %v1052
        %v1054 = vrot.slane %v1053, 2
        %v1055 = vadd.f32 %v1053, %v1054
        %v1056 = vrot.slane %v1055, 1
        %v1057 = vadd.f32 %v1055, %v1056
        %v1058 = vrot.slane %v846, 4
        %v1059 = vadd.f32 %v846, %v1058
        %v1060 = vrot.slane %v1059, 2
        %v1061 = vadd.f32 %v1059, %v1060
        %v1062 = vrot.slane %v1061, 1
        %v1063 = vadd.f32 %v1061, %v1062
        %v1064 = vrot.slane %v850, 4
        %v1065 = vadd.f32 %v850, %v1064
        %v1066 = vrot.slane %v1065, 2
        %v1067 = vadd.f32 %v1065, %v1066
        %v1068 = vrot.slane %v1067, 1
        %v1069 = vadd.f32 %v1067, %v1068
        %v1070 = vrot.slane %v852, 4
        %v1071 = vadd.f32 %v852, %v1070
        %v1072 = vrot.slane %v1071, 2
        %v1073 = vadd.f32 %v1071, %v1072
        %v1074 = vrot.slane %v1073, 1
        %v1075 = vadd.f32 %v1073, %v1074
        %v1076 = vrot.slane %v854, 4
        %v1077 = vadd.f32 %v854, %v1076
        %v1078 = vrot.slane %v1077, 2
        %v1079 = vadd.f32 %v1077, %v1078
        %v1080 = vrot.slane %v1079, 1
        %v1081 = vadd.f32 %v1079, %v1080
        %v1082 = vrot.slane %v856, 4
        %v1083 = vadd.f32 %v856, %v1082
        %v1084 = vrot.slane %v1083, 2
        %v1085 = vadd.f32 %v1083, %v1084
        %v1086 = vrot.slane %v1085, 1
        %v1087 = vadd.f32 %v1085, %v1086
        %v1088 = vrot.slane %v860, 4
        %v1089 = vadd.f32 %v860, %v1088
        %v1090 = vrot.slane %v1089, 2
        %v1091 = vadd.f32 %v1089, %v1090
        %v1092 = vrot.slane %v1091, 1
        %v1093 = vadd.f32 %v1091, %v1092
        %v1094 = vrot.slane %v862, 4
        %v1095 = vadd.f32 %v862, %v1094
        %v1096 = vrot.slane %v1095, 2
        %v1097 = vadd.f32 %v1095, %v1096
        %v1098 = vrot.slane %v1097, 1
        %v1099 = vadd.f32 %v1097, %v1098
        %v1100 = vrot.slane %v864, 4
        %v1101 = vadd.f32 %v864, %v1100
        %v1102 = vrot.slane %v1101, 2
        %v1103 = vadd.f32 %v1101, %v1102
        %v1104 = vrot.slane %v1103, 1
        %v1105 = vadd.f32 %v1103, %v1104
        %v1106 = vrot.slane %v866, 4
        %v1107 = vadd.f32 %v866, %v1106
        %v1108 = vrot.slane %v1107, 2
        %v1109 = vadd.f32 %v1107, %v1108
        %v1110 = vrot.slane %v1109, 1
        %v1111 = vadd.f32 %v1109, %v1110
        %v1112 = vrot.slane %v870, 4
        %v1113 = vadd.f32 %v870, %v1112
        %v1114 = vrot.slane %v1113, 2
        %v1115 = vadd.f32 %v1113, %v1114
        %v1116 = vrot.slane %v1115, 1
        %v1117 = vadd.f32 %v1115, %v1116
        %v1118 = vrot.slane %v872, 4
        %v1119 = vadd.f32 %v872, %v1118
        %v1120 = vrot.slane %v1119, 2
        %v1121 = vadd.f32 %v1119, %v1120
        %v1122 = vrot.slane %v1121, 1
        %v1123 = vadd.f32 %v1121, %v1122
        %v1124 = vrot.slane %v874, 4
        %v1125 = vadd.f32 %v874, %v1124
        %v1126 = vrot.slane %v1125, 2
        %v1127 = vadd.f32 %v1125, %v1126
        %v1128 = vrot.slane %v1127, 1
        %v1129 = vadd.f32 %v1127, %v1128
        %v1130 = vrot.slane %v876, 4
        %v1131 = vadd.f32 %v876, %v1130
        %v1132 = vrot.slane %v1131, 2
        %v1133 = vadd.f32 %v1131, %v1132
        %v1134 = vrot.slane %v1133, 1
        %v1135 = vadd.f32 %v1133, %v1134
        %v1136 = vrot.slane %v880, 4
        %v1137 = vadd.f32 %v880, %v1136
        %v1138 = vrot.slane %v1137, 2
        %v1139 = vadd.f32 %v1137, %v1138
        %v1140 = vrot.slane %v1139, 1
        %v1141 = vadd.f32 %v1139, %v1140
        %v1142 = vrot.slane %v882, 4
        %v1143 = vadd.f32 %v882, %v1142
        %v1144 = vrot.slane %v1143, 2
        %v1145 = vadd.f32 %v1143, %v1144
        %v1146 = vrot.slane %v1145, 1
        %v1147 = vadd.f32 %v1145, %v1146
        %v1148 = vrot.slane %v884, 4
        %v1149 = vadd.f32 %v884, %v1148
        %v1150 = vrot.slane %v1149, 2
        %v1151 = vadd.f32 %v1149, %v1150
        %v1152 = vrot.slane %v1151, 1
        %v1153 = vadd.f32 %v1151, %v1152
        %v1154 = vrot.slane %v886, 4
        %v1155 = vadd.f32 %v886, %v1154
        %v1156 = vrot.slane %v1155, 2
        %v1157 = vadd.f32 %v1155, %v1156
        %v1158 = vrot.slane %v1157, 1
        %v1159 = vadd.f32 %v1157, %v1158
        %v1160 = vrot.slane %v890, 4
        %v1161 = vadd.f32 %v890, %v1160
        %v1162 = vrot.slane %v1161, 2
        %v1163 = vadd.f32 %v1161, %v1162
        %v1164 = vrot.slane %v1163, 1
        %v1165 = vadd.f32 %v1163, %v1164
        %v1166 = vrot.slane %v892, 4
        %v1167 = vadd.f32 %v892, %v1166
        %v1168 = vrot.slane %v1167, 2
        %v1169 = vadd.f32 %v1167, %v1168
        %v1170 = vrot.slane %v1169, 1
        %v1171 = vadd.f32 %v1169, %v1170
        %v1172 = vrot.slane %v894, 4
        %v1173 = vadd.f32 %v894, %v1172
        %v1174 = vrot.slane %v1173, 2
        %v1175 = vadd.f32 %v1173, %v1174
        %v1176 = vrot.slane %v1175, 1
        %v1177 = vadd.f32 %v1175, %v1176
        %v1178 = vrot.slane %v896, 4
        %v1179 = vadd.f32 %v896, %v1178
        %v1180 = vrot.slane %v1179, 2
        %v1181 = vadd.f32 %v1179, %v1180
        %v1182 = vrot.slane %v1181, 1
        %v1183 = vadd.f32 %v1181, %v1182
        %v1184 = vrot.slane %v900, 4
        %v1185 = vadd.f32 %v900, %v1184
        %v1186 = vrot.slane %v1185, 2
        %v1187 = vadd.f32 %v1185, %v1186
        %v1188 = vrot.slane %v1187, 1
        %v1189 = vadd.f32 %v1187, %v1188
        %v1190 = vrot.slane %v902, 4
        %v1191 = vadd.f32 %v902, %v1190
        %v1192 = vrot.slane %v1191, 2
        %v1193 = vadd.f32 %v1191, %v1192
        %v1194 = vrot.slane %v1193, 1
        %v1195 = vadd.f32 %v1193, %v1194
        %v1196 = vrot.slane %v904, 4
        %v1197 = vadd.f32 %v904, %v1196
        %v1198 = vrot.slane %v1197, 2
        %v1199 = vadd.f32 %v1197, %v1198
        %v1200 = vrot.slane %v1199, 1
        %v1201 = vadd.f32 %v1199, %v1200
        %v1202 = vrot.slane %v906, 4
        %v1203 = vadd.f32 %v906, %v1202
        %v1204 = vrot.slane %v1203, 2
        %v1205 = vadd.f32 %v1203, %v1204
        %v1206 = vrot.slane %v1205, 1
        %v1207 = vadd.f32 %v1205, %v1206
        %v1208 = vrot.slane %v910, 4
        %v1209 = vadd.f32 %v910, %v1208
        %v1210 = vrot.slane %v1209, 2
        %v1211 = vadd.f32 %v1209, %v1210
        %v1212 = vrot.slane %v1211, 1
        %v1213 = vadd.f32 %v1211, %v1212
        %v1214 = vrot.slane %v912, 4
        %v1215 = vadd.f32 %v912, %v1214
        %v1216 = vrot.slane %v1215, 2
        %v1217 = vadd.f32 %v1215, %v1216
        %v1218 = vrot.slane %v1217, 1
        %v1219 = vadd.f32 %v1217, %v1218
        %v1220 = vrot.slane %v914, 4
        %v1221 = vadd.f32 %v914, %v1220
        %v1222 = vrot.slane %v1221, 2
        %v1223 = vadd.f32 %v1221, %v1222
        %v1224 = vrot.slane %v1223, 1
        %v1225 = vadd.f32 %v1223, %v1224
        %v1226 = vrot.slane %v916, 4
        %v1227 = vadd.f32 %v916, %v1226
        %v1228 = vrot.slane %v1227, 2
        %v1229 = vadd.f32 %v1227, %v1228
        %v1230 = vrot.slane %v1229, 1
        %v1231 = vadd.f32 %v1229, %v1230
        %v1232 = vrot.slane %v920, 4
        %v1233 = vadd.f32 %v920, %v1232
        %v1234 = vrot.slane %v1233, 2
        %v1235 = vadd.f32 %v1233, %v1234
        %v1236 = vrot.slane %v1235, 1
        %v1237 = vadd.f32 %v1235, %v1236
        %v1238 = vrot.slane %v922, 4
        %v1239 = vadd.f32 %v922, %v1238
        %v1240 = vrot.slane %v1239, 2
        %v1241 = vadd.f32 %v1239, %v1240
        %v1242 = vrot.slane %v1241, 1
        %v1243 = vadd.f32 %v1241, %v1242
        %v1244 = vrot.slane %v924, 4
        %v1245 = vadd.f32 %v924, %v1244
        %v1246 = vrot.slane %v1245, 2
        %v1247 = vadd.f32 %v1245, %v1246
        %v1248 = vrot.slane %v1247, 1
        %v1249 = vadd.f32 %v1247, %v1248
        %v1250 = vrot.slane %v926, 4
        %v1251 = vadd.f32 %v926, %v1250
        %v1252 = vrot.slane %v1251, 2
        %v1253 = vadd.f32 %v1251, %v1252
        %v1254 = vrot.slane %v1253, 1
        %v1255 = vadd.f32 %v1253, %v1254
        %v1256 = vrot.slane %v930, 4
        %v1257 = vadd.f32 %v930, %v1256
        %v1258 = vrot.slane %v1257, 2
        %v1259 = vadd.f32 %v1257, %v1258
        %v1260 = vrot.slane %v1259, 1
        %v1261 = vadd.f32 %v1259, %v1260
        %v1262 = vrot.slane %v932, 4
        %v1263 = vadd.f32 %v932, %v1262
        %v1264 = vrot.slane %v1263, 2
        %v1265 = vadd.f32 %v1263, %v1264
        %v1266 = vrot.slane %v1265, 1
        %v1267 = vadd.f32 %v1265, %v1266
        %v1268 = vrot.slane %v934, 4
        %v1269 = vadd.f32 %v934, %v1268
        %v1270 = vrot.slane %v1269, 2
        %v1271 = vadd.f32 %v1269, %v1270
        %v1272 = vrot.slane %v1271, 1
        %v1273 = vadd.f32 %v1271, %v1272
        %v1274 = vrot.slane %v936, 4
        %v1275 = vadd.f32 %v936, %v1274
        %v1276 = vrot.slane %v1275, 2
        %v1277 = vadd.f32 %v1275, %v1276
        %v1278 = vrot.slane %v1277, 1
        %v1279 = vadd.f32 %v1277, %v1278
        %v1280 = vrot.slane %v940, 4
        %v1281 = vadd.f32 %v940, %v1280
        %v1282 = vrot.slane %v1281, 2
        %v1283 = vadd.f32 %v1281, %v1282
        %v1284 = vrot.slane %v1283, 1
        %v1285 = vadd.f32 %v1283, %v1284
        %v1286 = vrot.slane %v942, 4
        %v1287 = vadd.f32 %v942, %v1286
        %v1288 = vrot.slane %v1287, 2
        %v1289 = vadd.f32 %v1287, %v1288
        %v1290 = vrot.slane %v1289, 1
        %v1291 = vadd.f32 %v1289, %v1290
        %v1292 = vrot.slane %v944, 4
        %v1293 = vadd.f32 %v944, %v1292
        %v1294 = vrot.slane %v1293, 2
        %v1295 = vadd.f32 %v1293, %v1294
        %v1296 = vrot.slane %v1295, 1
        %v1297 = vadd.f32 %v1295, %v1296
        %v1298 = vrot.slane %v946, 4
        %v1299 = vadd.f32 %v946, %v1298
        %v1300 = vrot.slane %v1299, 2
        %v1301 = vadd.f32 %v1299, %v1300
        %v1302 = vrot.slane %v1301, 1
        %v1303 = vadd.f32 %v1301, %v1302
        %v1304 = vrot.slane %v950, 4
        %v1305 = vadd.f32 %v950, %v1304
        %v1306 = vrot.slane %v1305, 2
        %v1307 = vadd.f32 %v1305, %v1306
        %v1308 = vrot.slane %v1307, 1
        %v1309 = vadd.f32 %v1307, %v1308
        %v1310 = vrot.slane %v952, 4
        %v1311 = vadd.f32 %v952, %v1310
        %v1312 = vrot.slane %v1311, 2
        %v1313 = vadd.f32 %v1311, %v1312
        %v1314 = vrot.slane %v1313, 1
        %v1315 = vadd.f32 %v1313, %v1314
        %v1316 = vrot.slane %v954, 4
        %v1317 = vadd.f32 %v954, %v1316
        %v1318 = vrot.slane %v1317, 2
        %v1319 = vadd.f32 %v1317, %v1318
        %v1320 = vrot.slane %v1319, 1
        %v1321 = vadd.f32 %v1319, %v1320
        %v1322 = vrot.slane %v956, 4
        %v1323 = vadd.f32 %v956, %v1322
        %v1324 = vrot.slane %v1323, 2
        %v1325 = vadd.f32 %v1323, %v1324
        %v1326 = vrot.slane %v1325, 1
        %v1327 = vadd.f32 %v1325, %v1326
        %v1328 = vrot.slane %v960, 4
        %v1329 = vadd.f32 %v960, %v1328
        %v1330 = vrot.slane %v1329, 2
        %v1331 = vadd.f32 %v1329, %v1330
        %v1332 = vrot.slane %v1331, 1
        %v1333 = vadd.f32 %v1331, %v1332
        %v1334 = vrot.slane %v962, 4
        %v1335 = vadd.f32 %v962, %v1334
        %v1336 = vrot.slane %v1335, 2
        %v1337 = vadd.f32 %v1335, %v1336
        %v1338 = vrot.slane %v1337, 1
        %v1339 = vadd.f32 %v1337, %v1338
        %v1340 = vrot.slane %v964, 4
        %v1341 = vadd.f32 %v964, %v1340
        %v1342 = vrot.slane %v1341, 2
        %v1343 = vadd.f32 %v1341, %v1342
        %v1344 = vrot.slane %v1343, 1
        %v1345 = vadd.f32 %v1343, %v1344
        %v1346 = vrot.slane %v966, 4
        %v1347 = vadd.f32 %v966, %v1346
        %v1348 = vrot.slane %v1347, 2
        %v1349 = vadd.f32 %v1347, %v1348
        %v1350 = vrot.slane %v1349, 1
        %v1351 = vadd.f32 %v1349, %v1350
        %v1352 = vmul.f32 %v973, 0.125
        %v1353 = vmul.f32 %v979, 0.125
        %v1354 = vmul.f32 %v985, 0.125
        %v1355 = vmul.f32 %v991, 0.125
        %v1356 = vmul.f32 %v997, 0.125
        %v1357 = vmul.f32 %v1003, 0.125
        %v1358 = vmul.f32 %v1009, 0.125
        %v1359 = vmul.f32 %v1015, 0.125
        %v1360 = vmul.f32 %v1021, 0.125
        %v1361 = vmul.f32 %v1027, 0.125
        %v1362 = vmul.f32 %v1033, 0.125
        %v1363 = vmul.f32 %v1039, 0.125
        %v1364 = vmul.f32 %v1045, 0.125
        %v1365 = vmul.f32 %v1051, 0.125
        %v1366 = vmul.f32 %v1057, 0.125
        %v1367 = vmul.f32 %v1063, 0.125
        %v1368 = vmul.f32 %v1069, 0.125
        %v1369 = vmul.f32 %v1075, 0.125
        %v1370 = vmul.f32 %v1081, 0.125
        %v1371 = vmul.f32 %v1087, 0.125
        %v1372 = vmul.f32 %v1093, 0.125
        %v1373 = vmul.f32 %v1099, 0.125
        %v1374 = vmul.f32 %v1105, 0.125
        %v1375 = vmul.f32 %v1111, 0.125
        %v1376 = vmul.f32 %v1117, 0.125
        %v1377 = vmul.f32 %v1123, 0.125
        %v1378 = vmul.f32 %v1129, 0.125
        %v1379 = vmul.f32 %v1135, 0.125
        %v1380 = vmul.f32 %v1141, 0.125
        %v1381 = vmul.f32 %v1147, 0.125
        %v1382 = vmul.f32 %v1153, 0.125
        %v1383 = vmul.f32 %v1159, 0.125
        %v1384 = vmul.f32 %v1165, 0.125
        %v1385 = vmul.f32 %v1171, 0.125
        %v1386 = vmul.f32 %v1177, 0.125
        %v1387 = vmul.f32 %v1183, 0.125
        %v1388 = vmul.f32 %v1189, 0.125
        %v1389 = vmul.f32 %v1195, 0.125
        %v1390 = vmul.f32 %v1201, 0.125
        %v1391 = vmul.f32 %v1207, 0.125
        %v1392 = vmul.f32 %v1213, 0.125
        %v1393 = vmul.f32 %v1219, 0.125
        %v1394 = vmul.f32 %v1225, 0.125
        %v1395 = vmul.f32 %v1231, 0.125
        %v1396 = vmul.f32 %v1237, 0.125
        %v1397 = vmul.f32 %v1243, 0.125
        %v1398 = vmul.f32 %v1249, 0.125
        %v1399 = vmul.f32 %v1255, 0.125
        %v1400 = vmul.f32 %v1261, 0.125
        %v1401 = vmul.f32 %v1267, 0.125
        %v1402 = vmul.f32 %v1273, 0.125
        %v1403 = vmul.f32 %v1279, 0.125
        %v1404 = vmul.f32 %v1285, 0.125
        %v1405 = vmul.f32 %v1291, 0.125
        %v1406 = vmul.f32 %v1297, 0.125
        %v1407 = vmul.f32 %v1303, 0.125
        %v1408 = vmul.f32 %v1309, 0.125
        %v1409 = vmul.f32 %v1315, 0.125
        %v1410 = vmul.f32 %v1321, 0.125
        %v1411 = vmul.f32 %v1327, 0.125
        %v1412 = vmul.f32 %v1333, 0.125
        %v1413 = vmul.f32 %v1339, 0.125
        %v1414 = vmul.f32 %v1345, 0.125
        %v1415 = vmul.f32 %v1351, 0.125
        %v1416 = vmul.f32 %v810, %v810
        %v1417 = vmul.f32 %v812, %v812
        %v1418 = vmul.f32 %v814, %v814
        %v1419 = vmul.f32 %v816, %v816
        %v1420 = vmul.f32 %v820, %v820
        %v1421 = vmul.f32 %v822, %v822
        %v1422 = vmul.f32 %v824, %v824
        %v1423 = vmul.f32 %v826, %v826
        %v1424 = vmul.f32 %v830, %v830
        %v1425 = vmul.f32 %v832, %v832
        %v1426 = vmul.f32 %v834, %v834
        %v1427 = vmul.f32 %v836, %v836
        %v1428 = vmul.f32 %v840, %v840
        %v1429 = vmul.f32 %v842, %v842
        %v1430 = vmul.f32 %v844, %v844
        %v1431 = vmul.f32 %v846, %v846
        %v1432 = vmul.f32 %v850, %v850
        %v1433 = vmul.f32 %v852, %v852
        %v1434 = vmul.f32 %v854, %v854
        %v1435 = vmul.f32 %v856, %v856
        %v1436 = vmul.f32 %v860, %v860
        %v1437 = vmul.f32 %v862, %v862
        %v1438 = vmul.f32 %v864, %v864
        %v1439 = vmul.f32 %v866, %v866
        %v1440 = vmul.f32 %v870, %v870
        %v1441 = vmul.f32 %v872, %v872
        %v1442 = vmul.f32 %v874, %v874
        %v1443 = vmul.f32 %v876, %v876
        %v1444 = vmul.f32 %v880, %v880
        %v1445 = vmul.f32 %v882, %v882
        %v1446 = vmul.f32 %v884, %v884
        %v1447 = vmul.f32 %v886, %v886
        %v1448 = vmul.f32 %v890, %v890
        %v1449 = vmul.f32 %v892, %v892
        %v1450 = vmul.f32 %v894, %v894
        %v1451 = vmul.f32 %v896, %v896
        %v1452 = vmul.f32 %v900, %v900
        %v1453 = vmul.f32 %v902, %v902
        %v1454 = vmul.f32 %v904, %v904
        %v1455 = vmul.f32 %v906, %v906
        %v1456 = vmul.f32 %v910, %v910
        %v1457 = vmul.f32 %v912, %v912
        %v1458 = vmul.f32 %v914, %v914
        %v1459 = vmul.f32 %v916, %v916
        %v1460 = vmul.f32 %v920, %v920
        %v1461 = vmul.f32 %v922, %v922
        %v1462 = vmul.f32 %v924, %v924
        %v1463 = vmul.f32 %v926, %v926
        %v1464 = vmul.f32 %v930, %v930
        %v1465 = vmul.f32 %v932, %v932
        %v1466 = vmul.f32 %v934, %v934
        %v1467 = vmul.f32 %v936, %v936
        %v1468 = vmul.f32 %v940, %v940
        %v1469 = vmul.f32 %v942, %v942
        %v1470 = vmul.f32 %v944, %v944
        %v1471 = vmul.f32 %v946, %v946
        %v1472 = vmul.f32 %v950, %v950
        %v1473 = vmul.f32 %v952, %v952
        %v1474 = vmul.f32 %v954, %v954
        %v1475 = vmul.f32 %v956, %v956
        %v1476 = vmul.f32 %v960, %v960
        %v1477 = vmul.f32 %v962, %v962
        %v1478 = vmul.f32 %v964, %v964
        %v1479 = vmul.f32 %v966, %v966
        %v1480 = vrot.slane %v1416, 4
        %v1481 = vadd.f32 %v1416, %v1480
        %v1482 = vrot.slane %v1481, 2
        %v1483 = vadd.f32 %v1481, %v1482
        %v1484 = vrot.slane %v1483, 1
        %v1485 = vadd.f32 %v1483, %v1484
        %v1486 = vrot.slane %v1417, 4
        %v1487 = vadd.f32 %v1417, %v1486
        %v1488 = vrot.slane %v1487, 2
        %v1489 = vadd.f32 %v1487, %v1488
        %v1490 = vrot.slane %v1489, 1
        %v1491 = vadd.f32 %v1489, %v1490
        %v1492 = vrot.slane %v1418, 4
        %v1493 = vadd.f32 %v1418, %v1492
        %v1494 = vrot.slane %v1493, 2
        %v1495 = vadd.f32 %v1493, %v1494
        %v1496 = vrot.slane %v1495, 1
        %v1497 = vadd.f32 %v1495, %v1496
        %v1498 = vrot.slane %v1419, 4
        %v1499 = vadd.f32 %v1419, %v1498
        %v1500 = vrot.slane %v1499, 2
        %v1501 = vadd.f32 %v1499, %v1500
        %v1502 = vrot.slane %v1501, 1
        %v1503 = vadd.f32 %v1501, %v1502
        %v1504 = vrot.slane %v1420, 4
        %v1505 = vadd.f32 %v1420, %v1504
        %v1506 = vrot.slane %v1505, 2
        %v1507 = vadd.f32 %v1505, %v1506
        %v1508 = vrot.slane %v1507, 1
        %v1509 = vadd.f32 %v1507, %v1508
        %v1510 = vrot.slane %v1421, 4
        %v1511 = vadd.f32 %v1421, %v1510
        %v1512 = vrot.slane %v1511, 2
        %v1513 = vadd.f32 %v1511, %v1512
        %v1514 = vrot.slane %v1513, 1
        %v1515 = vadd.f32 %v1513, %v1514
        %v1516 = vrot.slane %v1422, 4
        %v1517 = vadd.f32 %v1422, %v1516
        %v1518 = vrot.slane %v1517, 2
        %v1519 = vadd.f32 %v1517, %v1518
        %v1520 = vrot.slane %v1519, 1
        %v1521 = vadd.f32 %v1519, %v1520
        %v1522 = vrot.slane %v1423, 4
        %v1523 = vadd.f32 %v1423, %v1522
        %v1524 = vrot.slane %v1523, 2
        %v1525 = vadd.f32 %v1523, %v1524
        %v1526 = vrot.slane %v1525, 1
        %v1527 = vadd.f32 %v1525, %v1526
        %v1528 = vrot.slane %v1424, 4
        %v1529 = vadd.f32 %v1424, %v1528
        %v1530 = vrot.slane %v1529, 2
        %v1531 = vadd.f32 %v1529, %v1530
        %v1532 = vrot.slane %v1531, 1
        %v1533 = vadd.f32 %v1531, %v1532
        %v1534 = vrot.slane %v1425, 4
        %v1535 = vadd.f32 %v1425, %v1534
        %v1536 = vrot.slane %v1535, 2
        %v1537 = vadd.f32 %v1535, %v1536
        %v1538 = vrot.slane %v1537, 1
        %v1539 = vadd.f32 %v1537, %v1538
        %v1540 = vrot.slane %v1426, 4
        %v1541 = vadd.f32 %v1426, %v1540
        %v1542 = vrot.slane %v1541, 2
        %v1543 = vadd.f32 %v1541, %v1542
        %v1544 = vrot.slane %v1543, 1
        %v1545 = vadd.f32 %v1543, %v1544
        %v1546 = vrot.slane %v1427, 4
        %v1547 = vadd.f32 %v1427, %v1546
        %v1548 = vrot.slane %v1547, 2
        %v1549 = vadd.f32 %v1547, %v1548
        %v1550 = vrot.slane %v1549, 1
        %v1551 = vadd.f32 %v1549, %v1550
        %v1552 = vrot.slane %v1428, 4
        %v1553 = vadd.f32 %v1428, %v1552
        %v1554 = vrot.slane %v1553, 2
        %v1555 = vadd.f32 %v1553, %v1554
        %v1556 = vrot.slane %v1555, 1
        %v1557 = vadd.f32 %v1555, %v1556
        %v1558 = vrot.slane %v1429, 4
        %v1559 = vadd.f32 %v1429, %v1558
        %v1560 = vrot.slane %v1559, 2
        %v1561 = vadd.f32 %v1559, %v1560
        %v1562 = vrot.slane %v1561, 1
        %v1563 = vadd.f32 %v1561, %v1562
        %v1564 = vrot.slane %v1430, 4
        %v1565 = vadd.f32 %v1430, %v1564
        %v1566 = vrot.slane %v1565, 2
        %v1567 = vadd.f32 %v1565, %v1566
        %v1568 = vrot.slane %v1567, 1
        %v1569 = vadd.f32 %v1567, %v1568
        %v1570 = vrot.slane %v1431, 4
        %v1571 = vadd.f32 %v1431, %v1570
        %v1572 = vrot.slane %v1571, 2
        %v1573 = vadd.f32 %v1571, %v1572
        %v1574 = vrot.slane %v1573, 1
        %v1575 = vadd.f32 %v1573, %v1574
        %v1576 = vrot.slane %v1432, 4
        %v1577 = vadd.f32 %v1432, %v1576
        %v1578 = vrot.slane %v1577, 2
        %v1579 = vadd.f32 %v1577, %v1578
        %v1580 = vrot.slane %v1579, 1
        %v1581 = vadd.f32 %v1579, %v1580
        %v1582 = vrot.slane %v1433, 4
        %v1583 = vadd.f32 %v1433, %v1582
        %v1584 = vrot.slane %v1583, 2
        %v1585 = vadd.f32 %v1583, %v1584
        %v1586 = vrot.slane %v1585, 1
        %v1587 = vadd.f32 %v1585, %v1586
        %v1588 = vrot.slane %v1434, 4
        %v1589 = vadd.f32 %v1434, %v1588
        %v1590 = vrot.slane %v1589, 2
        %v1591 = vadd.f32 %v1589, %v1590
        %v1592 = vrot.slane %v1591, 1
        %v1593 = vadd.f32 %v1591, %v1592
        %v1594 = vrot.slane %v1435, 4
        %v1595 = vadd.f32 %v1435, %v1594
        %v1596 = vrot.slane %v1595, 2
        %v1597 = vadd.f32 %v1595, %v1596
        %v1598 = vrot.slane %v1597, 1
        %v1599 = vadd.f32 %v1597, %v1598
        %v1600 = vrot.slane %v1436, 4
        %v1601 = vadd.f32 %v1436, %v1600
        %v1602 = vrot.slane %v1601, 2
        %v1603 = vadd.f32 %v1601, %v1602
        %v1604 = vrot.slane %v1603, 1
        %v1605 = vadd.f32 %v1603, %v1604
        %v1606 = vrot.slane %v1437, 4
        %v1607 = vadd.f32 %v1437, %v1606
        %v1608 = vrot.slane %v1607, 2
        %v1609 = vadd.f32 %v1607, %v1608
        %v1610 = vrot.slane %v1609, 1
        %v1611 = vadd.f32 %v1609, %v1610
        %v1612 = vrot.slane %v1438, 4
        %v1613 = vadd.f32 %v1438, %v1612
        %v1614 = vrot.slane %v1613, 2
        %v1615 = vadd.f32 %v1613, %v1614
        %v1616 = vrot.slane %v1615, 1
        %v1617 = vadd.f32 %v1615, %v1616
        %v1618 = vrot.slane %v1439, 4
        %v1619 = vadd.f32 %v1439, %v1618
        %v1620 = vrot.slane %v1619, 2
        %v1621 = vadd.f32 %v1619, %v1620
        %v1622 = vrot.slane %v1621, 1
        %v1623 = vadd.f32 %v1621, %v1622
        %v1624 = vrot.slane %v1440, 4
        %v1625 = vadd.f32 %v1440, %v1624
        %v1626 = vrot.slane %v1625, 2
        %v1627 = vadd.f32 %v1625, %v1626
        %v1628 = vrot.slane %v1627, 1
        %v1629 = vadd.f32 %v1627, %v1628
        %v1630 = vrot.slane %v1441, 4
        %v1631 = vadd.f32 %v1441, %v1630
        %v1632 = vrot.slane %v1631, 2
        %v1633 = vadd.f32 %v1631, %v1632
        %v1634 = vrot.slane %v1633, 1
        %v1635 = vadd.f32 %v1633, %v1634
        %v1636 = vrot.slane %v1442, 4
        %v1637 = vadd.f32 %v1442, %v1636
        %v1638 = vrot.slane %v1637, 2
        %v1639 = vadd.f32 %v1637, %v1638
        %v1640 = vrot.slane %v1639, 1
        %v1641 = vadd.f32 %v1639, %v1640
        %v1642 = vrot.slane %v1443, 4
        %v1643 = vadd.f32 %v1443, %v1642
        %v1644 = vrot.slane %v1643, 2
        %v1645 = vadd.f32 %v1643, %v1644
        %v1646 = vrot.slane %v1645, 1
        %v1647 = vadd.f32 %v1645, %v1646
        %v1648 = vrot.slane %v1444, 4
        %v1649 = vadd.f32 %v1444, %v1648
        %v1650 = vrot.slane %v1649, 2
        %v1651 = vadd.f32 %v1649, %v1650
        %v1652 = vrot.slane %v1651, 1
        %v1653 = vadd.f32 %v1651, %v1652
        %v1654 = vrot.slane %v1445, 4
        %v1655 = vadd.f32 %v1445, %v1654
        %v1656 = vrot.slane %v1655, 2
        %v1657 = vadd.f32 %v1655, %v1656
        %v1658 = vrot.slane %v1657, 1
        %v1659 = vadd.f32 %v1657, %v1658
        %v1660 = vrot.slane %v1446, 4
        %v1661 = vadd.f32 %v1446, %v1660
        %v1662 = vrot.slane %v1661, 2
        %v1663 = vadd.f32 %v1661, %v1662
        %v1664 = vrot.slane %v1663, 1
        %v1665 = vadd.f32 %v1663, %v1664
        %v1666 = vrot.slane %v1447, 4
        %v1667 = vadd.f32 %v1447, %v1666
        %v1668 = vrot.slane %v1667, 2
        %v1669 = vadd.f32 %v1667, %v1668
        %v1670 = vrot.slane %v1669, 1
        %v1671 = vadd.f32 %v1669, %v1670
        %v1672 = vrot.slane %v1448, 4
        %v1673 = vadd.f32 %v1448, %v1672
        %v1674 = vrot.slane %v1673, 2
        %v1675 = vadd.f32 %v1673, %v1674
        %v1676 = vrot.slane %v1675, 1
        %v1677 = vadd.f32 %v1675, %v1676
        %v1678 = vrot.slane %v1449, 4
        %v1679 = vadd.f32 %v1449, %v1678
        %v1680 = vrot.slane %v1679, 2
        %v1681 = vadd.f32 %v1679, %v1680
        %v1682 = vrot.slane %v1681, 1
        %v1683 = vadd.f32 %v1681, %v1682
        %v1684 = vrot.slane %v1450, 4
        %v1685 = vadd.f32 %v1450, %v1684
        %v1686 = vrot.slane %v1685, 2
        %v1687 = vadd.f32 %v1685, %v1686
        %v1688 = vrot.slane %v1687, 1
        %v1689 = vadd.f32 %v1687, %v1688
        %v1690 = vrot.slane %v1451, 4
        %v1691 = vadd.f32 %v1451, %v1690
        %v1692 = vrot.slane %v1691, 2
        %v1693 = vadd.f32 %v1691, %v1692
        %v1694 = vrot.slane %v1693, 1
        %v1695 = vadd.f32 %v1693, %v1694
        %v1696 = vrot.slane %v1452, 4
        %v1697 = vadd.f32 %v1452, %v1696
        %v1698 = vrot.slane %v1697, 2
        %v1699 = vadd.f32 %v1697, %v1698
        %v1700 = vrot.slane %v1699, 1
        %v1701 = vadd.f32 %v1699, %v1700
        %v1702 = vrot.slane %v1453, 4
        %v1703 = vadd.f32 %v1453, %v1702
        %v1704 = vrot.slane %v1703, 2
        %v1705 = vadd.f32 %v1703, %v1704
        %v1706 = vrot.slane %v1705, 1
        %v1707 = vadd.f32 %v1705, %v1706
        %v1708 = vrot.slane %v1454, 4
        %v1709 = vadd.f32 %v1454, %v1708
        %v1710 = vrot.slane %v1709, 2
        %v1711 = vadd.f32 %v1709, %v1710
        %v1712 = vrot.slane %v1711, 1
        %v1713 = vadd.f32 %v1711, %v1712
        %v1714 = vrot.slane %v1455, 4
        %v1715 = vadd.f32 %v1455, %v1714
        %v1716 = vrot.slane %v1715, 2
        %v1717 = vadd.f32 %v1715, %v1716
        %v1718 = vrot.slane %v1717, 1
        %v1719 = vadd.f32 %v1717, %v1718
        %v1720 = vrot.slane %v1456, 4
        %v1721 = vadd.f32 %v1456, %v1720
        %v1722 = vrot.slane %v1721, 2
        %v1723 = vadd.f32 %v1721, %v1722
        %v1724 = vrot.slane %v1723, 1
        %v1725 = vadd.f32 %v1723, %v1724
        %v1726 = vrot.slane %v1457, 4
        %v1727 = vadd.f32 %v1457, %v1726
        %v1728 = vrot.slane %v1727, 2
        %v1729 = vadd.f32 %v1727, %v1728
        %v1730 = vrot.slane %v1729, 1
        %v1731 = vadd.f32 %v1729, %v1730
        %v1732 = vrot.slane %v1458, 4
        %v1733 = vadd.f32 %v1458, %v1732
        %v1734 = vrot.slane %v1733, 2
        %v1735 = vadd.f32 %v1733, %v1734
        %v1736 = vrot.slane %v1735, 1
        %v1737 = vadd.f32 %v1735, %v1736
        %v1738 = vrot.slane %v1459, 4
        %v1739 = vadd.f32 %v1459, %v1738
        %v1740 = vrot.slane %v1739, 2
        %v1741 = vadd.f32 %v1739, %v1740
        %v1742 = vrot.slane %v1741, 1
        %v1743 = vadd.f32 %v1741, %v1742
        %v1744 = vrot.slane %v1460, 4
        %v1745 = vadd.f32 %v1460, %v1744
        %v1746 = vrot.slane %v1745, 2
        %v1747 = vadd.f32 %v1745, %v1746
        %v1748 = vrot.slane %v1747, 1
        %v1749 = vadd.f32 %v1747, %v1748
        %v1750 = vrot.slane %v1461, 4
        %v1751 = vadd.f32 %v1461, %v1750
        %v1752 = vrot.slane %v1751, 2
        %v1753 = vadd.f32 %v1751, %v1752
        %v1754 = vrot.slane %v1753, 1
        %v1755 = vadd.f32 %v1753, %v1754
        %v1756 = vrot.slane %v1462, 4
        %v1757 = vadd.f32 %v1462, %v1756
        %v1758 = vrot.slane %v1757, 2
        %v1759 = vadd.f32 %v1757, %v1758
        %v1760 = vrot.slane %v1759, 1
        %v1761 = vadd.f32 %v1759, %v1760
        %v1762 = vrot.slane %v1463, 4
        %v1763 = vadd.f32 %v1463, %v1762
        %v1764 = vrot.slane %v1763, 2
        %v1765 = vadd.f32 %v1763, %v1764
        %v1766 = vrot.slane %v1765, 1
        %v1767 = vadd.f32 %v1765, %v1766
        %v1768 = vrot.slane %v1464, 4
        %v1769 = vadd.f32 %v1464, %v1768
        %v1770 = vrot.slane %v1769, 2
        %v1771 = vadd.f32 %v1769, %v1770
        %v1772 = vrot.slane %v1771, 1
        %v1773 = vadd.f32 %v1771, %v1772
        %v1774 = vrot.slane %v1465, 4
        %v1775 = vadd.f32 %v1465, %v1774
        %v1776 = vrot.slane %v1775, 2
        %v1777 = vadd.f32 %v1775, %v1776
        %v1778 = vrot.slane %v1777, 1
        %v1779 = vadd.f32 %v1777, %v1778
        %v1780 = vrot.slane %v1466, 4
        %v1781 = vadd.f32 %v1466, %v1780
        %v1782 = vrot.slane %v1781, 2
        %v1783 = vadd.f32 %v1781, %v1782
        %v1784 = vrot.slane %v1783, 1
        %v1785 = vadd.f32 %v1783, %v1784
        %v1786 = vrot.slane %v1467, 4
        %v1787 = vadd.f32 %v1467, %v1786
        %v1788 = vrot.slane %v1787, 2
        %v1789 = vadd.f32 %v1787, %v1788
        %v1790 = vrot.slane %v1789, 1
        %v1791 = vadd.f32 %v1789, %v1790
        %v1792 = vrot.slane %v1468, 4
        %v1793 = vadd.f32 %v1468, %v1792
        %v1794 = vrot.slane %v1793, 2
        %v1795 = vadd.f32 %v1793, %v1794
        %v1796 = vrot.slane %v1795, 1
        %v1797 = vadd.f32 %v1795, %v1796
        %v1798 = vrot.slane %v1469, 4
        %v1799 = vadd.f32 %v1469, %v1798
        %v1800 = vrot.slane %v1799, 2
        %v1801 = vadd.f32 %v1799, %v1800
        %v1802 = vrot.slane %v1801, 1
        %v1803 = vadd.f32 %v1801, %v1802
        %v1804 = vrot.slane %v1470, 4
        %v1805 = vadd.f32 %v1470, %v1804
        %v1806 = vrot.slane %v1805, 2
        %v1807 = vadd.f32 %v1805, %v1806
        %v1808 = vrot.slane %v1807, 1
        %v1809 = vadd.f32 %v1807, %v1808
        %v1810 = vrot.slane %v1471, 4
        %v1811 = vadd.f32 %v1471, %v1810
        %v1812 = vrot.slane %v1811, 2
        %v1813 = vadd.f32 %v1811, %v1812
        %v1814 = vrot.slane %v1813, 1
        %v1815 = vadd.f32 %v1813, %v1814
        %v1816 = vrot.slane %v1472, 4
        %v1817 = vadd.f32 %v1472, %v1816
        %v1818 = vrot.slane %v1817, 2
        %v1819 = vadd.f32 %v1817, %v1818
        %v1820 = vrot.slane %v1819, 1
        %v1821 = vadd.f32 %v1819, %v1820
        %v1822 = vrot.slane %v1473, 4
        %v1823 = vadd.f32 %v1473, %v1822
        %v1824 = vrot.slane %v1823, 2
        %v1825 = vadd.f32 %v1823, %v1824
        %v1826 = vrot.slane %v1825, 1
        %v1827 = vadd.f32 %v1825, %v1826
        %v1828 = vrot.slane %v1474, 4
        %v1829 = vadd.f32 %v1474, %v1828
        %v1830 = vrot.slane %v1829, 2
        %v1831 = vadd.f32 %v1829, %v1830
        %v1832 = vrot.slane %v1831, 1
        %v1833 = vadd.f32 %v1831, %v1832
        %v1834 = vrot.slane %v1475, 4
        %v1835 = vadd.f32 %v1475, %v1834
        %v1836 = vrot.slane %v1835, 2
        %v1837 = vadd.f32 %v1835, %v1836
        %v1838 = vrot.slane %v1837, 1
        %v1839 = vadd.f32 %v1837, %v1838
        %v1840 = vrot.slane %v1476, 4
        %v1841 = vadd.f32 %v1476, %v1840
        %v1842 = vrot.slane %v1841, 2
        %v1843 = vadd.f32 %v1841, %v1842
        %v1844 = vrot.slane %v1843, 1
        %v1845 = vadd.f32 %v1843, %v1844
        %v1846 = vrot.slane %v1477, 4
        %v1847 = vadd.f32 %v1477, %v1846
        %v1848 = vrot.slane %v1847, 2
        %v1849 = vadd.f32 %v1847, %v1848
        %v1850 = vrot.slane %v1849, 1
        %v1851 = vadd.f32 %v1849, %v1850
        %v1852 = vrot.slane %v1478, 4
        %v1853 = vadd.f32 %v1478, %v1852
        %v1854 = vrot.slane %v1853, 2
        %v1855 = vadd.f32 %v1853, %v1854
        %v1856 = vrot.slane %v1855, 1
        %v1857 = vadd.f32 %v1855, %v1856
        %v1858 = vrot.slane %v1479, 4
        %v1859 = vadd.f32 %v1479, %v1858
        %v1860 = vrot.slane %v1859, 2
        %v1861 = vadd.f32 %v1859, %v1860
        %v1862 = vrot.slane %v1861, 1
        %v1863 = vadd.f32 %v1861, %v1862
        %v1864 = vmul.f32 %v1485, 0.125
        %v1865 = vmul.f32 %v1491, 0.125
        %v1866 = vmul.f32 %v1497, 0.125
        %v1867 = vmul.f32 %v1503, 0.125
        %v1868 = vmul.f32 %v1509, 0.125
        %v1869 = vmul.f32 %v1515, 0.125
        %v1870 = vmul.f32 %v1521, 0.125
        %v1871 = vmul.f32 %v1527, 0.125
        %v1872 = vmul.f32 %v1533, 0.125
        %v1873 = vmul.f32 %v1539, 0.125
        %v1874 = vmul.f32 %v1545, 0.125
        %v1875 = vmul.f32 %v1551, 0.125
        %v1876 = vmul.f32 %v1557, 0.125
        %v1877 = vmul.f32 %v1563, 0.125
        %v1878 = vmul.f32 %v1569, 0.125
        %v1879 = vmul.f32 %v1575, 0.125
        %v1880 = vmul.f32 %v1581, 0.125
        %v1881 = vmul.f32 %v1587, 0.125
        %v1882 = vmul.f32 %v1593, 0.125
        %v1883 = vmul.f32 %v1599, 0.125
        %v1884 = vmul.f32 %v1605, 0.125
        %v1885 = vmul.f32 %v1611, 0.125
        %v1886 = vmul.f32 %v1617, 0.125
        %v1887 = vmul.f32 %v1623, 0.125
        %v1888 = vmul.f32 %v1629, 0.125
        %v1889 = vmul.f32 %v1635, 0.125
        %v1890 = vmul.f32 %v1641, 0.125
        %v1891 = vmul.f32 %v1647, 0.125
        %v1892 = vmul.f32 %v1653, 0.125
        %v1893 = vmul.f32 %v1659, 0.125
        %v1894 = vmul.f32 %v1665, 0.125
        %v1895 = vmul.f32 %v1671, 0.125
        %v1896 = vmul.f32 %v1677, 0.125
        %v1897 = vmul.f32 %v1683, 0.125
        %v1898 = vmul.f32 %v1689, 0.125
        %v1899 = vmul.f32 %v1695, 0.125
        %v1900 = vmul.f32 %v1701, 0.125
        %v1901 = vmul.f32 %v1707, 0.125
        %v1902 = vmul.f32 %v1713, 0.125
        %v1903 = vmul.f32 %v1719, 0.125
        %v1904 = vmul.f32 %v1725, 0.125
        %v1905 = vmul.f32 %v1731, 0.125
        %v1906 = vmul.f32 %v1737, 0.125
        %v1907 = vmul.f32 %v1743, 0.125
        %v1908 = vmul.f32 %v1749, 0.125
        %v1909 = vmul.f32 %v1755, 0.125
        %v1910 = vmul.f32 %v1761, 0.125
        %v1911 = vmul.f32 %v1767, 0.125
        %v1912 = vmul.f32 %v1773, 0.125
        %v1913 = vmul.f32 %v1779, 0.125
        %v1914 = vmul.f32 %v1785, 0.125
        %v1915 = vmul.f32 %v1791, 0.125
        %v1916 = vmul.f32 %v1797, 0.125
        %v1917 = vmul.f32 %v1803, 0.125
        %v1918 = vmul.f32 %v1809, 0.125
        %v1919 = vmul.f32 %v1815, 0.125
        %v1920 = vmul.f32 %v1821, 0.125
        %v1921 = vmul.f32 %v1827, 0.125
        %v1922 = vmul.f32 %v1833, 0.125
        %v1923 = vmul.f32 %v1839, 0.125
        %v1924 = vmul.f32 %v1845, 0.125
        %v1925 = vmul.f32 %v1851, 0.125
        %v1926 = vmul.f32 %v1857, 0.125
        %v1927 = vmul.f32 %v1863, 0.125
        %v1928 = vmul.f32 %v1352, %v1352
        %v1929 = vmul.f32 %v1353, %v1353
        %v1930 = vmul.f32 %v1354, %v1354
        %v1931 = vmul.f32 %v1355, %v1355
        %v1932 = vmul.f32 %v1356, %v1356
        %v1933 = vmul.f32 %v1357, %v1357
        %v1934 = vmul.f32 %v1358, %v1358
        %v1935 = vmul.f32 %v1359, %v1359
        %v1936 = vmul.f32 %v1360, %v1360
        %v1937 = vmul.f32 %v1361, %v1361
        %v1938 = vmul.f32 %v1362, %v1362
        %v1939 = vmul.f32 %v1363, %v1363
        %v1940 = vmul.f32 %v1364, %v1364
        %v1941 = vmul.f32 %v1365, %v1365
        %v1942 = vmul.f32 %v1366, %v1366
        %v1943 = vmul.f32 %v1367, %v1367
        %v1944 = vmul.f32 %v1368, %v1368
        %v1945 = vmul.f32 %v1369, %v1369
        %v1946 = vmul.f32 %v1370, %v1370
        %v1947 = vmul.f32 %v1371, %v1371
        %v1948 = vmul.f32 %v1372, %v1372
        %v1949 = vmul.f32 %v1373, %v1373
        %v1950 = vmul.f32 %v1374, %v1374
        %v1951 = vmul.f32 %v1375, %v1375
        %v1952 = vmul.f32 %v1376, %v1376
        %v1953 = vmul.f32 %v1377, %v1377
        %v1954 = vmul.f32 %v1378, %v1378
        %v1955 = vmul.f32 %v1379, %v1379
        %v1956 = vmul.f32 %v1380, %v1380
        %v1957 = vmul.f32 %v1381, %v1381
        %v1958 = vmul.f32 %v1382, %v1382
        %v1959 = vmul.f32 %v1383, %v1383
        %v1960 = vmul.f32 %v1384, %v1384
        %v1961 = vmul.f32 %v1385, %v1385
        %v1962 = vmul.f32 %v1386, %v1386
        %v1963 = vmul.f32 %v1387, %v1387
        %v1964 = vmul.f32 %v1388, %v1388
        %v1965 = vmul.f32 %v1389, %v1389
        %v1966 = vmul.f32 %v1390, %v1390
        %v1967 = vmul.f32 %v1391, %v1391
        %v1968 = vmul.f32 %v1392, %v1392
        %v1969 = vmul.f32 %v1393, %v1393
        %v1970 = vmul.f32 %v1394, %v1394
        %v1971 = vmul.f32 %v1395, %v1395
        %v1972 = vmul.f32 %v1396, %v1396
        %v1973 = vmul.f32 %v1397, %v1397
        %v1974 = vmul.f32 %v1398, %v1398
        %v1975 = vmul.f32 %v1399, %v1399
        %v1976 = vmul.f32 %v1400, %v1400
        %v1977 = vmul.f32 %v1401, %v1401
        %v1978 = vmul.f32 %v1402, %v1402
        %v1979 = vmul.f32 %v1403, %v1403
        %v1980 = vmul.f32 %v1404, %v1404
        %v1981 = vmul.f32 %v1405, %v1405
        %v1982 = vmul.f32 %v1406, %v1406
        %v1983 = vmul.f32 %v1407, %v1407
        %v1984 = vmul.f32 %v1408, %v1408
        %v1985 = vmul.f32 %v1409, %v1409
        %v1986 = vmul.f32 %v1410, %v1410
        %v1987 = vmul.f32 %v1411, %v1411
        %v1988 = vmul.f32 %v1412, %v1412
        %v1989 = vmul.f32 %v1413, %v1413
        %v1990 = vmul.f32 %v1414, %v1414
        %v1991 = vmul.f32 %v1415, %v1415
        %v1992 = vsub.f32 %v1864, %v1928
        %v1993 = vsub.f32 %v1865, %v1929
        %v1994 = vsub.f32 %v1866, %v1930
        %v1995 = vsub.f32 %v1867, %v1931
        %v1996 = vsub.f32 %v1868, %v1932
        %v1997 = vsub.f32 %v1869, %v1933
        %v1998 = vsub.f32 %v1870, %v1934
        %v1999 = vsub.f32 %v1871, %v1935
        %v2000 = vsub.f32 %v1872, %v1936
        %v2001 = vsub.f32 %v1873, %v1937
        %v2002 = vsub.f32 %v1874, %v1938
        %v2003 = vsub.f32 %v1875, %v1939
        %v2004 = vsub.f32 %v1876, %v1940
        %v2005 = vsub.f32 %v1877, %v1941
        %v2006 = vsub.f32 %v1878, %v1942
        %v2007 = vsub.f32 %v1879, %v1943
        %v2008 = vsub.f32 %v1880, %v1944
        %v2009 = vsub.f32 %v1881, %v1945
        %v2010 = vsub.f32 %v1882, %v1946
        %v2011 = vsub.f32 %v1883, %v1947
        %v2012 = vsub.f32 %v1884, %v1948
        %v2013 = vsub.f32 %v1885, %v1949
        %v2014 = vsub.f32 %v1886, %v1950
        %v2015 = vsub.f32 %v1887, %v1951
        %v2016 = vsub.f32 %v1888, %v1952
        %v2017 = vsub.f32 %v1889, %v1953
        %v2018 = vsub.f32 %v1890, %v1954
        %v2019 = vsub.f32 %v1891, %v1955
        %v2020 = vsub.f32 %v1892, %v1956
        %v2021 = vsub.f32 %v1893, %v1957
        %v2022 = vsub.f32 %v1894, %v1958
        %v2023 = vsub.f32 %v1895, %v1959
        %v2024 = vsub.f32 %v1896, %v1960
        %v2025 = vsub.f32 %v1897, %v1961
        %v2026 = vsub.f32 %v1898, %v1962
        %v2027 = vsub.f32 %v1899, %v1963
        %v2028 = vsub.f32 %v1900, %v1964
        %v2029 = vsub.f32 %v1901, %v1965
        %v2030 = vsub.f32 %v1902, %v1966
        %v2031 = vsub.f32 %v1903, %v1967
        %v2032 = vsub.f32 %v1904, %v1968
        %v2033 = vsub.f32 %v1905, %v1969
        %v2034 = vsub.f32 %v1906, %v1970
        %v2035 = vsub.f32 %v1907, %v1971
        %v2036 = vsub.f32 %v1908, %v1972
        %v2037 = vsub.f32 %v1909, %v1973
        %v2038 = vsub.f32 %v1910, %v1974
        %v2039 = vsub.f32 %v1911, %v1975
        %v2040 = vsub.f32 %v1912, %v1976
        %v2041 = vsub.f32 %v1913, %v1977
        %v2042 = vsub.f32 %v1914, %v1978
        %v2043 = vsub.f32 %v1915, %v1979
        %v2044 = vsub.f32 %v1916, %v1980
        %v2045 = vsub.f32 %v1917, %v1981
        %v2046 = vsub.f32 %v1918, %v1982
        %v2047 = vsub.f32 %v1919, %v1983
        %v2048 = vsub.f32 %v1920, %v1984
        %v2049 = vsub.f32 %v1921, %v1985
        %v2050 = vsub.f32 %v1922, %v1986
        %v2051 = vsub.f32 %v1923, %v1987
        %v2052 = vsub.f32 %v1924, %v1988
        %v2053 = vsub.f32 %v1925, %v1989
        %v2054 = vsub.f32 %v1926, %v1990
        %v2055 = vsub.f32 %v1927, %v1991
        %v2056 = vmax.f32 %v1992, 0.0
        %v2057 = vmax.f32 %v1993, 0.0
        %v2058 = vmax.f32 %v1994, 0.0
        %v2059 = vmax.f32 %v1995, 0.0
        %v2060 = vmax.f32 %v1996, 0.0
        %v2061 = vmax.f32 %v1997, 0.0
        %v2062 = vmax.f32 %v1998, 0.0
        %v2063 = vmax.f32 %v1999, 0.0
        %v2064 = vmax.f32 %v2000, 0.0
        %v2065 = vmax.f32 %v2001, 0.0
        %v2066 = vmax.f32 %v2002, 0.0
        %v2067 = vmax.f32 %v2003, 0.0
        %v2068 = vmax.f32 %v2004, 0.0
        %v2069 = vmax.f32 %v2005, 0.0
        %v2070 = vmax.f32 %v2006, 0.0
        %v2071 = vmax.f32 %v2007, 0.0
        %v2072 = vmax.f32 %v2008, 0.0
        %v2073 = vmax.f32 %v2009, 0.0
        %v2074 = vmax.f32 %v2010, 0.0
        %v2075 = vmax.f32 %v2011, 0.0
        %v2076 = vmax.f32 %v2012, 0.0
        %v2077 = vmax.f32 %v2013, 0.0
        %v2078 = vmax.f32 %v2014, 0.0
        %v2079 = vmax.f32 %v2015, 0.0
        %v2080 = vmax.f32 %v2016, 0.0
        %v2081 = vmax.f32 %v2017, 0.0
        %v2082 = vmax.f32 %v2018, 0.0
        %v2083 = vmax.f32 %v2019, 0.0
        %v2084 = vmax.f32 %v2020, 0.0
        %v2085 = vmax.f32 %v2021, 0.0
        %v2086 = vmax.f32 %v2022, 0.0
        %v2087 = vmax.f32 %v2023, 0.0
        %v2088 = vmax.f32 %v2024, 0.0
        %v2089 = vmax.f32 %v2025, 0.0
        %v2090 = vmax.f32 %v2026, 0.0
        %v2091 = vmax.f32 %v2027, 0.0
        %v2092 = vmax.f32 %v2028, 0.0
        %v2093 = vmax.f32 %v2029, 0.0
        %v2094 = vmax.f32 %v2030, 0.0
        %v2095 = vmax.f32 %v2031, 0.0
        %v2096 = vmax.f32 %v2032, 0.0
        %v2097 = vmax.f32 %v2033, 0.0
        %v2098 = vmax.f32 %v2034, 0.0
        %v2099 = vmax.f32 %v2035, 0.0
        %v2100 = vmax.f32 %v2036, 0.0
        %v2101 = vmax.f32 %v2037, 0.0
        %v2102 = vmax.f32 %v2038, 0.0
        %v2103 = vmax.f32 %v2039, 0.0
        %v2104 = vmax.f32 %v2040, 0.0
        %v2105 = vmax.f32 %v2041, 0.0
        %v2106 = vmax.f32 %v2042, 0.0
        %v2107 = vmax.f32 %v2043, 0.0
        %v2108 = vmax.f32 %v2044, 0.0
        %v2109 = vmax.f32 %v2045, 0.0
        %v2110 = vmax.f32 %v2046, 0.0
        %v2111 = vmax.f32 %v2047, 0.0
        %v2112 = vmax.f32 %v2048, 0.0
        %v2113 = vmax.f32 %v2049, 0.0
        %v2114 = vmax.f32 %v2050, 0.0
        %v2115 = vmax.f32 %v2051, 0.0
        %v2116 = vmax.f32 %v2052, 0.0
        %v2117 = vmax.f32 %v2053, 0.0
        %v2118 = vmax.f32 %v2054, 0.0
        %v2119 = vmax.f32 %v2055, 0.0
        %v2120 = vadd.f32 %v2056, 1e-05
        %v2121 = vadd.f32 %v2057, 1e-05
        %v2122 = vadd.f32 %v2058, 1e-05
        %v2123 = vadd.f32 %v2059, 1e-05
        %v2124 = vadd.f32 %v2060, 1e-05
        %v2125 = vadd.f32 %v2061, 1e-05
        %v2126 = vadd.f32 %v2062, 1e-05
        %v2127 = vadd.f32 %v2063, 1e-05
        %v2128 = vadd.f32 %v2064, 1e-05
        %v2129 = vadd.f32 %v2065, 1e-05
        %v2130 = vadd.f32 %v2066, 1e-05
        %v2131 = vadd.f32 %v2067, 1e-05
        %v2132 = vadd.f32 %v2068, 1e-05
        %v2133 = vadd.f32 %v2069, 1e-05
        %v2134 = vadd.f32 %v2070, 1e-05
        %v2135 = vadd.f32 %v2071, 1e-05
        %v2136 = vadd.f32 %v2072, 1e-05
        %v2137 = vadd.f32 %v2073, 1e-05
        %v2138 = vadd.f32 %v2074, 1e-05
        %v2139 = vadd.f32 %v2075, 1e-05
        %v2140 = vadd.f32 %v2076, 1e-05
        %v2141 = vadd.f32 %v2077, 1e-05
        %v2142 = vadd.f32 %v2078, 1e-05
        %v2143 = vadd.f32 %v2079, 1e-05
        %v2144 = vadd.f32 %v2080, 1e-05
        %v2145 = vadd.f32 %v2081, 1e-05
        %v2146 = vadd.f32 %v2082, 1e-05
        %v2147 = vadd.f32 %v2083, 1e-05
        %v2148 = vadd.f32 %v2084, 1e-05
        %v2149 = vadd.f32 %v2085, 1e-05
        %v2150 = vadd.f32 %v2086, 1e-05
        %v2151 = vadd.f32 %v2087, 1e-05
        %v2152 = vadd.f32 %v2088, 1e-05
        %v2153 = vadd.f32 %v2089, 1e-05
        %v2154 = vadd.f32 %v2090, 1e-05
        %v2155 = vadd.f32 %v2091, 1e-05
        %v2156 = vadd.f32 %v2092, 1e-05
        %v2157 = vadd.f32 %v2093, 1e-05
        %v2158 = vadd.f32 %v2094, 1e-05
        %v2159 = vadd.f32 %v2095, 1e-05
        %v2160 = vadd.f32 %v2096, 1e-05
        %v2161 = vadd.f32 %v2097, 1e-05
        %v2162 = vadd.f32 %v2098, 1e-05
        %v2163 = vadd.f32 %v2099, 1e-05
        %v2164 = vadd.f32 %v2100, 1e-05
        %v2165 = vadd.f32 %v2101, 1e-05
        %v2166 = vadd.f32 %v2102, 1e-05
        %v2167 = vadd.f32 %v2103, 1e-05
        %v2168 = vadd.f32 %v2104, 1e-05
        %v2169 = vadd.f32 %v2105, 1e-05
        %v2170 = vadd.f32 %v2106, 1e-05
        %v2171 = vadd.f32 %v2107, 1e-05
        %v2172 = vadd.f32 %v2108, 1e-05
        %v2173 = vadd.f32 %v2109, 1e-05
        %v2174 = vadd.f32 %v2110, 1e-05
        %v2175 = vadd.f32 %v2111, 1e-05
        %v2176 = vadd.f32 %v2112, 1e-05
        %v2177 = vadd.f32 %v2113, 1e-05
        %v2178 = vadd.f32 %v2114, 1e-05
        %v2179 = vadd.f32 %v2115, 1e-05
        %v2180 = vadd.f32 %v2116, 1e-05
        %v2181 = vadd.f32 %v2117, 1e-05
        %v2182 = vadd.f32 %v2118, 1e-05
        %v2183 = vadd.f32 %v2119, 1e-05
        %v2184 = vrsqrt.pop %v2120
        %v2185 = vrsqrt.pop %v2121
        %v2186 = vrsqrt.pop %v2122
        %v2187 = vrsqrt.pop %v2123
        %v2188 = vrsqrt.pop %v2124
        %v2189 = vrsqrt.pop %v2125
        %v2190 = vrsqrt.pop %v2126
        %v2191 = vrsqrt.pop %v2127
        %v2192 = vrsqrt.pop %v2128
        %v2193 = vrsqrt.pop %v2129
        %v2194 = vrsqrt.pop %v2130
        %v2195 = vrsqrt.pop %v2131
        %v2196 = vrsqrt.pop %v2132
        %v2197 = vrsqrt.pop %v2133
        %v2198 = vrsqrt.pop %v2134
        %v2199 = vrsqrt.pop %v2135
        %v2200 = vrsqrt.pop %v2136
        %v2201 = vrsqrt.pop %v2137
        %v2202 = vrsqrt.pop %v2138
        %v2203 = vrsqrt.pop %v2139
        %v2204 = vrsqrt.pop %v2140
        %v2205 = vrsqrt.pop %v2141
        %v2206 = vrsqrt.pop %v2142
        %v2207 = vrsqrt.pop %v2143
        %v2208 = vrsqrt.pop %v2144
        %v2209 = vrsqrt.pop %v2145
        %v2210 = vrsqrt.pop %v2146
        %v2211 = vrsqrt.pop %v2147
        %v2212 = vrsqrt.pop %v2148
        %v2213 = vrsqrt.pop %v2149
        %v2214 = vrsqrt.pop %v2150
        %v2215 = vrsqrt.pop %v2151
        %v2216 = vrsqrt.pop %v2152
        %v2217 = vrsqrt.pop %v2153
        %v2218 = vrsqrt.pop %v2154
        %v2219 = vrsqrt.pop %v2155
        %v2220 = vrsqrt.pop %v2156
        %v2221 = vrsqrt.pop %v2157
        %v2222 = vrsqrt.pop %v2158
        %v2223 = vrsqrt.pop %v2159
        %v2224 = vrsqrt.pop %v2160
        %v2225 = vrsqrt.pop %v2161
        %v2226 = vrsqrt.pop %v2162
        %v2227 = vrsqrt.pop %v2163
        %v2228 = vrsqrt.pop %v2164
        %v2229 = vrsqrt.pop %v2165
        %v2230 = vrsqrt.pop %v2166
        %v2231 = vrsqrt.pop %v2167
        %v2232 = vrsqrt.pop %v2168
        %v2233 = vrsqrt.pop %v2169
        %v2234 = vrsqrt.pop %v2170
        %v2235 = vrsqrt.pop %v2171
        %v2236 = vrsqrt.pop %v2172
        %v2237 = vrsqrt.pop %v2173
        %v2238 = vrsqrt.pop %v2174
        %v2239 = vrsqrt.pop %v2175
        %v2240 = vrsqrt.pop %v2176
        %v2241 = vrsqrt.pop %v2177
        %v2242 = vrsqrt.pop %v2178
        %v2243 = vrsqrt.pop %v2179
        %v2244 = vrsqrt.pop %v2180
        %v2245 = vrsqrt.pop %v2181
        %v2246 = vrsqrt.pop %v2182
        %v2247 = vrsqrt.pop %v2183
        %v2248 = vmul.f32 %v547, %v2184
        %v2249 = vmul.f32 %v548, %v2185
        %v2250 = vmul.f32 %v547, %v2186
        %v2251 = vmul.f32 %v548, %v2187
        %v2252 = vmul.f32 %v547, %v2188
        %v2253 = vmul.f32 %v548, %v2189
        %v2254 = vmul.f32 %v547, %v2190
        %v2255 = vmul.f32 %v548, %v2191
        %v2256 = vmul.f32 %v547, %v2192
        %v2257 = vmul.f32 %v548, %v2193
        %v2258 = vmul.f32 %v547, %v2194
        %v2259 = vmul.f32 %v548, %v2195
        %v2260 = vmul.f32 %v547, %v2196
        %v2261 = vmul.f32 %v548, %v2197
        %v2262 = vmul.f32 %v547, %v2198
        %v2263 = vmul.f32 %v548, %v2199
        %v2264 = vmul.f32 %v547, %v2200
        %v2265 = vmul.f32 %v548, %v2201
        %v2266 = vmul.f32 %v547, %v2202
        %v2267 = vmul.f32 %v548, %v2203
        %v2268 = vmul.f32 %v547, %v2204
        %v2269 = vmul.f32 %v548, %v2205
        %v2270 = vmul.f32 %v547, %v2206
        %v2271 = vmul.f32 %v548, %v2207
        %v2272 = vmul.f32 %v547, %v2208
        %v2273 = vmul.f32 %v548, %v2209
        %v2274 = vmul.f32 %v547, %v2210
        %v2275 = vmul.f32 %v548, %v2211
        %v2276 = vmul.f32 %v547, %v2212
        %v2277 = vmul.f32 %v548, %v2213
        %v2278 = vmul.f32 %v547, %v2214
        %v2279 = vmul.f32 %v548, %v2215
        %v2280 = vmul.f32 %v547, %v2216
        %v2281 = vmul.f32 %v548, %v2217
        %v2282 = vmul.f32 %v547, %v2218
        %v2283 = vmul.f32 %v548, %v2219
        %v2284 = vmul.f32 %v547, %v2220
        %v2285 = vmul.f32 %v548, %v2221
        %v2286 = vmul.f32 %v547, %v2222
        %v2287 = vmul.f32 %v548, %v2223
        %v2288 = vmul.f32 %v547, %v2224
        %v2289 = vmul.f32 %v548, %v2225
        %v2290 = vmul.f32 %v547, %v2226
        %v2291 = vmul.f32 %v548, %v2227
        %v2292 = vmul.f32 %v547, %v2228
        %v2293 = vmul.f32 %v548, %v2229
        %v2294 = vmul.f32 %v547, %v2230
        %v2295 = vmul.f32 %v548, %v2231
        %v2296 = vmul.f32 %v547, %v2232
        %v2297 = vmul.f32 %v548, %v2233
        %v2298 = vmul.f32 %v547, %v2234
        %v2299 = vmul.f32 %v548, %v2235
        %v2300 = vmul.f32 %v547, %v2236
        %v2301 = vmul.f32 %v548, %v2237
        %v2302 = vmul.f32 %v547, %v2238
        %v2303 = vmul.f32 %v548, %v2239
        %v2304 = vmul.f32 %v547, %v2240
        %v2305 = vmul.f32 %v548, %v2241
        %v2306 = vmul.f32 %v547, %v2242
        %v2307 = vmul.f32 %v548, %v2243
        %v2308 = vmul.f32 %v547, %v2244
        %v2309 = vmul.f32 %v548, %v2245
        %v2310 = vmul.f32 %v547, %v2246
        %v2311 = vmul.f32 %v548, %v2247
        %v2312 = vsub.f32 %v810, %v1352
        %v2313 = vsub.f32 %v812, %v1353
        %v2314 = vsub.f32 %v814, %v1354
        %v2315 = vsub.f32 %v816, %v1355
        %v2316 = vsub.f32 %v820, %v1356
        %v2317 = vsub.f32 %v822, %v1357
        %v2318 = vsub.f32 %v824, %v1358
        %v2319 = vsub.f32 %v826, %v1359
        %v2320 = vsub.f32 %v830, %v1360
        %v2321 = vsub.f32 %v832, %v1361
        %v2322 = vsub.f32 %v834, %v1362
        %v2323 = vsub.f32 %v836, %v1363
        %v2324 = vsub.f32 %v840, %v1364
        %v2325 = vsub.f32 %v842, %v1365
        %v2326 = vsub.f32 %v844, %v1366
        %v2327 = vsub.f32 %v846, %v1367
        %v2328 = vsub.f32 %v850, %v1368
        %v2329 = vsub.f32 %v852, %v1369
        %v2330 = vsub.f32 %v854, %v1370
        %v2331 = vsub.f32 %v856, %v1371
        %v2332 = vsub.f32 %v860, %v1372
        %v2333 = vsub.f32 %v862, %v1373
        %v2334 = vsub.f32 %v864, %v1374
        %v2335 = vsub.f32 %v866, %v1375
        %v2336 = vsub.f32 %v870, %v1376
        %v2337 = vsub.f32 %v872, %v1377
        %v2338 = vsub.f32 %v874, %v1378
        %v2339 = vsub.f32 %v876, %v1379
        %v2340 = vsub.f32 %v880, %v1380
        %v2341 = vsub.f32 %v882, %v1381
        %v2342 = vsub.f32 %v884, %v1382
        %v2343 = vsub.f32 %v886, %v1383
        %v2344 = vsub.f32 %v890, %v1384
        %v2345 = vsub.f32 %v892, %v1385
        %v2346 = vsub.f32 %v894, %v1386
        %v2347 = vsub.f32 %v896, %v1387
        %v2348 = vsub.f32 %v900, %v1388
        %v2349 = vsub.f32 %v902, %v1389
        %v2350 = vsub.f32 %v904, %v1390
        %v2351 = vsub.f32 %v906, %v1391
        %v2352 = vsub.f32 %v910, %v1392
        %v2353 = vsub.f32 %v912, %v1393
        %v2354 = vsub.f32 %v914, %v1394
        %v2355 = vsub.f32 %v916, %v1395
        %v2356 = vsub.f32 %v920, %v1396
        %v2357 = vsub.f32 %v922, %v1397
        %v2358 = vsub.f32 %v924, %v1398
        %v2359 = vsub.f32 %v926, %v1399
        %v2360 = vsub.f32 %v930, %v1400
        %v2361 = vsub.f32 %v932, %v1401
        %v2362 = vsub.f32 %v934, %v1402
        %v2363 = vsub.f32 %v936, %v1403
        %v2364 = vsub.f32 %v940, %v1404
        %v2365 = vsub.f32 %v942, %v1405
        %v2366 = vsub.f32 %v944, %v1406
        %v2367 = vsub.f32 %v946, %v1407
        %v2368 = vsub.f32 %v950, %v1408
        %v2369 = vsub.f32 %v952, %v1409
        %v2370 = vsub.f32 %v954, %v1410
        %v2371 = vsub.f32 %v956, %v1411
        %v2372 = vsub.f32 %v960, %v1412
        %v2373 = vsub.f32 %v962, %v1413
        %v2374 = vsub.f32 %v964, %v1414
        %v2375 = vsub.f32 %v966, %v1415
        %v2376 = vlaneseq
        %v2377 = vshrl.u32 %v2376, 7
        %v2378 = vsub.s32 0, %v2377
        %v2379 = vrot.slane %v2248, %v2378
        %v2380 = vlaneseq
        %v2381 = vshrl.u32 %v2380, 7
        %v2382 = vsub.s32 0, %v2381
        %v2383 = vrot.slane %v2249, %v2382
        %v2384 = vlaneseq
        %v2385 = vshrl.u32 %v2384, 7
        %v2386 = vsub.s32 0, %v2385
        %v2387 = vrot.slane %v2250, %v2386
        %v2388 = vlaneseq
        %v2389 = vshrl.u32 %v2388, 7
        %v2390 = vsub.s32 0, %v2389
        %v2391 = vrot.slane %v2251, %v2390
        %v2392 = vlaneseq
        %v2393 = vshrl.u32 %v2392, 7
        %v2394 = vsub.s32 0, %v2393
        %v2395 = vrot.slane %v2252, %v2394
        %v2396 = vlaneseq
        %v2397 = vshrl.u32 %v2396, 7
        %v2398 = vsub.s32 0, %v2397
        %v2399 = vrot.slane %v2253, %v2398
        %v2400 = vlaneseq
        %v2401 = vshrl.u32 %v2400, 7
        %v2402 = vsub.s32 0, %v2401
        %v2403 = vrot.slane %v2254, %v2402
        %v2404 = vlaneseq
        %v2405 = vshrl.u32 %v2404, 7
        %v2406 = vsub.s32 0, %v2405
        %v2407 = vrot.slane %v2255, %v2406
        %v2408 = vlaneseq
        %v2409 = vshrl.u32 %v2408, 7
        %v2410 = vsub.s32 0, %v2409
        %v2411 = vrot.slane %v2256, %v2410
        %v2412 = vlaneseq
        %v2413 = vshrl.u32 %v2412, 7
        %v2414 = vsub.s32 0, %v2413
        %v2415 = vrot.slane %v2257, %v2414
        %v2416 = vlaneseq
        %v2417 = vshrl.u32 %v2416, 7
        %v2418 = vsub.s32 0, %v2417
        %v2419 = vrot.slane %v2258, %v2418
        %v2420 = vlaneseq
        %v2421 = vshrl.u32 %v2420, 7
        %v2422 = vsub.s32 0, %v2421
        %v2423 = vrot.slane %v2259, %v2422
        %v2424 = vlaneseq
        %v2425 = vshrl.u32 %v2424, 7
        %v2426 = vsub.s32 0, %v2425
        %v2427 = vrot.slane %v2260, %v2426
        %v2428 = vlaneseq
        %v2429 = vshrl.u32 %v2428, 7
        %v2430 = vsub.s32 0, %v2429
        %v2431 = vrot.slane %v2261, %v2430
        %v2432 = vlaneseq
        %v2433 = vshrl.u32 %v2432, 7
        %v2434 = vsub.s32 0, %v2433
        %v2435 = vrot.slane %v2262, %v2434
        %v2436 = vlaneseq
        %v2437 = vshrl.u32 %v2436, 7
        %v2438 = vsub.s32 0, %v2437
        %v2439 = vrot.slane %v2263, %v2438
        %v2440 = vlaneseq
        %v2441 = vshrl.u32 %v2440, 7
        %v2442 = vsub.s32 0, %v2441
        %v2443 = vrot.slane %v2264, %v2442
        %v2444 = vlaneseq
        %v2445 = vshrl.u32 %v2444, 7
        %v2446 = vsub.s32 0, %v2445
        %v2447 = vrot.slane %v2265, %v2446
        %v2448 = vlaneseq
        %v2449 = vshrl.u32 %v2448, 7
        %v2450 = vsub.s32 0, %v2449
        %v2451 = vrot.slane %v2266, %v2450
        %v2452 = vlaneseq
        %v2453 = vshrl.u32 %v2452, 7
        %v2454 = vsub.s32 0, %v2453
        %v2455 = vrot.slane %v2267, %v2454
        %v2456 = vlaneseq
        %v2457 = vshrl.u32 %v2456, 7
        %v2458 = vsub.s32 0, %v2457
        %v2459 = vrot.slane %v2268, %v2458
        %v2460 = vlaneseq
        %v2461 = vshrl.u32 %v2460, 7
        %v2462 = vsub.s32 0, %v2461
        %v2463 = vrot.slane %v2269, %v2462
        %v2464 = vlaneseq
        %v2465 = vshrl.u32 %v2464, 7
        %v2466 = vsub.s32 0, %v2465
        %v2467 = vrot.slane %v2270, %v2466
        %v2468 = vlaneseq
        %v2469 = vshrl.u32 %v2468, 7
        %v2470 = vsub.s32 0, %v2469
        %v2471 = vrot.slane %v2271, %v2470
        %v2472 = vlaneseq
        %v2473 = vshrl.u32 %v2472, 7
        %v2474 = vsub.s32 0, %v2473
        %v2475 = vrot.slane %v2272, %v2474
        %v2476 = vlaneseq
        %v2477 = vshrl.u32 %v2476, 7
        %v2478 = vsub.s32 0, %v2477
        %v2479 = vrot.slane %v2273, %v2478
        %v2480 = vlaneseq
        %v2481 = vshrl.u32 %v2480, 7
        %v2482 = vsub.s32 0, %v2481
        %v2483 = vrot.slane %v2274, %v2482
        %v2484 = vlaneseq
        %v2485 = vshrl.u32 %v2484, 7
        %v2486 = vsub.s32 0, %v2485
        %v2487 = vrot.slane %v2275, %v2486
        %v2488 = vlaneseq
        %v2489 = vshrl.u32 %v2488, 7
        %v2490 = vsub.s32 0, %v2489
        %v2491 = vrot.slane %v2276, %v2490
        %v2492 = vlaneseq
        %v2493 = vshrl.u32 %v2492, 7
        %v2494 = vsub.s32 0, %v2493
        %v2495 = vrot.slane %v2277, %v2494
        %v2496 = vlaneseq
        %v2497 = vshrl.u32 %v2496, 7
        %v2498 = vsub.s32 0, %v2497
        %v2499 = vrot.slane %v2278, %v2498
        %v2500 = vlaneseq
        %v2501 = vshrl.u32 %v2500, 7
        %v2502 = vsub.s32 0, %v2501
        %v2503 = vrot.slane %v2279, %v2502
        %v2504 = vlaneseq
        %v2505 = vshrl.u32 %v2504, 7
        %v2506 = vsub.s32 0, %v2505
        %v2507 = vrot.slane %v2280, %v2506
        %v2508 = vlaneseq
        %v2509 = vshrl.u32 %v2508, 7
        %v2510 = vsub.s32 0, %v2509
        %v2511 = vrot.slane %v2281, %v2510
        %v2512 = vlaneseq
        %v2513 = vshrl.u32 %v2512, 7
        %v2514 = vsub.s32 0, %v2513
        %v2515 = vrot.slane %v2282, %v2514
        %v2516 = vlaneseq
        %v2517 = vshrl.u32 %v2516, 7
        %v2518 = vsub.s32 0, %v2517
        %v2519 = vrot.slane %v2283, %v2518
        %v2520 = vlaneseq
        %v2521 = vshrl.u32 %v2520, 7
        %v2522 = vsub.s32 0, %v2521
        %v2523 = vrot.slane %v2284, %v2522
        %v2524 = vlaneseq
        %v2525 = vshrl.u32 %v2524, 7
        %v2526 = vsub.s32 0, %v2525
        %v2527 = vrot.slane %v2285, %v2526
        %v2528 = vlaneseq
        %v2529 = vshrl.u32 %v2528, 7
        %v2530 = vsub.s32 0, %v2529
        %v2531 = vrot.slane %v2286, %v2530
        %v2532 = vlaneseq
        %v2533 = vshrl.u32 %v2532, 7
        %v2534 = vsub.s32 0, %v2533
        %v2535 = vrot.slane %v2287, %v2534
        %v2536 = vlaneseq
        %v2537 = vshrl.u32 %v2536, 7
        %v2538 = vsub.s32 0, %v2537
        %v2539 = vrot.slane %v2288, %v2538
        %v2540 = vlaneseq
        %v2541 = vshrl.u32 %v2540, 7
        %v2542 = vsub.s32 0, %v2541
        %v2543 = vrot.slane %v2289, %v2542
        %v2544 = vlaneseq
        %v2545 = vshrl.u32 %v2544, 7
        %v2546 = vsub.s32 0, %v2545
        %v2547 = vrot.slane %v2290, %v2546
        %v2548 = vlaneseq
        %v2549 = vshrl.u32 %v2548, 7
        %v2550 = vsub.s32 0, %v2549
        %v2551 = vrot.slane %v2291, %v2550
        %v2552 = vlaneseq
        %v2553 = vshrl.u32 %v2552, 7
        %v2554 = vsub.s32 0, %v2553
        %v2555 = vrot.slane %v2292, %v2554
        %v2556 = vlaneseq
        %v2557 = vshrl.u32 %v2556, 7
        %v2558 = vsub.s32 0, %v2557
        %v2559 = vrot.slane %v2293, %v2558
        %v2560 = vlaneseq
        %v2561 = vshrl.u32 %v2560, 7
        %v2562 = vsub.s32 0, %v2561
        %v2563 = vrot.slane %v2294, %v2562
        %v2564 = vlaneseq
        %v2565 = vshrl.u32 %v2564, 7
        %v2566 = vsub.s32 0, %v2565
        %v2567 = vrot.slane %v2295, %v2566
        %v2568 = vlaneseq
        %v2569 = vshrl.u32 %v2568, 7
        %v2570 = vsub.s32 0, %v2569
        %v2571 = vrot.slane %v2296, %v2570
        %v2572 = vlaneseq
        %v2573 = vshrl.u32 %v2572, 7
        %v2574 = vsub.s32 0, %v2573
        %v2575 = vrot.slane %v2297, %v2574
        %v2576 = vlaneseq
        %v2577 = vshrl.u32 %v2576, 7
        %v2578 = vsub.s32 0, %v2577
        %v2579 = vrot.slane %v2298, %v2578
        %v2580 = vlaneseq
        %v2581 = vshrl.u32 %v2580, 7
        %v2582 = vsub.s32 0, %v2581
        %v2583 = vrot.slane %v2299, %v2582
        %v2584 = vlaneseq
        %v2585 = vshrl.u32 %v2584, 7
        %v2586 = vsub.s32 0, %v2585
        %v2587 = vrot.slane %v2300, %v2586
        %v2588 = vlaneseq
        %v2589 = vshrl.u32 %v2588, 7
        %v2590 = vsub.s32 0, %v2589
        %v2591 = vrot.slane %v2301, %v2590
        %v2592 = vlaneseq
        %v2593 = vshrl.u32 %v2592, 7
        %v2594 = vsub.s32 0, %v2593
        %v2595 = vrot.slane %v2302, %v2594
        %v2596 = vlaneseq
        %v2597 = vshrl.u32 %v2596, 7
        %v2598 = vsub.s32 0, %v2597
        %v2599 = vrot.slane %v2303, %v2598
        %v2600 = vlaneseq
        %v2601 = vshrl.u32 %v2600, 7
        %v2602 = vsub.s32 0, %v2601
        %v2603 = vrot.slane %v2304, %v2602
        %v2604 = vlaneseq
        %v2605 = vshrl.u32 %v2604, 7
        %v2606 = vsub.s32 0, %v2605
        %v2607 = vrot.slane %v2305, %v2606
        %v2608 = vlaneseq
        %v2609 = vshrl.u32 %v2608, 7
        %v2610 = vsub.s32 0, %v2609
        %v2611 = vrot.slane %v2306, %v2610
        %v2612 = vlaneseq
        %v2613 = vshrl.u32 %v2612, 7
        %v2614 = vsub.s32 0, %v2613
        %v2615 = vrot.slane %v2307, %v2614
        %v2616 = vlaneseq
        %v2617 = vshrl.u32 %v2616, 7
        %v2618 = vsub.s32 0, %v2617
        %v2619 = vrot.slane %v2308, %v2618
        %v2620 = vlaneseq
        %v2621 = vshrl.u32 %v2620, 7
        %v2622 = vsub.s32 0, %v2621
        %v2623 = vrot.slane %v2309, %v2622
        %v2624 = vlaneseq
        %v2625 = vshrl.u32 %v2624, 7
        %v2626 = vsub.s32 0, %v2625
        %v2627 = vrot.slane %v2310, %v2626
        %v2628 = vlaneseq
        %v2629 = vshrl.u32 %v2628, 7
        %v2630 = vsub.s32 0, %v2629
        %v2631 = vrot.slane %v2311, %v2630
        %v2632 = vmul.f32 %v2312, %v2379
        %v2633 = vmul.f32 %v2313, %v2383
        %v2634 = vmul.f32 %v2314, %v2387
        %v2635 = vmul.f32 %v2315, %v2391
        %v2636 = vmul.f32 %v2316, %v2395
        %v2637 = vmul.f32 %v2317, %v2399
        %v2638 = vmul.f32 %v2318, %v2403
        %v2639 = vmul.f32 %v2319, %v2407
        %v2640 = vmul.f32 %v2320, %v2411
        %v2641 = vmul.f32 %v2321, %v2415
        %v2642 = vmul.f32 %v2322, %v2419
        %v2643 = vmul.f32 %v2323, %v2423
        %v2644 = vmul.f32 %v2324, %v2427
        %v2645 = vmul.f32 %v2325, %v2431
        %v2646 = vmul.f32 %v2326, %v2435
        %v2647 = vmul.f32 %v2327, %v2439
        %v2648 = vmul.f32 %v2328, %v2443
        %v2649 = vmul.f32 %v2329, %v2447
        %v2650 = vmul.f32 %v2330, %v2451
        %v2651 = vmul.f32 %v2331, %v2455
        %v2652 = vmul.f32 %v2332, %v2459
        %v2653 = vmul.f32 %v2333, %v2463
        %v2654 = vmul.f32 %v2334, %v2467
        %v2655 = vmul.f32 %v2335, %v2471
        %v2656 = vmul.f32 %v2336, %v2475
        %v2657 = vmul.f32 %v2337, %v2479
        %v2658 = vmul.f32 %v2338, %v2483
        %v2659 = vmul.f32 %v2339, %v2487
        %v2660 = vmul.f32 %v2340, %v2491
        %v2661 = vmul.f32 %v2341, %v2495
        %v2662 = vmul.f32 %v2342, %v2499
        %v2663 = vmul.f32 %v2343, %v2503
        %v2664 = vmul.f32 %v2344, %v2507
        %v2665 = vmul.f32 %v2345, %v2511
        %v2666 = vmul.f32 %v2346, %v2515
        %v2667 = vmul.f32 %v2347, %v2519
        %v2668 = vmul.f32 %v2348, %v2523
        %v2669 = vmul.f32 %v2349, %v2527
        %v2670 = vmul.f32 %v2350, %v2531
        %v2671 = vmul.f32 %v2351, %v2535
        %v2672 = vmul.f32 %v2352, %v2539
        %v2673 = vmul.f32 %v2353, %v2543
        %v2674 = vmul.f32 %v2354, %v2547
        %v2675 = vmul.f32 %v2355, %v2551
        %v2676 = vmul.f32 %v2356, %v2555
        %v2677 = vmul.f32 %v2357, %v2559
        %v2678 = vmul.f32 %v2358, %v2563
        %v2679 = vmul.f32 %v2359, %v2567
        %v2680 = vmul.f32 %v2360, %v2571
        %v2681 = vmul.f32 %v2361, %v2575
        %v2682 = vmul.f32 %v2362, %v2579
        %v2683 = vmul.f32 %v2363, %v2583
        %v2684 = vmul.f32 %v2364, %v2587
        %v2685 = vmul.f32 %v2365, %v2591
        %v2686 = vmul.f32 %v2366, %v2595
        %v2687 = vmul.f32 %v2367, %v2599
        %v2688 = vmul.f32 %v2368, %v2603
        %v2689 = vmul.f32 %v2369, %v2607
        %v2690 = vmul.f32 %v2370, %v2611
        %v2691 = vmul.f32 %v2371, %v2615
        %v2692 = vmul.f32 %v2372, %v2619
        %v2693 = vmul.f32 %v2373, %v2623
        %v2694 = vmul.f32 %v2374, %v2627
        %v2695 = vmul.f32 %v2375, %v2631
        %v2696 = vlaneseq
        %v2697 = vshrl.u32 %v2696, 7
        %v2698 = vsub.s32 1, %v2697
        %v2699 = vrot.slane %v547, %v2698
        %v2700 = vlaneseq
        %v2701 = vshrl.u32 %v2700, 7
        %v2702 = vsub.s32 1, %v2701
        %v2703 = vrot.slane %v548, %v2702
        %v2704 = vadd.f32 %v2632, %v2699
        %v2705 = vadd.f32 %v2633, %v2703
        %v2706 = vadd.f32 %v2634, %v2699
        %v2707 = vadd.f32 %v2635, %v2703
        %v2708 = vadd.f32 %v2636, %v2699
        %v2709 = vadd.f32 %v2637, %v2703
        %v2710 = vadd.f32 %v2638, %v2699
        %v2711 = vadd.f32 %v2639, %v2703
        %v2712 = vadd.f32 %v2640, %v2699
        %v2713 = vadd.f32 %v2641, %v2703
        %v2714 = vadd.f32 %v2642, %v2699
        %v2715 = vadd.f32 %v2643, %v2703
        %v2716 = vadd.f32 %v2644, %v2699
        %v2717 = vadd.f32 %v2645, %v2703
        %v2718 = vadd.f32 %v2646, %v2699
        %v2719 = vadd.f32 %v2647, %v2703
        %v2720 = vadd.f32 %v2648, %v2699
        %v2721 = vadd.f32 %v2649, %v2703
        %v2722 = vadd.f32 %v2650, %v2699
        %v2723 = vadd.f32 %v2651, %v2703
        %v2724 = vadd.f32 %v2652, %v2699
        %v2725 = vadd.f32 %v2653, %v2703
        %v2726 = vadd.f32 %v2654, %v2699
        %v2727 = vadd.f32 %v2655, %v2703
        %v2728 = vadd.f32 %v2656, %v2699
        %v2729 = vadd.f32 %v2657, %v2703
        %v2730 = vadd.f32 %v2658, %v2699
        %v2731 = vadd.f32 %v2659, %v2703
        %v2732 = vadd.f32 %v2660, %v2699
        %v2733 = vadd.f32 %v2661, %v2703
        %v2734 = vadd.f32 %v2662, %v2699
        %v2735 = vadd.f32 %v2663, %v2703
        %v2736 = vadd.f32 %v2664, %v2699
        %v2737 = vadd.f32 %v2665, %v2703
        %v2738 = vadd.f32 %v2666, %v2699
        %v2739 = vadd.f32 %v2667, %v2703
        %v2740 = vadd.f32 %v2668, %v2699
        %v2741 = vadd.f32 %v2669, %v2703
        %v2742 = vadd.f32 %v2670, %v2699
        %v2743 = vadd.f32 %v2671, %v2703
        %v2744 = vadd.f32 %v2672, %v2699
        %v2745 = vadd.f32 %v2673, %v2703
        %v2746 = vadd.f32 %v2674, %v2699
        %v2747 = vadd.f32 %v2675, %v2703
        %v2748 = vadd.f32 %v2676, %v2699
        %v2749 = vadd.f32 %v2677, %v2703
        %v2750 = vadd.f32 %v2678, %v2699
        %v2751 = vadd.f32 %v2679, %v2703
        %v2752 = vadd.f32 %v2680, %v2699
        %v2753 = vadd.f32 %v2681, %v2703
        %v2754 = vadd.f32 %v2682, %v2699
        %v2755 = vadd.f32 %v2683, %v2703
        %v2756 = vadd.f32 %v2684, %v2699
        %v2757 = vadd.f32 %v2685, %v2703
        %v2758 = vadd.f32 %v2686, %v2699
        %v2759 = vadd.f32 %v2687, %v2703
        %v2760 = vadd.f32 %v2688, %v2699
        %v2761 = vadd.f32 %v2689, %v2703
        %v2762 = vadd.f32 %v2690, %v2699
        %v2763 = vadd.f32 %v2691, %v2703
        %v2764 = vadd.f32 %v2692, %v2699
        %v2765 = vadd.f32 %v2693, %v2703
        %v2766 = vadd.f32 %v2694, %v2699
        %v2767 = vadd.f32 %v2695, %v2703
        %v2768 = vmax.f32 %v2704, 0.0
        %v2769 = vmax.f32 %v2705, 0.0
        %v2770 = vmax.f32 %v2706, 0.0
        %v2771 = vmax.f32 %v2707, 0.0
        %v2772 = vmax.f32 %v2708, 0.0
        %v2773 = vmax.f32 %v2709, 0.0
        %v2774 = vmax.f32 %v2710, 0.0
        %v2775 = vmax.f32 %v2711, 0.0
        %v2776 = vmax.f32 %v2712, 0.0
        %v2777 = vmax.f32 %v2713, 0.0
        %v2778 = vmax.f32 %v2714, 0.0
        %v2779 = vmax.f32 %v2715, 0.0
        %v2780 = vmax.f32 %v2716, 0.0
        %v2781 = vmax.f32 %v2717, 0.0
        %v2782 = vmax.f32 %v2718, 0.0
        %v2783 = vmax.f32 %v2719, 0.0
        %v2784 = vmax.f32 %v2720, 0.0
        %v2785 = vmax.f32 %v2721, 0.0
        %v2786 = vmax.f32 %v2722, 0.0
        %v2787 = vmax.f32 %v2723, 0.0
        %v2788 = vmax.f32 %v2724, 0.0
        %v2789 = vmax.f32 %v2725, 0.0
        %v2790 = vmax.f32 %v2726, 0.0
        %v2791 = vmax.f32 %v2727, 0.0
        %v2792 = vmax.f32 %v2728, 0.0
        %v2793 = vmax.f32 %v2729, 0.0
        %v2794 = vmax.f32 %v2730, 0.0
        %v2795 = vmax.f32 %v2731, 0.0
        %v2796 = vmax.f32 %v2732, 0.0
        %v2797 = vmax.f32 %v2733, 0.0
        %v2798 = vmax.f32 %v2734, 0.0
        %v2799 = vmax.f32 %v2735, 0.0
        %v2800 = vmax.f32 %v2736, 0.0
        %v2801 = vmax.f32 %v2737, 0.0
        %v2802 = vmax.f32 %v2738, 0.0
        %v2803 = vmax.f32 %v2739, 0.0
        %v2804 = vmax.f32 %v2740, 0.0
        %v2805 = vmax.f32 %v2741, 0.0
        %v2806 = vmax.f32 %v2742, 0.0
        %v2807 = vmax.f32 %v2743, 0.0
        %v2808 = vmax.f32 %v2744, 0.0
        %v2809 = vmax.f32 %v2745, 0.0
        %v2810 = vmax.f32 %v2746, 0.0
        %v2811 = vmax.f32 %v2747, 0.0
        %v2812 = vmax.f32 %v2748, 0.0
        %v2813 = vmax.f32 %v2749, 0.0
        %v2814 = vmax.f32 %v2750, 0.0
        %v2815 = vmax.f32 %v2751, 0.0
        %v2816 = vmax.f32 %v2752, 0.0
        %v2817 = vmax.f32 %v2753, 0.0
        %v2818 = vmax.f32 %v2754, 0.0
        %v2819 = vmax.f32 %v2755, 0.0
        %v2820 = vmax.f32 %v2756, 0.0
        %v2821 = vmax.f32 %v2757, 0.0
        %v2822 = vmax.f32 %v2758, 0.0
        %v2823 = vmax.f32 %v2759, 0.0
        %v2824 = vmax.f32 %v2760, 0.0
        %v2825 = vmax.f32 %v2761, 0.0
        %v2826 = vmax.f32 %v2762, 0.0
        %v2827 = vmax.f32 %v2763, 0.0
        %v2828 = vmax.f32 %v2764, 0.0
        %v2829 = vmax.f32 %v2765, 0.0
        %v2830 = vmax.f32 %v2766, 0.0
        %v2831 = vmax.f32 %v2767, 0.0
        %v2832 = vpack.c.bf16 %v2770, %v2768
        %v2833 = vpack.c.bf16 %v2771, %v2769
        %v2834 = vpack.c.bf16 %v2774, %v2772
        %v2835 = vpack.c.bf16 %v2775, %v2773
        %v2836 = vpack.c.bf16 %v2778, %v2776
        %v2837 = vpack.c.bf16 %v2779, %v2777
        %v2838 = vpack.c.bf16 %v2782, %v2780
        %v2839 = vpack.c.bf16 %v2783, %v2781
        %v2840 = vpack.c.bf16 %v2786, %v2784
        %v2841 = vpack.c.bf16 %v2787, %v2785
        %v2842 = vpack.c.bf16 %v2790, %v2788
        %v2843 = vpack.c.bf16 %v2791, %v2789
        %v2844 = vpack.c.bf16 %v2794, %v2792
        %v2845 = vpack.c.bf16 %v2795, %v2793
        %v2846 = vpack.c.bf16 %v2798, %v2796
        %v2847 = vpack.c.bf16 %v2799, %v2797
        %v2848 = vpack.c.bf16 %v2802, %v2800
        %v2849 = vpack.c.bf16 %v2803, %v2801
        %v2850 = vpack.c.bf16 %v2806, %v2804
        %v2851 = vpack.c.bf16 %v2807, %v2805
        %v2852 = vpack.c.bf16 %v2810, %v2808
        %v2853 = vpack.c.bf16 %v2811, %v2809
        %v2854 = vpack.c.bf16 %v2814, %v2812
        %v2855 = vpack.c.bf16 %v2815, %v2813
        %v2856 = vpack.c.bf16 %v2818, %v2816
        %v2857 = vpack.c.bf16 %v2819, %v2817
        %v2858 = vpack.c.bf16 %v2822, %v2820
        %v2859 = vpack.c.bf16 %v2823, %v2821
        %v2860 = vpack.c.bf16 %v2826, %v2824
        %v2861 = vpack.c.bf16 %v2827, %v2825
        %v2862 = vpack.c.bf16 %v2830, %v2828
        %v2863 = vpack.c.bf16 %v2831, %v2829
        %v2864 = vld [vmem:[#allocation10] sm:$0xf]
        %v2865 = vld [vmem:[#allocation10 + $0x4] sm:$0xf]
        %v2866 = vld [vmem:[#allocation10 + $0x8] sm:$0xf]
        %v2867 = vld [vmem:[#allocation10 + $0xc] sm:$0xf]
        %v2868 = vld [vmem:[#allocation10 + $0x10] sm:$0xf]
        %v2869 = vld [vmem:[#allocation10 + $0x14] sm:$0xf]
        %v2870 = vld [vmem:[#allocation10 + $0x18] sm:$0xf]
        %v2871 = vld [vmem:[#allocation10 + $0x1c] sm:$0xf]
        %v2872 = vld [vmem:[#allocation10 + $0x20] sm:$0xf]
        %v2873 = vld [vmem:[#allocation10 + $0x24] sm:$0xf]
        %v2874 = vld [vmem:[#allocation10 + $0x28] sm:$0xf]
        %v2875 = vld [vmem:[#allocation10 + $0x2c] sm:$0xf]
        %v2876 = vld [vmem:[#allocation10 + $0x30] sm:$0xf]
        %v2877 = vld [vmem:[#allocation10 + $0x34] sm:$0xf]
        %v2878 = vld [vmem:[#allocation10 + $0x38] sm:$0xf]
        %v2879 = vld [vmem:[#allocation10 + $0x3c] sm:$0xf]
        %v2880 = vld [vmem:[#allocation10 + $0x40] sm:$0xf]
        %v2881 = vld [vmem:[#allocation10 + $0x44] sm:$0xf]
        %v2882 = vld [vmem:[#allocation10 + $0x48] sm:$0xf]
        %v2883 = vld [vmem:[#allocation10 + $0x4c] sm:$0xf]
        %v2884 = vld [vmem:[#allocation10 + $0x50] sm:$0xf]
        %v2885 = vld [vmem:[#allocation10 + $0x54] sm:$0xf]
        %v2886 = vld [vmem:[#allocation10 + $0x58] sm:$0xf]
        %v2887 = vld [vmem:[#allocation10 + $0x5c] sm:$0xf]
        %v2888 = vld [vmem:[#allocation10 + $0x60] sm:$0xf]
        %v2889 = vld [vmem:[#allocation10 + $0x64] sm:$0xf]
        %v2890 = vld [vmem:[#allocation10 + $0x68] sm:$0xf]
        %v2891 = vld [vmem:[#allocation10 + $0x6c] sm:$0xf]
        %v2892 = vld [vmem:[#allocation10 + $0x70] sm:$0xf]
        %v2893 = vld [vmem:[#allocation10 + $0x74] sm:$0xf]
        %v2894 = vld [vmem:[#allocation10 + $0x78] sm:$0xf]
        %v2895 = vld [vmem:[#allocation10 + $0x7c] sm:$0xf]
        %v2928 = vunpack.c.l.b16 %v2864
        %v2929 = vunpack.c.l.b16 %v2865
        %v2930 = vunpack.c.l.b16 %v2866
        %v2931 = vunpack.c.l.b16 %v2867
        %v2932 = vunpack.c.l.b16 %v2868
        %v2933 = vunpack.c.l.b16 %v2869
        %v2934 = vunpack.c.l.b16 %v2870
        %v2935 = vunpack.c.l.b16 %v2871
        %v2936 = vunpack.c.l.b16 %v2872
        %v2937 = vunpack.c.l.b16 %v2873
        %v2938 = vunpack.c.l.b16 %v2874
        %v2939 = vunpack.c.l.b16 %v2875
        %v2940 = vunpack.c.l.b16 %v2876
        %v2941 = vunpack.c.l.b16 %v2877
        %v2942 = vunpack.c.l.b16 %v2878
        %v2943 = vunpack.c.l.b16 %v2879
        %v2944 = vunpack.c.l.b16 %v2880
        %v2945 = vunpack.c.l.b16 %v2881
        %v2946 = vunpack.c.l.b16 %v2882
        %v2947 = vunpack.c.l.b16 %v2883
        %v2948 = vunpack.c.l.b16 %v2884
        %v2949 = vunpack.c.l.b16 %v2885
        %v2950 = vunpack.c.l.b16 %v2886
        %v2951 = vunpack.c.l.b16 %v2887
        %v2952 = vunpack.c.l.b16 %v2888
        %v2953 = vunpack.c.l.b16 %v2889
        %v2954 = vunpack.c.l.b16 %v2890
        %v2955 = vunpack.c.l.b16 %v2891
        %v2956 = vunpack.c.l.b16 %v2892
        %v2957 = vunpack.c.l.b16 %v2893
        %v2958 = vunpack.c.l.b16 %v2894
        %v2959 = vunpack.c.l.b16 %v2895
        %v2960 = vpack.c.b16 %v2929, %v2928
        %v2961 = vpack.c.b16 %v2931, %v2930
        %v2962 = vpack.c.b16 %v2933, %v2932
        %v2963 = vpack.c.b16 %v2935, %v2934
        %v2964 = vpack.c.b16 %v2937, %v2936
        %v2965 = vpack.c.b16 %v2939, %v2938
        %v2966 = vpack.c.b16 %v2941, %v2940
        %v2967 = vpack.c.b16 %v2943, %v2942
        %v2968 = vpack.c.b16 %v2945, %v2944
        %v2969 = vpack.c.b16 %v2947, %v2946
        %v2970 = vpack.c.b16 %v2949, %v2948
        %v2971 = vpack.c.b16 %v2951, %v2950
        %v2972 = vpack.c.b16 %v2953, %v2952
        %v2973 = vpack.c.b16 %v2955, %v2954
        %v2974 = vpack.c.b16 %v2957, %v2956
        %v2975 = vpack.c.b16 %v2959, %v2958
        %2992 = vmatprep.subr.bf16.mxu0 0
        %2993 = vmatpush1.bf16.msra.mxu0 %v2960
        %2994 = vmatprep.subr.bf16.mxu0 0
        %2995 = vmatpush1.bf16.msra.mxu0 %v2961
        %2996 = vmatprep.subr.bf16.mxu0 0
        %2997 = vmatpush1.bf16.msra.mxu0 %v2962
        %2998 = vmatprep.subr.bf16.mxu0 0
        %2999 = vmatpush1.bf16.msra.mxu0 %v2963
        %3000 = vmatprep.subr.bf16.mxu0 0
        %3001 = vmatpush1.bf16.msra.mxu0 %v2964
        %3002 = vmatprep.subr.bf16.mxu0 0
        %3003 = vmatpush1.bf16.msra.mxu0 %v2965
        %3004 = vmatprep.subr.bf16.mxu0 0
        %3005 = vmatpush1.bf16.msra.mxu0 %v2966
        %3006 = vmatprep.subr.bf16.mxu0 0
        %3007 = vmatpush1.bf16.msra.mxu0 %v2967
        %3008 = vmatprep.subr.bf16.mxu0 0
        %3009 = vmatpush1.bf16.msra.mxu0 %v2968
        %3010 = vmatprep.subr.bf16.mxu0 0
        %3011 = vmatpush1.bf16.msra.mxu0 %v2969
        %3012 = vmatprep.subr.bf16.mxu0 0
        %3013 = vmatpush1.bf16.msra.mxu0 %v2970
        %3014 = vmatprep.subr.bf16.mxu0 0
        %3015 = vmatpush1.bf16.msra.mxu0 %v2971
        %3016 = vmatprep.subr.bf16.mxu0 0
        %3017 = vmatpush1.bf16.msra.mxu0 %v2972
        %3018 = vmatprep.subr.bf16.mxu0 0
        %3019 = vmatpush1.bf16.msra.mxu0 %v2973
        %3020 = vmatprep.subr.bf16.mxu0 0
        %3021 = vmatpush1.bf16.msra.mxu0 %v2974
        %3022 = vmatprep.subr.bf16.mxu0 0
        %3023 = vmatpush1.bf16.msra.mxu0 %v2975
        %3024 = vmatprep.mubr.bf16.mxu0 %v2833
        %3025 = vmatmul.mubr.bf16.gmra.mrb[0].mxu0 %v2832
        %v3026 = vpop.f32.mrb[0].mxu0
        %v3027 = vadd.f32 0.0, %v3026
        %v3028 = vpop.f32.mrb[0].mxu0
        %v3029 = vpop.f32.mrb[0].mxu0
        %v3030 = vadd.f32 0.0, %v3029
        %v3031 = vpop.f32.mrb[0].mxu0
        %3032 = vmatprep.mubr.bf16.mxu0 %v2835
        %3033 = vmatmul.mubr.bf16.gmra.mrb[0].mxu0 %v2834
        %v3034 = vpop.f32.mrb[0].mxu0
        %v3035 = vadd.f32 0.0, %v3034
        %v3036 = vpop.f32.mrb[0].mxu0
        %v3037 = vpop.f32.mrb[0].mxu0
        %v3038 = vadd.f32 0.0, %v3037
        %v3039 = vpop.f32.mrb[0].mxu0
        %3040 = vmatprep.mubr.bf16.mxu0 %v2837
        %3041 = vmatmul.mubr.bf16.gmra.mrb[0].mxu0 %v2836
        %v3042 = vpop.f32.mrb[0].mxu0
        %v3043 = vadd.f32 0.0, %v3042
        %v3044 = vpop.f32.mrb[0].mxu0
        %v3045 = vpop.f32.mrb[0].mxu0
        %v3046 = vadd.f32 0.0, %v3045
        %v3047 = vpop.f32.mrb[0].mxu0
        %3048 = vmatprep.mubr.bf16.mxu0 %v2839
        %3049 = vmatmul.mubr.bf16.gmra.mrb[0].mxu0 %v2838
        %v3050 = vpop.f32.mrb[0].mxu0
        %v3051 = vadd.f32 0.0, %v3050
        %v3052 = vpop.f32.mrb[0].mxu0
        %v3053 = vpop.f32.mrb[0].mxu0
        %v3054 = vadd.f32 0.0, %v3053
        %v3055 = vpop.f32.mrb[0].mxu0
        %3056 = vmatprep.mubr.bf16.mxu0 %v2841
        %3057 = vmatmul.mubr.bf16.gmra.mrb[0].mxu0 %v2840
        %v3058 = vpop.f32.mrb[0].mxu0
        %v3059 = vadd.f32 0.0, %v3058
        %v3060 = vpop.f32.mrb[0].mxu0
        %v3061 = vpop.f32.mrb[0].mxu0
        %v3062 = vadd.f32 0.0, %v3061
        %v3063 = vpop.f32.mrb[0].mxu0
        %3064 = vmatprep.mubr.bf16.mxu0 %v2843
        %3065 = vmatmul.mubr.bf16.gmra.mrb[0].mxu0 %v2842
        %v3066 = vpop.f32.mrb[0].mxu0
        %v3067 = vadd.f32 0.0, %v3066
        %v3068 = vpop.f32.mrb[0].mxu0
        %v3069 = vpop.f32.mrb[0].mxu0
        %v3070 = vadd.f32 0.0, %v3069
        %v3071 = vpop.f32.mrb[0].mxu0
        %3072 = vmatprep.mubr.bf16.mxu0 %v2845
        %3073 = vmatmul.mubr.bf16.gmra.mrb[0].mxu0 %v2844
        %v3074 = vpop.f32.mrb[0].mxu0
        %v3075 = vadd.f32 0.0, %v3074
        %v3076 = vpop.f32.mrb[0].mxu0
        %v3077 = vpop.f32.mrb[0].mxu0
        %v3078 = vadd.f32 0.0, %v3077
        %v3079 = vpop.f32.mrb[0].mxu0
        %3080 = vmatprep.mubr.bf16.mxu0 %v2847
        %3081 = vmatmul.mubr.bf16.gmra.mrb[0].mxu0 %v2846
        %v3082 = vpop.f32.mrb[0].mxu0
        %v3083 = vadd.f32 0.0, %v3082
        %v3084 = vpop.f32.mrb[0].mxu0
        %v3085 = vpop.f32.mrb[0].mxu0
        %v3086 = vadd.f32 0.0, %v3085
        %v3087 = vpop.f32.mrb[0].mxu0
        %3088 = vmatprep.mubr.bf16.mxu0 %v2849
        %3089 = vmatmul.mubr.bf16.gmra.mrb[0].mxu0 %v2848
        %v3090 = vpop.f32.mrb[0].mxu0
        %v3091 = vadd.f32 0.0, %v3090
        %v3092 = vpop.f32.mrb[0].mxu0
        %v3093 = vpop.f32.mrb[0].mxu0
        %v3094 = vadd.f32 0.0, %v3093
        %v3095 = vpop.f32.mrb[0].mxu0
        %3096 = vmatprep.mubr.bf16.mxu0 %v2851
        %3097 = vmatmul.mubr.bf16.gmra.mrb[0].mxu0 %v2850
        %v3098 = vpop.f32.mrb[0].mxu0
        %v3099 = vadd.f32 0.0, %v3098
        %v3100 = vpop.f32.mrb[0].mxu0
        %v3101 = vpop.f32.mrb[0].mxu0
        %v3102 = vadd.f32 0.0, %v3101
        %v3103 = vpop.f32.mrb[0].mxu0
        %3104 = vmatprep.mubr.bf16.mxu0 %v2853
        %3105 = vmatmul.mubr.bf16.gmra.mrb[0].mxu0 %v2852
        %v3106 = vpop.f32.mrb[0].mxu0
        %v3107 = vadd.f32 0.0, %v3106
        %v3108 = vpop.f32.mrb[0].mxu0
        %v3109 = vpop.f32.mrb[0].mxu0
        %v3110 = vadd.f32 0.0, %v3109
        %v3111 = vpop.f32.mrb[0].mxu0
        %3112 = vmatprep.mubr.bf16.mxu0 %v2855
        %3113 = vmatmul.mubr.bf16.gmra.mrb[0].mxu0 %v2854
        %v3114 = vpop.f32.mrb[0].mxu0
        %v3115 = vadd.f32 0.0, %v3114
        %v3116 = vpop.f32.mrb[0].mxu0
        %v3117 = vpop.f32.mrb[0].mxu0
        %v3118 = vadd.f32 0.0, %v3117
        %v3119 = vpop.f32.mrb[0].mxu0
        %3120 = vmatprep.mubr.bf16.mxu0 %v2857
        %3121 = vmatmul.mubr.bf16.gmra.mrb[0].mxu0 %v2856
        %v3122 = vpop.f32.mrb[0].mxu0
        %v3123 = vadd.f32 0.0, %v3122
        %v3124 = vpop.f32.mrb[0].mxu0
        %v3125 = vpop.f32.mrb[0].mxu0
        %v3126 = vadd.f32 0.0, %v3125
        %v3127 = vpop.f32.mrb[0].mxu0
        %3128 = vmatprep.mubr.bf16.mxu0 %v2859
        %3129 = vmatmul.mubr.bf16.gmra.mrb[0].mxu0 %v2858
        %v3130 = vpop.f32.mrb[0].mxu0
        %v3131 = vadd.f32 0.0, %v3130
        %v3132 = vpop.f32.mrb[0].mxu0
        %v3133 = vpop.f32.mrb[0].mxu0
        %v3134 = vadd.f32 0.0, %v3133
        %v3135 = vpop.f32.mrb[0].mxu0
        %3136 = vmatprep.mubr.bf16.mxu0 %v2861
        %3137 = vmatmul.mubr.bf16.gmra.mrb[0].mxu0 %v2860
        %v3138 = vpop.f32.mrb[0].mxu0
        %v3139 = vadd.f32 0.0, %v3138
        %v3140 = vpop.f32.mrb[0].mxu0
        %v3141 = vpop.f32.mrb[0].mxu0
        %v3142 = vadd.f32 0.0, %v3141
        %v3143 = vpop.f32.mrb[0].mxu0
        %3144 = vmatprep.mubr.bf16.mxu0 %v2863
        %3145 = vmatmul.mubr.bf16.gmra.mrb[0].mxu0 %v2862
        %v3146 = vpop.f32.mrb[0].mxu0
        %v3147 = vadd.f32 0.0, %v3146
        %v3148 = vpop.f32.mrb[0].mxu0
        %v3149 = vpop.f32.mrb[0].mxu0
        %v3150 = vadd.f32 0.0, %v3149
        %v3151 = vpop.f32.mrb[0].mxu0
        %3152 = vdwg.mxu0
        %v3153 = vrot.slane %v3027, 4
        %v3154 = vadd.f32 %v3027, %v3153
        %v3155 = vrot.slane %v3154, 2
        %v3156 = vadd.f32 %v3154, %v3155
        %v3157 = vrot.slane %v3156, 1
        %v3158 = vadd.f32 %v3156, %v3157
        %v3159 = vrot.slane %v3030, 4
        %v3160 = vadd.f32 %v3030, %v3159
        %v3161 = vrot.slane %v3160, 2
        %v3162 = vadd.f32 %v3160, %v3161
        %v3163 = vrot.slane %v3162, 1
        %v3164 = vadd.f32 %v3162, %v3163
        %v3165 = vrot.slane %v3035, 4
        %v3166 = vadd.f32 %v3035, %v3165
        %v3167 = vrot.slane %v3166, 2
        %v3168 = vadd.f32 %v3166, %v3167
        %v3169 = vrot.slane %v3168, 1
        %v3170 = vadd.f32 %v3168, %v3169
        %v3171 = vrot.slane %v3038, 4
        %v3172 = vadd.f32 %v3038, %v3171
        %v3173 = vrot.slane %v3172, 2
        %v3174 = vadd.f32 %v3172, %v3173
        %v3175 = vrot.slane %v3174, 1
        %v3176 = vadd.f32 %v3174, %v3175
        %v3177 = vrot.slane %v3043, 4
        %v3178 = vadd.f32 %v3043, %v3177
        %v3179 = vrot.slane %v3178, 2
        %v3180 = vadd.f32 %v3178, %v3179
        %v3181 = vrot.slane %v3180, 1
        %v3182 = vadd.f32 %v3180, %v3181
        %v3183 = vrot.slane %v3046, 4
        %v3184 = vadd.f32 %v3046, %v3183
        %v3185 = vrot.slane %v3184, 2
        %v3186 = vadd.f32 %v3184, %v3185
        %v3187 = vrot.slane %v3186, 1
        %v3188 = vadd.f32 %v3186, %v3187
        %v3189 = vrot.slane %v3051, 4
        %v3190 = vadd.f32 %v3051, %v3189
        %v3191 = vrot.slane %v3190, 2
        %v3192 = vadd.f32 %v3190, %v3191
        %v3193 = vrot.slane %v3192, 1
        %v3194 = vadd.f32 %v3192, %v3193
        %v3195 = vrot.slane %v3054, 4
        %v3196 = vadd.f32 %v3054, %v3195
        %v3197 = vrot.slane %v3196, 2
        %v3198 = vadd.f32 %v3196, %v3197
        %v3199 = vrot.slane %v3198, 1
        %v3200 = vadd.f32 %v3198, %v3199
        %v3201 = vrot.slane %v3059, 4
        %v3202 = vadd.f32 %v3059, %v3201
        %v3203 = vrot.slane %v3202, 2
        %v3204 = vadd.f32 %v3202, %v3203
        %v3205 = vrot.slane %v3204, 1
        %v3206 = vadd.f32 %v3204, %v3205
        %v3207 = vrot.slane %v3062, 4
        %v3208 = vadd.f32 %v3062, %v3207
        %v3209 = vrot.slane %v3208, 2
        %v3210 = vadd.f32 %v3208, %v3209
        %v3211 = vrot.slane %v3210, 1
        %v3212 = vadd.f32 %v3210, %v3211
        %v3213 = vrot.slane %v3067, 4
        %v3214 = vadd.f32 %v3067, %v3213
        %v3215 = vrot.slane %v3214, 2
        %v3216 = vadd.f32 %v3214, %v3215
        %v3217 = vrot.slane %v3216, 1
        %v3218 = vadd.f32 %v3216, %v3217
        %v3219 = vrot.slane %v3070, 4
        %v3220 = vadd.f32 %v3070, %v3219
        %v3221 = vrot.slane %v3220, 2
        %v3222 = vadd.f32 %v3220, %v3221
        %v3223 = vrot.slane %v3222, 1
        %v3224 = vadd.f32 %v3222, %v3223
        %v3225 = vrot.slane %v3075, 4
        %v3226 = vadd.f32 %v3075, %v3225
        %v3227 = vrot.slane %v3226, 2
        %v3228 = vadd.f32 %v3226, %v3227
        %v3229 = vrot.slane %v3228, 1
        %v3230 = vadd.f32 %v3228, %v3229
        %v3231 = vrot.slane %v3078, 4
        %v3232 = vadd.f32 %v3078, %v3231
        %v3233 = vrot.slane %v3232, 2
        %v3234 = vadd.f32 %v3232, %v3233
        %v3235 = vrot.slane %v3234, 1
        %v3236 = vadd.f32 %v3234, %v3235
        %v3237 = vrot.slane %v3083, 4
        %v3238 = vadd.f32 %v3083, %v3237
        %v3239 = vrot.slane %v3238, 2
        %v3240 = vadd.f32 %v3238, %v3239
        %v3241 = vrot.slane %v3240, 1
        %v3242 = vadd.f32 %v3240, %v3241
        %v3243 = vrot.slane %v3086, 4
        %v3244 = vadd.f32 %v3086, %v3243
        %v3245 = vrot.slane %v3244, 2
        %v3246 = vadd.f32 %v3244, %v3245
        %v3247 = vrot.slane %v3246, 1
        %v3248 = vadd.f32 %v3246, %v3247
        %v3249 = vrot.slane %v3091, 4
        %v3250 = vadd.f32 %v3091, %v3249
        %v3251 = vrot.slane %v3250, 2
        %v3252 = vadd.f32 %v3250, %v3251
        %v3253 = vrot.slane %v3252, 1
        %v3254 = vadd.f32 %v3252, %v3253
        %v3255 = vrot.slane %v3094, 4
        %v3256 = vadd.f32 %v3094, %v3255
        %v3257 = vrot.slane %v3256, 2
        %v3258 = vadd.f32 %v3256, %v3257
        %v3259 = vrot.slane %v3258, 1
        %v3260 = vadd.f32 %v3258, %v3259
        %v3261 = vrot.slane %v3099, 4
        %v3262 = vadd.f32 %v3099, %v3261
        %v3263 = vrot.slane %v3262, 2
        %v3264 = vadd.f32 %v3262, %v3263
        %v3265 = vrot.slane %v3264, 1
        %v3266 = vadd.f32 %v3264, %v3265
        %v3267 = vrot.slane %v3102, 4
        %v3268 = vadd.f32 %v3102, %v3267
        %v3269 = vrot.slane %v3268, 2
        %v3270 = vadd.f32 %v3268, %v3269
        %v3271 = vrot.slane %v3270, 1
        %v3272 = vadd.f32 %v3270, %v3271
        %v3273 = vrot.slane %v3107, 4
        %v3274 = vadd.f32 %v3107, %v3273
        %v3275 = vrot.slane %v3274, 2
        %v3276 = vadd.f32 %v3274, %v3275
        %v3277 = vrot.slane %v3276, 1
        %v3278 = vadd.f32 %v3276, %v3277
        %v3279 = vrot.slane %v3110, 4
        %v3280 = vadd.f32 %v3110, %v3279
        %v3281 = vrot.slane %v3280, 2
        %v3282 = vadd.f32 %v3280, %v3281
        %v3283 = vrot.slane %v3282, 1
        %v3284 = vadd.f32 %v3282, %v3283
        %v3285 = vrot.slane %v3115, 4
        %v3286 = vadd.f32 %v3115, %v3285
        %v3287 = vrot.slane %v3286, 2
        %v3288 = vadd.f32 %v3286, %v3287
        %v3289 = vrot.slane %v3288, 1
        %v3290 = vadd.f32 %v3288, %v3289
        %v3291 = vrot.slane %v3118, 4
        %v3292 = vadd.f32 %v3118, %v3291
        %v3293 = vrot.slane %v3292, 2
        %v3294 = vadd.f32 %v3292, %v3293
        %v3295 = vrot.slane %v3294, 1
        %v3296 = vadd.f32 %v3294, %v3295
        %v3297 = vrot.slane %v3123, 4
        %v3298 = vadd.f32 %v3123, %v3297
        %v3299 = vrot.slane %v3298, 2
        %v3300 = vadd.f32 %v3298, %v3299
        %v3301 = vrot.slane %v3300, 1
        %v3302 = vadd.f32 %v3300, %v3301
        %v3303 = vrot.slane %v3126, 4
        %v3304 = vadd.f32 %v3126, %v3303
        %v3305 = vrot.slane %v3304, 2
        %v3306 = vadd.f32 %v3304, %v3305
        %v3307 = vrot.slane %v3306, 1
        %v3308 = vadd.f32 %v3306, %v3307
        %v3309 = vrot.slane %v3131, 4
        %v3310 = vadd.f32 %v3131, %v3309
        %v3311 = vrot.slane %v3310, 2
        %v3312 = vadd.f32 %v3310, %v3311
        %v3313 = vrot.slane %v3312, 1
        %v3314 = vadd.f32 %v3312, %v3313
        %v3315 = vrot.slane %v3134, 4
        %v3316 = vadd.f32 %v3134, %v3315
        %v3317 = vrot.slane %v3316, 2
        %v3318 = vadd.f32 %v3316, %v3317
        %v3319 = vrot.slane %v3318, 1
        %v3320 = vadd.f32 %v3318, %v3319
        %v3321 = vrot.slane %v3139, 4
        %v3322 = vadd.f32 %v3139, %v3321
        %v3323 = vrot.slane %v3322, 2
        %v3324 = vadd.f32 %v3322, %v3323
        %v3325 = vrot.slane %v3324, 1
        %v3326 = vadd.f32 %v3324, %v3325
        %v3327 = vrot.slane %v3142, 4
        %v3328 = vadd.f32 %v3142, %v3327
        %v3329 = vrot.slane %v3328, 2
        %v3330 = vadd.f32 %v3328, %v3329
        %v3331 = vrot.slane %v3330, 1
        %v3332 = vadd.f32 %v3330, %v3331
        %v3333 = vrot.slane %v3147, 4
        %v3334 = vadd.f32 %v3147, %v3333
        %v3335 = vrot.slane %v3334, 2
        %v3336 = vadd.f32 %v3334, %v3335
        %v3337 = vrot.slane %v3336, 1
        %v3338 = vadd.f32 %v3336, %v3337
        %v3339 = vrot.slane %v3150, 4
        %v3340 = vadd.f32 %v3150, %v3339
        %v3341 = vrot.slane %v3340, 2
        %v3342 = vadd.f32 %v3340, %v3341
        %v3343 = vrot.slane %v3342, 1
        %v3344 = vadd.f32 %v3342, %v3343
        %v3345 = vmul.f32 %v3158, 0.125
        %v3346 = vmul.f32 %v3164, 0.125
        %v3347 = vmul.f32 %v3170, 0.125
        %v3348 = vmul.f32 %v3176, 0.125
        %v3349 = vmul.f32 %v3182, 0.125
        %v3350 = vmul.f32 %v3188, 0.125
        %v3351 = vmul.f32 %v3194, 0.125
        %v3352 = vmul.f32 %v3200, 0.125
        %v3353 = vmul.f32 %v3206, 0.125
        %v3354 = vmul.f32 %v3212, 0.125
        %v3355 = vmul.f32 %v3218, 0.125
        %v3356 = vmul.f32 %v3224, 0.125
        %v3357 = vmul.f32 %v3230, 0.125
        %v3358 = vmul.f32 %v3236, 0.125
        %v3359 = vmul.f32 %v3242, 0.125
        %v3360 = vmul.f32 %v3248, 0.125
        %v3361 = vmul.f32 %v3254, 0.125
        %v3362 = vmul.f32 %v3260, 0.125
        %v3363 = vmul.f32 %v3266, 0.125
        %v3364 = vmul.f32 %v3272, 0.125
        %v3365 = vmul.f32 %v3278, 0.125
        %v3366 = vmul.f32 %v3284, 0.125
        %v3367 = vmul.f32 %v3290, 0.125
        %v3368 = vmul.f32 %v3296, 0.125
        %v3369 = vmul.f32 %v3302, 0.125
        %v3370 = vmul.f32 %v3308, 0.125
        %v3371 = vmul.f32 %v3314, 0.125
        %v3372 = vmul.f32 %v3320, 0.125
        %v3373 = vmul.f32 %v3326, 0.125
        %v3374 = vmul.f32 %v3332, 0.125
        %v3375 = vmul.f32 %v3338, 0.125
        %v3376 = vmul.f32 %v3344, 0.125
        %v3377 = vmul.f32 %v3027, %v3027
        %v3378 = vmul.f32 %v3030, %v3030
        %v3379 = vmul.f32 %v3035, %v3035
        %v3380 = vmul.f32 %v3038, %v3038
        %v3381 = vmul.f32 %v3043, %v3043
        %v3382 = vmul.f32 %v3046, %v3046
        %v3383 = vmul.f32 %v3051, %v3051
        %v3384 = vmul.f32 %v3054, %v3054
        %v3385 = vmul.f32 %v3059, %v3059
        %v3386 = vmul.f32 %v3062, %v3062
        %v3387 = vmul.f32 %v3067, %v3067
        %v3388 = vmul.f32 %v3070, %v3070
        %v3389 = vmul.f32 %v3075, %v3075
        %v3390 = vmul.f32 %v3078, %v3078
        %v3391 = vmul.f32 %v3083, %v3083
        %v3392 = vmul.f32 %v3086, %v3086
        %v3393 = vmul.f32 %v3091, %v3091
        %v3394 = vmul.f32 %v3094, %v3094
        %v3395 = vmul.f32 %v3099, %v3099
        %v3396 = vmul.f32 %v3102, %v3102
        %v3397 = vmul.f32 %v3107, %v3107
        %v3398 = vmul.f32 %v3110, %v3110
        %v3399 = vmul.f32 %v3115, %v3115
        %v3400 = vmul.f32 %v3118, %v3118
        %v3401 = vmul.f32 %v3123, %v3123
        %v3402 = vmul.f32 %v3126, %v3126
        %v3403 = vmul.f32 %v3131, %v3131
        %v3404 = vmul.f32 %v3134, %v3134
        %v3405 = vmul.f32 %v3139, %v3139
        %v3406 = vmul.f32 %v3142, %v3142
        %v3407 = vmul.f32 %v3147, %v3147
        %v3408 = vmul.f32 %v3150, %v3150
        %v3409 = vrot.slane %v3377, 4
        %v3410 = vadd.f32 %v3377, %v3409
        %v3411 = vrot.slane %v3410, 2
        %v3412 = vadd.f32 %v3410, %v3411
        %v3413 = vrot.slane %v3412, 1
        %v3414 = vadd.f32 %v3412, %v3413
        %v3415 = vrot.slane %v3378, 4
        %v3416 = vadd.f32 %v3378, %v3415
        %v3417 = vrot.slane %v3416, 2
        %v3418 = vadd.f32 %v3416, %v3417
        %v3419 = vrot.slane %v3418, 1
        %v3420 = vadd.f32 %v3418, %v3419
        %v3421 = vrot.slane %v3379, 4
        %v3422 = vadd.f32 %v3379, %v3421
        %v3423 = vrot.slane %v3422, 2
        %v3424 = vadd.f32 %v3422, %v3423
        %v3425 = vrot.slane %v3424, 1
        %v3426 = vadd.f32 %v3424, %v3425
        %v3427 = vrot.slane %v3380, 4
        %v3428 = vadd.f32 %v3380, %v3427
        %v3429 = vrot.slane %v3428, 2
        %v3430 = vadd.f32 %v3428, %v3429
        %v3431 = vrot.slane %v3430, 1
        %v3432 = vadd.f32 %v3430, %v3431
        %v3433 = vrot.slane %v3381, 4
        %v3434 = vadd.f32 %v3381, %v3433
        %v3435 = vrot.slane %v3434, 2
        %v3436 = vadd.f32 %v3434, %v3435
        %v3437 = vrot.slane %v3436, 1
        %v3438 = vadd.f32 %v3436, %v3437
        %v3439 = vrot.slane %v3382, 4
        %v3440 = vadd.f32 %v3382, %v3439
        %v3441 = vrot.slane %v3440, 2
        %v3442 = vadd.f32 %v3440, %v3441
        %v3443 = vrot.slane %v3442, 1
        %v3444 = vadd.f32 %v3442, %v3443
        %v3445 = vrot.slane %v3383, 4
        %v3446 = vadd.f32 %v3383, %v3445
        %v3447 = vrot.slane %v3446, 2
        %v3448 = vadd.f32 %v3446, %v3447
        %v3449 = vrot.slane %v3448, 1
        %v3450 = vadd.f32 %v3448, %v3449
        %v3451 = vrot.slane %v3384, 4
        %v3452 = vadd.f32 %v3384, %v3451
        %v3453 = vrot.slane %v3452, 2
        %v3454 = vadd.f32 %v3452, %v3453
        %v3455 = vrot.slane %v3454, 1
        %v3456 = vadd.f32 %v3454, %v3455
        %v3457 = vrot.slane %v3385, 4
        %v3458 = vadd.f32 %v3385, %v3457
        %v3459 = vrot.slane %v3458, 2
        %v3460 = vadd.f32 %v3458, %v3459
        %v3461 = vrot.slane %v3460, 1
        %v3462 = vadd.f32 %v3460, %v3461
        %v3463 = vrot.slane %v3386, 4
        %v3464 = vadd.f32 %v3386, %v3463
        %v3465 = vrot.slane %v3464, 2
        %v3466 = vadd.f32 %v3464, %v3465
        %v3467 = vrot.slane %v3466, 1
        %v3468 = vadd.f32 %v3466, %v3467
        %v3469 = vrot.slane %v3387, 4
        %v3470 = vadd.f32 %v3387, %v3469
        %v3471 = vrot.slane %v3470, 2
        %v3472 = vadd.f32 %v3470, %v3471
        %v3473 = vrot.slane %v3472, 1
        %v3474 = vadd.f32 %v3472, %v3473
        %v3475 = vrot.slane %v3388, 4
        %v3476 = vadd.f32 %v3388, %v3475
        %v3477 = vrot.slane %v3476, 2
        %v3478 = vadd.f32 %v3476, %v3477
        %v3479 = vrot.slane %v3478, 1
        %v3480 = vadd.f32 %v3478, %v3479
        %v3481 = vrot.slane %v3389, 4
        %v3482 = vadd.f32 %v3389, %v3481
        %v3483 = vrot.slane %v3482, 2
        %v3484 = vadd.f32 %v3482, %v3483
        %v3485 = vrot.slane %v3484, 1
        %v3486 = vadd.f32 %v3484, %v3485
        %v3487 = vrot.slane %v3390, 4
        %v3488 = vadd.f32 %v3390, %v3487
        %v3489 = vrot.slane %v3488, 2
        %v3490 = vadd.f32 %v3488, %v3489
        %v3491 = vrot.slane %v3490, 1
        %v3492 = vadd.f32 %v3490, %v3491
        %v3493 = vrot.slane %v3391, 4
        %v3494 = vadd.f32 %v3391, %v3493
        %v3495 = vrot.slane %v3494, 2
        %v3496 = vadd.f32 %v3494, %v3495
        %v3497 = vrot.slane %v3496, 1
        %v3498 = vadd.f32 %v3496, %v3497
        %v3499 = vrot.slane %v3392, 4
        %v3500 = vadd.f32 %v3392, %v3499
        %v3501 = vrot.slane %v3500, 2
        %v3502 = vadd.f32 %v3500, %v3501
        %v3503 = vrot.slane %v3502, 1
        %v3504 = vadd.f32 %v3502, %v3503
        %v3505 = vrot.slane %v3393, 4
        %v3506 = vadd.f32 %v3393, %v3505
        %v3507 = vrot.slane %v3506, 2
        %v3508 = vadd.f32 %v3506, %v3507
        %v3509 = vrot.slane %v3508, 1
        %v3510 = vadd.f32 %v3508, %v3509
        %v3511 = vrot.slane %v3394, 4
        %v3512 = vadd.f32 %v3394, %v3511
        %v3513 = vrot.slane %v3512, 2
        %v3514 = vadd.f32 %v3512, %v3513
        %v3515 = vrot.slane %v3514, 1
        %v3516 = vadd.f32 %v3514, %v3515
        %v3517 = vrot.slane %v3395, 4
        %v3518 = vadd.f32 %v3395, %v3517
        %v3519 = vrot.slane %v3518, 2
        %v3520 = vadd.f32 %v3518, %v3519
        %v3521 = vrot.slane %v3520, 1
        %v3522 = vadd.f32 %v3520, %v3521
        %v3523 = vrot.slane %v3396, 4
        %v3524 = vadd.f32 %v3396, %v3523
        %v3525 = vrot.slane %v3524, 2
        %v3526 = vadd.f32 %v3524, %v3525
        %v3527 = vrot.slane %v3526, 1
        %v3528 = vadd.f32 %v3526, %v3527
        %v3529 = vrot.slane %v3397, 4
        %v3530 = vadd.f32 %v3397, %v3529
        %v3531 = vrot.slane %v3530, 2
        %v3532 = vadd.f32 %v3530, %v3531
        %v3533 = vrot.slane %v3532, 1
        %v3534 = vadd.f32 %v3532, %v3533
        %v3535 = vrot.slane %v3398, 4
        %v3536 = vadd.f32 %v3398, %v3535
        %v3537 = vrot.slane %v3536, 2
        %v3538 = vadd.f32 %v3536, %v3537
        %v3539 = vrot.slane %v3538, 1
        %v3540 = vadd.f32 %v3538, %v3539
        %v3541 = vrot.slane %v3399, 4
        %v3542 = vadd.f32 %v3399, %v3541
        %v3543 = vrot.slane %v3542, 2
        %v3544 = vadd.f32 %v3542, %v3543
        %v3545 = vrot.slane %v3544, 1
        %v3546 = vadd.f32 %v3544, %v3545
        %v3547 = vrot.slane %v3400, 4
        %v3548 = vadd.f32 %v3400, %v3547
        %v3549 = vrot.slane %v3548, 2
        %v3550 = vadd.f32 %v3548, %v3549
        %v3551 = vrot.slane %v3550, 1
        %v3552 = vadd.f32 %v3550, %v3551
        %v3553 = vrot.slane %v3401, 4
        %v3554 = vadd.f32 %v3401, %v3553
        %v3555 = vrot.slane %v3554, 2
        %v3556 = vadd.f32 %v3554, %v3555
        %v3557 = vrot.slane %v3556, 1
        %v3558 = vadd.f32 %v3556, %v3557
        %v3559 = vrot.slane %v3402, 4
        %v3560 = vadd.f32 %v3402, %v3559
        %v3561 = vrot.slane %v3560, 2
        %v3562 = vadd.f32 %v3560, %v3561
        %v3563 = vrot.slane %v3562, 1
        %v3564 = vadd.f32 %v3562, %v3563
        %v3565 = vrot.slane %v3403, 4
        %v3566 = vadd.f32 %v3403, %v3565
        %v3567 = vrot.slane %v3566, 2
        %v3568 = vadd.f32 %v3566, %v3567
        %v3569 = vrot.slane %v3568, 1
        %v3570 = vadd.f32 %v3568, %v3569
        %v3571 = vrot.slane %v3404, 4
        %v3572 = vadd.f32 %v3404, %v3571
        %v3573 = vrot.slane %v3572, 2
        %v3574 = vadd.f32 %v3572, %v3573
        %v3575 = vrot.slane %v3574, 1
        %v3576 = vadd.f32 %v3574, %v3575
        %v3577 = vrot.slane %v3405, 4
        %v3578 = vadd.f32 %v3405, %v3577
        %v3579 = vrot.slane %v3578, 2
        %v3580 = vadd.f32 %v3578, %v3579
        %v3581 = vrot.slane %v3580, 1
        %v3582 = vadd.f32 %v3580, %v3581
        %v3583 = vrot.slane %v3406, 4
        %v3584 = vadd.f32 %v3406, %v3583
        %v3585 = vrot.slane %v3584, 2
        %v3586 = vadd.f32 %v3584, %v3585
        %v3587 = vrot.slane %v3586, 1
        %v3588 = vadd.f32 %v3586, %v3587
        %v3589 = vrot.slane %v3407, 4
        %v3590 = vadd.f32 %v3407, %v3589
        %v3591 = vrot.slane %v3590, 2
        %v3592 = vadd.f32 %v3590, %v3591
        %v3593 = vrot.slane %v3592, 1
        %v3594 = vadd.f32 %v3592, %v3593
        %v3595 = vrot.slane %v3408, 4
        %v3596 = vadd.f32 %v3408, %v3595
        %v3597 = vrot.slane %v3596, 2
        %v3598 = vadd.f32 %v3596, %v3597
        %v3599 = vrot.slane %v3598, 1
        %v3600 = vadd.f32 %v3598, %v3599
        %v3601 = vmul.f32 %v3414, 0.125
        %v3602 = vmul.f32 %v3420, 0.125
        %v3603 = vmul.f32 %v3426, 0.125
        %v3604 = vmul.f32 %v3432, 0.125
        %v3605 = vmul.f32 %v3438, 0.125
        %v3606 = vmul.f32 %v3444, 0.125
        %v3607 = vmul.f32 %v3450, 0.125
        %v3608 = vmul.f32 %v3456, 0.125
        %v3609 = vmul.f32 %v3462, 0.125
        %v3610 = vmul.f32 %v3468, 0.125
        %v3611 = vmul.f32 %v3474, 0.125
        %v3612 = vmul.f32 %v3480, 0.125
        %v3613 = vmul.f32 %v3486, 0.125
        %v3614 = vmul.f32 %v3492, 0.125
        %v3615 = vmul.f32 %v3498, 0.125
        %v3616 = vmul.f32 %v3504, 0.125
        %v3617 = vmul.f32 %v3510, 0.125
        %v3618 = vmul.f32 %v3516, 0.125
        %v3619 = vmul.f32 %v3522, 0.125
        %v3620 = vmul.f32 %v3528, 0.125
        %v3621 = vmul.f32 %v3534, 0.125
        %v3622 = vmul.f32 %v3540, 0.125
        %v3623 = vmul.f32 %v3546, 0.125
        %v3624 = vmul.f32 %v3552, 0.125
        %v3625 = vmul.f32 %v3558, 0.125
        %v3626 = vmul.f32 %v3564, 0.125
        %v3627 = vmul.f32 %v3570, 0.125
        %v3628 = vmul.f32 %v3576, 0.125
        %v3629 = vmul.f32 %v3582, 0.125
        %v3630 = vmul.f32 %v3588, 0.125
        %v3631 = vmul.f32 %v3594, 0.125
        %v3632 = vmul.f32 %v3600, 0.125
        %v3633 = vmul.f32 %v3345, %v3345
        %v3634 = vmul.f32 %v3346, %v3346
        %v3635 = vmul.f32 %v3347, %v3347
        %v3636 = vmul.f32 %v3348, %v3348
        %v3637 = vmul.f32 %v3349, %v3349
        %v3638 = vmul.f32 %v3350, %v3350
        %v3639 = vmul.f32 %v3351, %v3351
        %v3640 = vmul.f32 %v3352, %v3352
        %v3641 = vmul.f32 %v3353, %v3353
        %v3642 = vmul.f32 %v3354, %v3354
        %v3643 = vmul.f32 %v3355, %v3355
        %v3644 = vmul.f32 %v3356, %v3356
        %v3645 = vmul.f32 %v3357, %v3357
        %v3646 = vmul.f32 %v3358, %v3358
        %v3647 = vmul.f32 %v3359, %v3359
        %v3648 = vmul.f32 %v3360, %v3360
        %v3649 = vmul.f32 %v3361, %v3361
        %v3650 = vmul.f32 %v3362, %v3362
        %v3651 = vmul.f32 %v3363, %v3363
        %v3652 = vmul.f32 %v3364, %v3364
        %v3653 = vmul.f32 %v3365, %v3365
        %v3654 = vmul.f32 %v3366, %v3366
        %v3655 = vmul.f32 %v3367, %v3367
        %v3656 = vmul.f32 %v3368, %v3368
        %v3657 = vmul.f32 %v3369, %v3369
        %v3658 = vmul.f32 %v3370, %v3370
        %v3659 = vmul.f32 %v3371, %v3371
        %v3660 = vmul.f32 %v3372, %v3372
        %v3661 = vmul.f32 %v3373, %v3373
        %v3662 = vmul.f32 %v3374, %v3374
        %v3663 = vmul.f32 %v3375, %v3375
        %v3664 = vmul.f32 %v3376, %v3376
        %v3665 = vsub.f32 %v3601, %v3633
        %v3666 = vsub.f32 %v3602, %v3634
        %v3667 = vsub.f32 %v3603, %v3635
        %v3668 = vsub.f32 %v3604, %v3636
        %v3669 = vsub.f32 %v3605, %v3637
        %v3670 = vsub.f32 %v3606, %v3638
        %v3671 = vsub.f32 %v3607, %v3639
        %v3672 = vsub.f32 %v3608, %v3640
        %v3673 = vsub.f32 %v3609, %v3641
        %v3674 = vsub.f32 %v3610, %v3642
        %v3675 = vsub.f32 %v3611, %v3643
        %v3676 = vsub.f32 %v3612, %v3644
        %v3677 = vsub.f32 %v3613, %v3645
        %v3678 = vsub.f32 %v3614, %v3646
        %v3679 = vsub.f32 %v3615, %v3647
        %v3680 = vsub.f32 %v3616, %v3648
        %v3681 = vsub.f32 %v3617, %v3649
        %v3682 = vsub.f32 %v3618, %v3650
        %v3683 = vsub.f32 %v3619, %v3651
        %v3684 = vsub.f32 %v3620, %v3652
        %v3685 = vsub.f32 %v3621, %v3653
        %v3686 = vsub.f32 %v3622, %v3654
        %v3687 = vsub.f32 %v3623, %v3655
        %v3688 = vsub.f32 %v3624, %v3656
        %v3689 = vsub.f32 %v3625, %v3657
        %v3690 = vsub.f32 %v3626, %v3658
        %v3691 = vsub.f32 %v3627, %v3659
        %v3692 = vsub.f32 %v3628, %v3660
        %v3693 = vsub.f32 %v3629, %v3661
        %v3694 = vsub.f32 %v3630, %v3662
        %v3695 = vsub.f32 %v3631, %v3663
        %v3696 = vsub.f32 %v3632, %v3664
        %v3697 = vmax.f32 %v3665, 0.0
        %v3698 = vmax.f32 %v3666, 0.0
        %v3699 = vmax.f32 %v3667, 0.0
        %v3700 = vmax.f32 %v3668, 0.0
        %v3701 = vmax.f32 %v3669, 0.0
        %v3702 = vmax.f32 %v3670, 0.0
        %v3703 = vmax.f32 %v3671, 0.0
        %v3704 = vmax.f32 %v3672, 0.0
        %v3705 = vmax.f32 %v3673, 0.0
        %v3706 = vmax.f32 %v3674, 0.0
        %v3707 = vmax.f32 %v3675, 0.0
        %v3708 = vmax.f32 %v3676, 0.0
        %v3709 = vmax.f32 %v3677, 0.0
        %v3710 = vmax.f32 %v3678, 0.0
        %v3711 = vmax.f32 %v3679, 0.0
        %v3712 = vmax.f32 %v3680, 0.0
        %v3713 = vmax.f32 %v3681, 0.0
        %v3714 = vmax.f32 %v3682, 0.0
        %v3715 = vmax.f32 %v3683, 0.0
        %v3716 = vmax.f32 %v3684, 0.0
        %v3717 = vmax.f32 %v3685, 0.0
        %v3718 = vmax.f32 %v3686, 0.0
        %v3719 = vmax.f32 %v3687, 0.0
        %v3720 = vmax.f32 %v3688, 0.0
        %v3721 = vmax.f32 %v3689, 0.0
        %v3722 = vmax.f32 %v3690, 0.0
        %v3723 = vmax.f32 %v3691, 0.0
        %v3724 = vmax.f32 %v3692, 0.0
        %v3725 = vmax.f32 %v3693, 0.0
        %v3726 = vmax.f32 %v3694, 0.0
        %v3727 = vmax.f32 %v3695, 0.0
        %v3728 = vmax.f32 %v3696, 0.0
        %v3729 = vadd.f32 %v3697, 1e-05
        %v3730 = vadd.f32 %v3698, 1e-05
        %v3731 = vadd.f32 %v3699, 1e-05
        %v3732 = vadd.f32 %v3700, 1e-05
        %v3733 = vadd.f32 %v3701, 1e-05
        %v3734 = vadd.f32 %v3702, 1e-05
        %v3735 = vadd.f32 %v3703, 1e-05
        %v3736 = vadd.f32 %v3704, 1e-05
        %v3737 = vadd.f32 %v3705, 1e-05
        %v3738 = vadd.f32 %v3706, 1e-05
        %v3739 = vadd.f32 %v3707, 1e-05
        %v3740 = vadd.f32 %v3708, 1e-05
        %v3741 = vadd.f32 %v3709, 1e-05
        %v3742 = vadd.f32 %v3710, 1e-05
        %v3743 = vadd.f32 %v3711, 1e-05
        %v3744 = vadd.f32 %v3712, 1e-05
        %v3745 = vadd.f32 %v3713, 1e-05
        %v3746 = vadd.f32 %v3714, 1e-05
        %v3747 = vadd.f32 %v3715, 1e-05
        %v3748 = vadd.f32 %v3716, 1e-05
        %v3749 = vadd.f32 %v3717, 1e-05
        %v3750 = vadd.f32 %v3718, 1e-05
        %v3751 = vadd.f32 %v3719, 1e-05
        %v3752 = vadd.f32 %v3720, 1e-05
        %v3753 = vadd.f32 %v3721, 1e-05
        %v3754 = vadd.f32 %v3722, 1e-05
        %v3755 = vadd.f32 %v3723, 1e-05
        %v3756 = vadd.f32 %v3724, 1e-05
        %v3757 = vadd.f32 %v3725, 1e-05
        %v3758 = vadd.f32 %v3726, 1e-05
        %v3759 = vadd.f32 %v3727, 1e-05
        %v3760 = vadd.f32 %v3728, 1e-05
        %v3761 = vrsqrt.pop %v3729
        %v3762 = vrsqrt.pop %v3730
        %v3763 = vrsqrt.pop %v3731
        %v3764 = vrsqrt.pop %v3732
        %v3765 = vrsqrt.pop %v3733
        %v3766 = vrsqrt.pop %v3734
        %v3767 = vrsqrt.pop %v3735
        %v3768 = vrsqrt.pop %v3736
        %v3769 = vrsqrt.pop %v3737
        %v3770 = vrsqrt.pop %v3738
        %v3771 = vrsqrt.pop %v3739
        %v3772 = vrsqrt.pop %v3740
        %v3773 = vrsqrt.pop %v3741
        %v3774 = vrsqrt.pop %v3742
        %v3775 = vrsqrt.pop %v3743
        %v3776 = vrsqrt.pop %v3744
        %v3777 = vrsqrt.pop %v3745
        %v3778 = vrsqrt.pop %v3746
        %v3779 = vrsqrt.pop %v3747
        %v3780 = vrsqrt.pop %v3748
        %v3781 = vrsqrt.pop %v3749
        %v3782 = vrsqrt.pop %v3750
        %v3783 = vrsqrt.pop %v3751
        %v3784 = vrsqrt.pop %v3752
        %v3785 = vrsqrt.pop %v3753
        %v3786 = vrsqrt.pop %v3754
        %v3787 = vrsqrt.pop %v3755
        %v3788 = vrsqrt.pop %v3756
        %v3789 = vrsqrt.pop %v3757
        %v3790 = vrsqrt.pop %v3758
        %v3791 = vrsqrt.pop %v3759
        %v3792 = vrsqrt.pop %v3760
        %v3793 = vmul.f32 %v547, %v3761
        %v3794 = vmul.f32 %v547, %v3762
        %v3795 = vmul.f32 %v547, %v3763
        %v3796 = vmul.f32 %v547, %v3764
        %v3797 = vmul.f32 %v547, %v3765
        %v3798 = vmul.f32 %v547, %v3766
        %v3799 = vmul.f32 %v547, %v3767
        %v3800 = vmul.f32 %v547, %v3768
        %v3801 = vmul.f32 %v547, %v3769
        %v3802 = vmul.f32 %v547, %v3770
        %v3803 = vmul.f32 %v547, %v3771
        %v3804 = vmul.f32 %v547, %v3772
        %v3805 = vmul.f32 %v547, %v3773
        %v3806 = vmul.f32 %v547, %v3774
        %v3807 = vmul.f32 %v547, %v3775
        %v3808 = vmul.f32 %v547, %v3776
        %v3809 = vmul.f32 %v547, %v3777
        %v3810 = vmul.f32 %v547, %v3778
        %v3811 = vmul.f32 %v547, %v3779
        %v3812 = vmul.f32 %v547, %v3780
        %v3813 = vmul.f32 %v547, %v3781
        %v3814 = vmul.f32 %v547, %v3782
        %v3815 = vmul.f32 %v547, %v3783
        %v3816 = vmul.f32 %v547, %v3784
        %v3817 = vmul.f32 %v547, %v3785
        %v3818 = vmul.f32 %v547, %v3786
        %v3819 = vmul.f32 %v547, %v3787
        %v3820 = vmul.f32 %v547, %v3788
        %v3821 = vmul.f32 %v547, %v3789
        %v3822 = vmul.f32 %v547, %v3790
        %v3823 = vmul.f32 %v547, %v3791
        %v3824 = vmul.f32 %v547, %v3792
        %v3825 = vsub.f32 %v3027, %v3345
        %v3826 = vsub.f32 %v3030, %v3346
        %v3827 = vsub.f32 %v3035, %v3347
        %v3828 = vsub.f32 %v3038, %v3348
        %v3829 = vsub.f32 %v3043, %v3349
        %v3830 = vsub.f32 %v3046, %v3350
        %v3831 = vsub.f32 %v3051, %v3351
        %v3832 = vsub.f32 %v3054, %v3352
        %v3833 = vsub.f32 %v3059, %v3353
        %v3834 = vsub.f32 %v3062, %v3354
        %v3835 = vsub.f32 %v3067, %v3355
        %v3836 = vsub.f32 %v3070, %v3356
        %v3837 = vsub.f32 %v3075, %v3357
        %v3838 = vsub.f32 %v3078, %v3358
        %v3839 = vsub.f32 %v3083, %v3359
        %v3840 = vsub.f32 %v3086, %v3360
        %v3841 = vsub.f32 %v3091, %v3361
        %v3842 = vsub.f32 %v3094, %v3362
        %v3843 = vsub.f32 %v3099, %v3363
        %v3844 = vsub.f32 %v3102, %v3364
        %v3845 = vsub.f32 %v3107, %v3365
        %v3846 = vsub.f32 %v3110, %v3366
        %v3847 = vsub.f32 %v3115, %v3367
        %v3848 = vsub.f32 %v3118, %v3368
        %v3849 = vsub.f32 %v3123, %v3369
        %v3850 = vsub.f32 %v3126, %v3370
        %v3851 = vsub.f32 %v3131, %v3371
        %v3852 = vsub.f32 %v3134, %v3372
        %v3853 = vsub.f32 %v3139, %v3373
        %v3854 = vsub.f32 %v3142, %v3374
        %v3855 = vsub.f32 %v3147, %v3375
        %v3856 = vsub.f32 %v3150, %v3376
        %v3857 = vlaneseq
        %v3858 = vshrl.u32 %v3857, 7
        %v3859 = vsub.s32 2, %v3858
        %v3860 = vrot.slane %v3793, %v3859
        %v3861 = vlaneseq
        %v3862 = vshrl.u32 %v3861, 7
        %v3863 = vsub.s32 2, %v3862
        %v3864 = vrot.slane %v3794, %v3863
        %v3865 = vlaneseq
        %v3866 = vshrl.u32 %v3865, 7
        %v3867 = vsub.s32 2, %v3866
        %v3868 = vrot.slane %v3795, %v3867
        %v3869 = vlaneseq
        %v3870 = vshrl.u32 %v3869, 7
        %v3871 = vsub.s32 2, %v3870
        %v3872 = vrot.slane %v3796, %v3871
        %v3873 = vlaneseq
        %v3874 = vshrl.u32 %v3873, 7
        %v3875 = vsub.s32 2, %v3874
        %v3876 = vrot.slane %v3797, %v3875
        %v3877 = vlaneseq
        %v3878 = vshrl.u32 %v3877, 7
        %v3879 = vsub.s32 2, %v3878
        %v3880 = vrot.slane %v3798, %v3879
        %v3881 = vlaneseq
        %v3882 = vshrl.u32 %v3881, 7
        %v3883 = vsub.s32 2, %v3882
        %v3884 = vrot.slane %v3799, %v3883
        %v3885 = vlaneseq
        %v3886 = vshrl.u32 %v3885, 7
        %v3887 = vsub.s32 2, %v3886
        %v3888 = vrot.slane %v3800, %v3887
        %v3889 = vlaneseq
        %v3890 = vshrl.u32 %v3889, 7
        %v3891 = vsub.s32 2, %v3890
        %v3892 = vrot.slane %v3801, %v3891
        %v3893 = vlaneseq
        %v3894 = vshrl.u32 %v3893, 7
        %v3895 = vsub.s32 2, %v3894
        %v3896 = vrot.slane %v3802, %v3895
        %v3897 = vlaneseq
        %v3898 = vshrl.u32 %v3897, 7
        %v3899 = vsub.s32 2, %v3898
        %v3900 = vrot.slane %v3803, %v3899
        %v3901 = vlaneseq
        %v3902 = vshrl.u32 %v3901, 7
        %v3903 = vsub.s32 2, %v3902
        %v3904 = vrot.slane %v3804, %v3903
        %v3905 = vlaneseq
        %v3906 = vshrl.u32 %v3905, 7
        %v3907 = vsub.s32 2, %v3906
        %v3908 = vrot.slane %v3805, %v3907
        %v3909 = vlaneseq
        %v3910 = vshrl.u32 %v3909, 7
        %v3911 = vsub.s32 2, %v3910
        %v3912 = vrot.slane %v3806, %v3911
        %v3913 = vlaneseq
        %v3914 = vshrl.u32 %v3913, 7
        %v3915 = vsub.s32 2, %v3914
        %v3916 = vrot.slane %v3807, %v3915
        %v3917 = vlaneseq
        %v3918 = vshrl.u32 %v3917, 7
        %v3919 = vsub.s32 2, %v3918
        %v3920 = vrot.slane %v3808, %v3919
        %v3921 = vlaneseq
        %v3922 = vshrl.u32 %v3921, 7
        %v3923 = vsub.s32 2, %v3922
        %v3924 = vrot.slane %v3809, %v3923
        %v3925 = vlaneseq
        %v3926 = vshrl.u32 %v3925, 7
        %v3927 = vsub.s32 2, %v3926
        %v3928 = vrot.slane %v3810, %v3927
        %v3929 = vlaneseq
        %v3930 = vshrl.u32 %v3929, 7
        %v3931 = vsub.s32 2, %v3930
        %v3932 = vrot.slane %v3811, %v3931
        %v3933 = vlaneseq
        %v3934 = vshrl.u32 %v3933, 7
        %v3935 = vsub.s32 2, %v3934
        %v3936 = vrot.slane %v3812, %v3935
        %v3937 = vlaneseq
        %v3938 = vshrl.u32 %v3937, 7
        %v3939 = vsub.s32 2, %v3938
        %v3940 = vrot.slane %v3813, %v3939
        %v3941 = vlaneseq
        %v3942 = vshrl.u32 %v3941, 7
        %v3943 = vsub.s32 2, %v3942
        %v3944 = vrot.slane %v3814, %v3943
        %v3945 = vlaneseq
        %v3946 = vshrl.u32 %v3945, 7
        %v3947 = vsub.s32 2, %v3946
        %v3948 = vrot.slane %v3815, %v3947
        %v3949 = vlaneseq
        %v3950 = vshrl.u32 %v3949, 7
        %v3951 = vsub.s32 2, %v3950
        %v3952 = vrot.slane %v3816, %v3951
        %v3953 = vlaneseq
        %v3954 = vshrl.u32 %v3953, 7
        %v3955 = vsub.s32 2, %v3954
        %v3956 = vrot.slane %v3817, %v3955
        %v3957 = vlaneseq
        %v3958 = vshrl.u32 %v3957, 7
        %v3959 = vsub.s32 2, %v3958
        %v3960 = vrot.slane %v3818, %v3959
        %v3961 = vlaneseq
        %v3962 = vshrl.u32 %v3961, 7
        %v3963 = vsub.s32 2, %v3962
        %v3964 = vrot.slane %v3819, %v3963
        %v3965 = vlaneseq
        %v3966 = vshrl.u32 %v3965, 7
        %v3967 = vsub.s32 2, %v3966
        %v3968 = vrot.slane %v3820, %v3967
        %v3969 = vlaneseq
        %v3970 = vshrl.u32 %v3969, 7
        %v3971 = vsub.s32 2, %v3970
        %v3972 = vrot.slane %v3821, %v3971
        %v3973 = vlaneseq
        %v3974 = vshrl.u32 %v3973, 7
        %v3975 = vsub.s32 2, %v3974
        %v3976 = vrot.slane %v3822, %v3975
        %v3977 = vlaneseq
        %v3978 = vshrl.u32 %v3977, 7
        %v3979 = vsub.s32 2, %v3978
        %v3980 = vrot.slane %v3823, %v3979
        %v3981 = vlaneseq
        %v3982 = vshrl.u32 %v3981, 7
        %v3983 = vsub.s32 2, %v3982
        %v3984 = vrot.slane %v3824, %v3983
        %v3985 = vmul.f32 %v3825, %v3860
        %v3986 = vmul.f32 %v3826, %v3864
        %v3987 = vmul.f32 %v3827, %v3868
        %v3988 = vmul.f32 %v3828, %v3872
        %v3989 = vmul.f32 %v3829, %v3876
        %v3990 = vmul.f32 %v3830, %v3880
        %v3991 = vmul.f32 %v3831, %v3884
        %v3992 = vmul.f32 %v3832, %v3888
        %v3993 = vmul.f32 %v3833, %v3892
        %v3994 = vmul.f32 %v3834, %v3896
        %v3995 = vmul.f32 %v3835, %v3900
        %v3996 = vmul.f32 %v3836, %v3904
        %v3997 = vmul.f32 %v3837, %v3908
        %v3998 = vmul.f32 %v3838, %v3912
        %v3999 = vmul.f32 %v3839, %v3916
        %v4000 = vmul.f32 %v3840, %v3920
        %v4001 = vmul.f32 %v3841, %v3924
        %v4002 = vmul.f32 %v3842, %v3928
        %v4003 = vmul.f32 %v3843, %v3932
        %v4004 = vmul.f32 %v3844, %v3936
        %v4005 = vmul.f32 %v3845, %v3940
        %v4006 = vmul.f32 %v3846, %v3944
        %v4007 = vmul.f32 %v3847, %v3948
        %v4008 = vmul.f32 %v3848, %v3952
        %v4009 = vmul.f32 %v3849, %v3956
        %v4010 = vmul.f32 %v3850, %v3960
        %v4011 = vmul.f32 %v3851, %v3964
        %v4012 = vmul.f32 %v3852, %v3968
        %v4013 = vmul.f32 %v3853, %v3972
        %v4014 = vmul.f32 %v3854, %v3976
        %v4015 = vmul.f32 %v3855, %v3980
        %v4016 = vmul.f32 %v3856, %v3984
        %v4017 = vlaneseq
        %v4018 = vshrl.u32 %v4017, 7
        %v4019 = vsub.s32 3, %v4018
        %v4020 = vrot.slane %v547, %v4019
        %v4021 = vadd.f32 %v3985, %v4020
        %v4022 = vadd.f32 %v3986, %v4020
        %v4023 = vadd.f32 %v3987, %v4020
        %v4024 = vadd.f32 %v3988, %v4020
        %v4025 = vadd.f32 %v3989, %v4020
        %v4026 = vadd.f32 %v3990, %v4020
        %v4027 = vadd.f32 %v3991, %v4020
        %v4028 = vadd.f32 %v3992, %v4020
        %v4029 = vadd.f32 %v3993, %v4020
        %v4030 = vadd.f32 %v3994, %v4020
        %v4031 = vadd.f32 %v3995, %v4020
        %v4032 = vadd.f32 %v3996, %v4020
        %v4033 = vadd.f32 %v3997, %v4020
        %v4034 = vadd.f32 %v3998, %v4020
        %v4035 = vadd.f32 %v3999, %v4020
        %v4036 = vadd.f32 %v4000, %v4020
        %v4037 = vadd.f32 %v4001, %v4020
        %v4038 = vadd.f32 %v4002, %v4020
        %v4039 = vadd.f32 %v4003, %v4020
        %v4040 = vadd.f32 %v4004, %v4020
        %v4041 = vadd.f32 %v4005, %v4020
        %v4042 = vadd.f32 %v4006, %v4020
        %v4043 = vadd.f32 %v4007, %v4020
        %v4044 = vadd.f32 %v4008, %v4020
        %v4045 = vadd.f32 %v4009, %v4020
        %v4046 = vadd.f32 %v4010, %v4020
        %v4047 = vadd.f32 %v4011, %v4020
        %v4048 = vadd.f32 %v4012, %v4020
        %v4049 = vadd.f32 %v4013, %v4020
        %v4050 = vadd.f32 %v4014, %v4020
        %v4051 = vadd.f32 %v4015, %v4020
        %v4052 = vadd.f32 %v4016, %v4020
        %v4053 = vmax.f32 %v4021, 0.0
        %v4054 = vmax.f32 %v4022, 0.0
        %v4055 = vmax.f32 %v4023, 0.0
        %v4056 = vmax.f32 %v4024, 0.0
        %v4057 = vmax.f32 %v4025, 0.0
        %v4058 = vmax.f32 %v4026, 0.0
        %v4059 = vmax.f32 %v4027, 0.0
        %v4060 = vmax.f32 %v4028, 0.0
        %v4061 = vmax.f32 %v4029, 0.0
        %v4062 = vmax.f32 %v4030, 0.0
        %v4063 = vmax.f32 %v4031, 0.0
        %v4064 = vmax.f32 %v4032, 0.0
        %v4065 = vmax.f32 %v4033, 0.0
        %v4066 = vmax.f32 %v4034, 0.0
        %v4067 = vmax.f32 %v4035, 0.0
        %v4068 = vmax.f32 %v4036, 0.0
        %v4069 = vmax.f32 %v4037, 0.0
        %v4070 = vmax.f32 %v4038, 0.0
        %v4071 = vmax.f32 %v4039, 0.0
        %v4072 = vmax.f32 %v4040, 0.0
        %v4073 = vmax.f32 %v4041, 0.0
        %v4074 = vmax.f32 %v4042, 0.0
        %v4075 = vmax.f32 %v4043, 0.0
        %v4076 = vmax.f32 %v4044, 0.0
        %v4077 = vmax.f32 %v4045, 0.0
        %v4078 = vmax.f32 %v4046, 0.0
        %v4079 = vmax.f32 %v4047, 0.0
        %v4080 = vmax.f32 %v4048, 0.0
        %v4081 = vmax.f32 %v4049, 0.0
        %v4082 = vmax.f32 %v4050, 0.0
        %v4083 = vmax.f32 %v4051, 0.0
        %v4084 = vmax.f32 %v4052, 0.0
        %v4085 = vld [vmem:[%s471] sm:$0xf]
        %v4086 = vld [vmem:[%s471 + $0x4] sm:$0xf]
        %v4087 = vld [vmem:[%s471 + $0x8] sm:$0xf]
        %v4088 = vld [vmem:[%s471 + $0xc] sm:$0xf]
        %v4089 = vld [vmem:[%s471 + $0x10] sm:$0xf]
        %v4090 = vld [vmem:[%s471 + $0x14] sm:$0xf]
        %v4091 = vld [vmem:[%s471 + $0x18] sm:$0xf]
        %v4092 = vld [vmem:[%s471 + $0x1c] sm:$0xf]
        %v4093 = vld [vmem:[%s471 + $0x20] sm:$0xf]
        %v4094 = vld [vmem:[%s471 + $0x24] sm:$0xf]
        %v4095 = vld [vmem:[%s471 + $0x28] sm:$0xf]
        %v4096 = vld [vmem:[%s471 + $0x2c] sm:$0xf]
        %v4097 = vld [vmem:[%s471 + $0x30] sm:$0xf]
        %v4098 = vld [vmem:[%s471 + $0x34] sm:$0xf]
        %v4099 = vld [vmem:[%s471 + $0x38] sm:$0xf]
        %v4100 = vld [vmem:[%s471 + $0x3c] sm:$0xf]
        %v4101 = vld [vmem:[%s471 + $0x40] sm:$0xf]
        %v4102 = vld [vmem:[%s471 + $0x44] sm:$0xf]
        %v4103 = vld [vmem:[%s471 + $0x48] sm:$0xf]
        %v4104 = vld [vmem:[%s471 + $0x4c] sm:$0xf]
        %v4105 = vld [vmem:[%s471 + $0x50] sm:$0xf]
        %v4106 = vld [vmem:[%s471 + $0x54] sm:$0xf]
        %v4107 = vld [vmem:[%s471 + $0x58] sm:$0xf]
        %v4108 = vld [vmem:[%s471 + $0x5c] sm:$0xf]
        %v4109 = vld [vmem:[%s471 + $0x60] sm:$0xf]
        %v4110 = vld [vmem:[%s471 + $0x64] sm:$0xf]
        %v4111 = vld [vmem:[%s471 + $0x68] sm:$0xf]
        %v4112 = vld [vmem:[%s471 + $0x6c] sm:$0xf]
        %v4113 = vld [vmem:[%s471 + $0x70] sm:$0xf]
        %v4114 = vld [vmem:[%s471 + $0x74] sm:$0xf]
        %v4115 = vld [vmem:[%s471 + $0x78] sm:$0xf]
        %v4116 = vld [vmem:[%s471 + $0x7c] sm:$0xf]
        %v4117 = vld [vmem:[#allocation11] sm:$0xf]
        %v4118 = vld [vmem:[#allocation11 + $0x4] sm:$0xf]
        %v4119 = vld [vmem:[#allocation11 + $0x8] sm:$0xf]
        %v4120 = vld [vmem:[#allocation11 + $0xc] sm:$0xf]
        %v4121 = vld [vmem:[#allocation11 + $0x10] sm:$0xf]
        %v4122 = vld [vmem:[#allocation11 + $0x14] sm:$0xf]
        %v4123 = vld [vmem:[#allocation11 + $0x18] sm:$0xf]
        %v4124 = vld [vmem:[#allocation11 + $0x1c] sm:$0xf]
        %v4125 = vld [vmem:[#allocation11 + $0x20] sm:$0xf]
        %v4126 = vld [vmem:[#allocation11 + $0x24] sm:$0xf]
        %v4127 = vld [vmem:[#allocation11 + $0x28] sm:$0xf]
        %v4128 = vld [vmem:[#allocation11 + $0x2c] sm:$0xf]
        %v4129 = vld [vmem:[#allocation11 + $0x30] sm:$0xf]
        %v4130 = vld [vmem:[#allocation11 + $0x34] sm:$0xf]
        %v4131 = vld [vmem:[#allocation11 + $0x38] sm:$0xf]
        %v4132 = vld [vmem:[#allocation11 + $0x3c] sm:$0xf]
        %v4133 = vlaneseq
        %v4134 = vshrl.u32 %v4133, 7
        %v4135 = vsub.s32 6, %v4134
        %v4136 = vrot.slane %v547, %v4135
        %v4169 = vunpack.c.l.b16 %v4085
        %v4170 = vunpack.c.l.b16 %v4086
        %v4171 = vunpack.c.l.b16 %v4087
        %v4172 = vunpack.c.l.b16 %v4088
        %v4173 = vunpack.c.l.b16 %v4089
        %v4174 = vunpack.c.l.b16 %v4090
        %v4175 = vunpack.c.l.b16 %v4091
        %v4176 = vunpack.c.l.b16 %v4092
        %v4177 = vunpack.c.l.b16 %v4093
        %v4178 = vunpack.c.l.b16 %v4094
        %v4179 = vunpack.c.l.b16 %v4095
        %v4180 = vunpack.c.l.b16 %v4096
        %v4181 = vunpack.c.l.b16 %v4097
        %v4182 = vunpack.c.l.b16 %v4098
        %v4183 = vunpack.c.l.b16 %v4099
        %v4184 = vunpack.c.l.b16 %v4100
        %v4185 = vunpack.c.l.b16 %v4101
        %v4186 = vunpack.c.l.b16 %v4102
        %v4187 = vunpack.c.l.b16 %v4103
        %v4188 = vunpack.c.l.b16 %v4104
        %v4189 = vunpack.c.l.b16 %v4105
        %v4190 = vunpack.c.l.b16 %v4106
        %v4191 = vunpack.c.l.b16 %v4107
        %v4192 = vunpack.c.l.b16 %v4108
        %v4193 = vunpack.c.l.b16 %v4109
        %v4194 = vunpack.c.l.b16 %v4110
        %v4195 = vunpack.c.l.b16 %v4111
        %v4196 = vunpack.c.l.b16 %v4112
        %v4197 = vunpack.c.l.b16 %v4113
        %v4198 = vunpack.c.l.b16 %v4114
        %v4199 = vunpack.c.l.b16 %v4115
        %v4200 = vunpack.c.l.b16 %v4116
        %v4201 = vpack.c.b16 %v4170, %v4169
        %v4202 = vpack.c.b16 %v4172, %v4171
        %v4203 = vpack.c.b16 %v4174, %v4173
        %v4204 = vpack.c.b16 %v4176, %v4175
        %v4205 = vpack.c.b16 %v4178, %v4177
        %v4206 = vpack.c.b16 %v4180, %v4179
        %v4207 = vpack.c.b16 %v4182, %v4181
        %v4208 = vpack.c.b16 %v4184, %v4183
        %v4209 = vpack.c.b16 %v4186, %v4185
        %v4210 = vpack.c.b16 %v4188, %v4187
        %v4211 = vpack.c.b16 %v4190, %v4189
        %v4212 = vpack.c.b16 %v4192, %v4191
        %v4213 = vpack.c.b16 %v4194, %v4193
        %v4214 = vpack.c.b16 %v4196, %v4195
        %v4215 = vpack.c.b16 %v4198, %v4197
        %v4216 = vpack.c.b16 %v4200, %v4199
        %v4249 = vunpack.c.l.b16 %v4117
        %v4250 = vunpack.c.l.b16 %v4118
        %v4251 = vunpack.c.l.b16 %v4119
        %v4252 = vunpack.c.l.b16 %v4120
        %v4253 = vunpack.c.l.b16 %v4121
        %v4254 = vunpack.c.l.b16 %v4122
        %v4255 = vunpack.c.l.b16 %v4123
        %v4256 = vunpack.c.l.b16 %v4124
        %v4257 = vunpack.c.l.b16 %v4125
        %v4258 = vunpack.c.l.b16 %v4126
        %v4259 = vunpack.c.l.b16 %v4127
        %v4260 = vunpack.c.l.b16 %v4128
        %v4261 = vunpack.c.l.b16 %v4129
        %v4262 = vunpack.c.l.b16 %v4130
        %v4263 = vunpack.c.l.b16 %v4131
        %v4264 = vunpack.c.l.b16 %v4132
        %v4265 = vpack.c.b16 %v4250, %v4249
        %v4266 = vpack.c.b16 %v4252, %v4251
        %v4267 = vpack.c.b16 %v4254, %v4253
        %v4268 = vpack.c.b16 %v4256, %v4255
        %v4269 = vpack.c.b16 %v4258, %v4257
        %v4270 = vpack.c.b16 %v4260, %v4259
        %v4271 = vpack.c.b16 %v4262, %v4261
        %v4272 = vpack.c.b16 %v4264, %v4263
        %4281 = vmatprep.subr.bf16.mxu0 0
        %4282 = vmatpush1.bf16.msra.mxu0 %v4265
        %4283 = vmatprep.subr.bf16.mxu0 0
        %4284 = vmatpush1.bf16.msra.mxu0 %v4266
        %4285 = vmatprep.subr.bf16.mxu0 0
        %4286 = vmatpush1.bf16.msra.mxu0 %v4267
        %4287 = vmatprep.subr.bf16.mxu0 0
        %4288 = vmatpush1.bf16.msra.mxu0 %v4268
        %4289 = vmatprep.subr.bf16.mxu0 0
        %4290 = vmatpush1.bf16.msra.mxu0 %v4269
        %4291 = vmatprep.subr.bf16.mxu0 0
        %4292 = vmatpush1.bf16.msra.mxu0 %v4270
        %4293 = vmatprep.subr.bf16.mxu0 0
        %4294 = vmatpush1.bf16.msra.mxu0 %v4271
        %4295 = vmatprep.subr.bf16.mxu0 0
        %4296 = vmatpush1.bf16.msra.mxu0 %v4272
        %4297 = vmatprep.subr.bf16.mxu0 0
        %4298 = vmatpush1.bf16.msra.mxu0 0
        %4299 = vmatprep.subr.bf16.mxu0 0
        %4300 = vmatpush1.bf16.msra.mxu0 0
        %4301 = vmatprep.subr.bf16.mxu0 0
        %4302 = vmatpush1.bf16.msra.mxu0 0
        %4303 = vmatprep.subr.bf16.mxu0 0
        %4304 = vmatpush1.bf16.msra.mxu0 0
        %4305 = vmatprep.subr.bf16.mxu0 0
        %4306 = vmatpush1.bf16.msra.mxu0 0
        %4307 = vmatprep.subr.bf16.mxu0 0
        %4308 = vmatpush1.bf16.msra.mxu0 0
        %4309 = vmatprep.subr.bf16.mxu0 0
        %4310 = vmatpush1.bf16.msra.mxu0 0
        %4311 = vmatprep.subr.bf16.mxu0 0
        %4312 = vmatpush1.bf16.msra.mxu0 0
        %4313 = vmatprep.mubr.bf16.mxu0 0
        %4314 = vmatmul.mubr.bf16.gmra.mrb[0].mxu0 %v4201
        %v4315 = vpop.f32.mrb[0].mxu0
        %v4316 = vadd.f32 %v4136, %v4315
        %v4317 = vpop.f32.mrb[0].mxu0
        %v4318 = vpop.f32.mrb[0].mxu0
        %v4319 = vadd.f32 %v4136, %v4318
        %v4320 = vpop.f32.mrb[0].mxu0
        %4321 = vmatprep.mubr.bf16.mxu0 0
        %4322 = vmatmul.mubr.bf16.gmra.mrb[0].mxu0 %v4202
        %v4323 = vpop.f32.mrb[0].mxu0
        %v4324 = vadd.f32 %v4136, %v4323
        %v4325 = vpop.f32.mrb[0].mxu0
        %v4326 = vpop.f32.mrb[0].mxu0
        %v4327 = vadd.f32 %v4136, %v4326
        %v4328 = vpop.f32.mrb[0].mxu0
        %4329 = vmatprep.mubr.bf16.mxu0 0
        %4330 = vmatmul.mubr.bf16.gmra.mrb[0].mxu0 %v4203
        %v4331 = vpop.f32.mrb[0].mxu0
        %v4332 = vadd.f32 %v4136, %v4331
        %v4333 = vpop.f32.mrb[0].mxu0
        %v4334 = vpop.f32.mrb[0].mxu0
        %v4335 = vadd.f32 %v4136, %v4334
        %v4336 = vpop.f32.mrb[0].mxu0
        %4337 = vmatprep.mubr.bf16.mxu0 0
        %4338 = vmatmul.mubr.bf16.gmra.mrb[0].mxu0 %v4204
        %v4339 = vpop.f32.mrb[0].mxu0
        %v4340 = vadd.f32 %v4136, %v4339
        %v4341 = vpop.f32.mrb[0].mxu0
        %v4342 = vpop.f32.mrb[0].mxu0
        %v4343 = vadd.f32 %v4136, %v4342
        %v4344 = vpop.f32.mrb[0].mxu0
        %4345 = vmatprep.mubr.bf16.mxu0 0
        %4346 = vmatmul.mubr.bf16.gmra.mrb[0].mxu0 %v4205
        %v4347 = vpop.f32.mrb[0].mxu0
        %v4348 = vadd.f32 %v4136, %v4347
        %v4349 = vpop.f32.mrb[0].mxu0
        %v4350 = vpop.f32.mrb[0].mxu0
        %v4351 = vadd.f32 %v4136, %v4350
        %v4352 = vpop.f32.mrb[0].mxu0
        %4353 = vmatprep.mubr.bf16.mxu0 0
        %4354 = vmatmul.mubr.bf16.gmra.mrb[0].mxu0 %v4206
        %v4355 = vpop.f32.mrb[0].mxu0
        %v4356 = vadd.f32 %v4136, %v4355
        %v4357 = vpop.f32.mrb[0].mxu0
        %v4358 = vpop.f32.mrb[0].mxu0
        %v4359 = vadd.f32 %v4136, %v4358
        %v4360 = vpop.f32.mrb[0].mxu0
        %4361 = vmatprep.mubr.bf16.mxu0 0
        %4362 = vmatmul.mubr.bf16.gmra.mrb[0].mxu0 %v4207
        %v4363 = vpop.f32.mrb[0].mxu0
        %v4364 = vadd.f32 %v4136, %v4363
        %v4365 = vpop.f32.mrb[0].mxu0
        %v4366 = vpop.f32.mrb[0].mxu0
        %v4367 = vadd.f32 %v4136, %v4366
        %v4368 = vpop.f32.mrb[0].mxu0
        %4369 = vmatprep.mubr.bf16.mxu0 0
        %4370 = vmatmul.mubr.bf16.gmra.mrb[0].mxu0 %v4208
        %v4371 = vpop.f32.mrb[0].mxu0
        %v4372 = vadd.f32 %v4136, %v4371
        %v4373 = vpop.f32.mrb[0].mxu0
        %v4374 = vpop.f32.mrb[0].mxu0
        %v4375 = vadd.f32 %v4136, %v4374
        %v4376 = vpop.f32.mrb[0].mxu0
        %4377 = vmatprep.mubr.bf16.mxu0 0
        %4378 = vmatmul.mubr.bf16.gmra.mrb[0].mxu0 %v4209
        %v4379 = vpop.f32.mrb[0].mxu0
        %v4380 = vadd.f32 %v4136, %v4379
        %v4381 = vpop.f32.mrb[0].mxu0
        %v4382 = vpop.f32.mrb[0].mxu0
        %v4383 = vadd.f32 %v4136, %v4382
        %v4384 = vpop.f32.mrb[0].mxu0
        %4385 = vmatprep.mubr.bf16.mxu0 0
        %4386 = vmatmul.mubr.bf16.gmra.mrb[0].mxu0 %v4210
        %v4387 = vpop.f32.mrb[0].mxu0
        %v4388 = vadd.f32 %v4136, %v4387
        %v4389 = vpop.f32.mrb[0].mxu0
        %v4390 = vpop.f32.mrb[0].mxu0
        %v4391 = vadd.f32 %v4136, %v4390
        %v4392 = vpop.f32.mrb[0].mxu0
        %4393 = vmatprep.mubr.bf16.mxu0 0
        %4394 = vmatmul.mubr.bf16.gmra.mrb[0].mxu0 %v4211
        %v4395 = vpop.f32.mrb[0].mxu0
        %v4396 = vadd.f32 %v4136, %v4395
        %v4397 = vpop.f32.mrb[0].mxu0
        %v4398 = vpop.f32.mrb[0].mxu0
        %v4399 = vadd.f32 %v4136, %v4398
        %v4400 = vpop.f32.mrb[0].mxu0
        %4401 = vmatprep.mubr.bf16.mxu0 0
        %4402 = vmatmul.mubr.bf16.gmra.mrb[0].mxu0 %v4212
        %v4403 = vpop.f32.mrb[0].mxu0
        %v4404 = vadd.f32 %v4136, %v4403
        %v4405 = vpop.f32.mrb[0].mxu0
        %v4406 = vpop.f32.mrb[0].mxu0
        %v4407 = vadd.f32 %v4136, %v4406
        %v4408 = vpop.f32.mrb[0].mxu0
        %4409 = vmatprep.mubr.bf16.mxu0 0
        %4410 = vmatmul.mubr.bf16.gmra.mrb[0].mxu0 %v4213
        %v4411 = vpop.f32.mrb[0].mxu0
        %v4412 = vadd.f32 %v4136, %v4411
        %v4413 = vpop.f32.mrb[0].mxu0
        %v4414 = vpop.f32.mrb[0].mxu0
        %v4415 = vadd.f32 %v4136, %v4414
        %v4416 = vpop.f32.mrb[0].mxu0
        %4417 = vmatprep.mubr.bf16.mxu0 0
        %4418 = vmatmul.mubr.bf16.gmra.mrb[0].mxu0 %v4214
        %v4419 = vpop.f32.mrb[0].mxu0
        %v4420 = vadd.f32 %v4136, %v4419
        %v4421 = vpop.f32.mrb[0].mxu0
        %v4422 = vpop.f32.mrb[0].mxu0
        %v4423 = vadd.f32 %v4136, %v4422
        %v4424 = vpop.f32.mrb[0].mxu0
        %4425 = vmatprep.mubr.bf16.mxu0 0
        %4426 = vmatmul.mubr.bf16.gmra.mrb[0].mxu0 %v4215
        %v4427 = vpop.f32.mrb[0].mxu0
        %v4428 = vadd.f32 %v4136, %v4427
        %v4429 = vpop.f32.mrb[0].mxu0
        %v4430 = vpop.f32.mrb[0].mxu0
        %v4431 = vadd.f32 %v4136, %v4430
        %v4432 = vpop.f32.mrb[0].mxu0
        %4433 = vmatprep.mubr.bf16.mxu0 0
        %4434 = vmatmul.mubr.bf16.gmra.mrb[0].mxu0 %v4216
        %v4435 = vpop.f32.mrb[0].mxu0
        %v4436 = vadd.f32 %v4136, %v4435
        %v4437 = vpop.f32.mrb[0].mxu0
        %v4438 = vpop.f32.mrb[0].mxu0
        %v4439 = vadd.f32 %v4136, %v4438
        %v4440 = vpop.f32.mrb[0].mxu0
        %4441 = vdwg.mxu0
        %v4442 = vmax.f32 %v4316, 0.0
        %v4443 = vmax.f32 %v4319, 0.0
        %v4444 = vmax.f32 %v4324, 0.0
        %v4445 = vmax.f32 %v4327, 0.0
        %v4446 = vmax.f32 %v4332, 0.0
        %v4447 = vmax.f32 %v4335, 0.0
        %v4448 = vmax.f32 %v4340, 0.0
        %v4449 = vmax.f32 %v4343, 0.0
        %v4450 = vmax.f32 %v4348, 0.0
        %v4451 = vmax.f32 %v4351, 0.0
        %v4452 = vmax.f32 %v4356, 0.0
        %v4453 = vmax.f32 %v4359, 0.0
        %v4454 = vmax.f32 %v4364, 0.0
        %v4455 = vmax.f32 %v4367, 0.0
        %v4456 = vmax.f32 %v4372, 0.0
        %v4457 = vmax.f32 %v4375, 0.0
        %v4458 = vmax.f32 %v4380, 0.0
        %v4459 = vmax.f32 %v4383, 0.0
        %v4460 = vmax.f32 %v4388, 0.0
        %v4461 = vmax.f32 %v4391, 0.0
        %v4462 = vmax.f32 %v4396, 0.0
        %v4463 = vmax.f32 %v4399, 0.0
        %v4464 = vmax.f32 %v4404, 0.0
        %v4465 = vmax.f32 %v4407, 0.0
        %v4466 = vmax.f32 %v4412, 0.0
        %v4467 = vmax.f32 %v4415, 0.0
        %v4468 = vmax.f32 %v4420, 0.0
        %v4469 = vmax.f32 %v4423, 0.0
        %v4470 = vmax.f32 %v4428, 0.0
        %v4471 = vmax.f32 %v4431, 0.0
        %v4472 = vmax.f32 %v4436, 0.0
        %v4473 = vmax.f32 %v4439, 0.0
        %v4474 = vpack.c.bf16 %v4443, %v4442
        %v4475 = vpack.c.bf16 %v4445, %v4444
        %v4476 = vpack.c.bf16 %v4447, %v4446
        %v4477 = vpack.c.bf16 %v4449, %v4448
        %v4478 = vpack.c.bf16 %v4451, %v4450
        %v4479 = vpack.c.bf16 %v4453, %v4452
        %v4480 = vpack.c.bf16 %v4455, %v4454
        %v4481 = vpack.c.bf16 %v4457, %v4456
        %v4482 = vpack.c.bf16 %v4459, %v4458
        %v4483 = vpack.c.bf16 %v4461, %v4460
        %v4484 = vpack.c.bf16 %v4463, %v4462
        %v4485 = vpack.c.bf16 %v4465, %v4464
        %v4486 = vpack.c.bf16 %v4467, %v4466
        %v4487 = vpack.c.bf16 %v4469, %v4468
        %v4488 = vpack.c.bf16 %v4471, %v4470
        %v4489 = vpack.c.bf16 %v4473, %v4472
        %v4490 = vld [vmem:[#allocation13] sm:$0xff]
        %v4491 = vld [vmem:[#allocation13 + $0x8] sm:$0xff]
        %v4492 = vld [vmem:[#allocation13 + $0x10] sm:$0xff]
        %v4493 = vld [vmem:[#allocation13 + $0x18] sm:$0xff]
        %v4494 = vld [vmem:[#allocation13 + $0x20] sm:$0xff]
        %v4495 = vld [vmem:[#allocation13 + $0x28] sm:$0xff]
        %v4496 = vld [vmem:[#allocation13 + $0x30] sm:$0xff]
        %v4497 = vld [vmem:[#allocation13 + $0x38] sm:$0xff]
        %v4498 = vld [vmem:[#allocation13 + $0x40] sm:$0xff]
        %v4499 = vld [vmem:[#allocation13 + $0x48] sm:$0xff]
        %v4500 = vld [vmem:[#allocation13 + $0x50] sm:$0xff]
        %v4501 = vld [vmem:[#allocation13 + $0x58] sm:$0xff]
        %v4502 = vld [vmem:[#allocation13 + $0x60] sm:$0xff]
        %v4503 = vld [vmem:[#allocation13 + $0x68] sm:$0xff]
        %v4504 = vld [vmem:[#allocation13 + $0x70] sm:$0xff]
        %v4505 = vld [vmem:[#allocation13 + $0x78] sm:$0xff]
        %v4506 = vld [vmem:[#allocation13 + $0x80] sm:$0xff]
        %v4507 = vld [vmem:[#allocation13 + $0x88] sm:$0xff]
        %v4508 = vld [vmem:[#allocation13 + $0x90] sm:$0xff]
        %v4509 = vld [vmem:[#allocation13 + $0x98] sm:$0xff]
        %v4510 = vld [vmem:[#allocation13 + $0xa0] sm:$0xff]
        %v4511 = vld [vmem:[#allocation13 + $0xa8] sm:$0xff]
        %v4512 = vld [vmem:[#allocation13 + $0xb0] sm:$0xff]
        %v4513 = vld [vmem:[#allocation13 + $0xb8] sm:$0xff]
        %v4514 = vld [vmem:[#allocation13 + $0xc0] sm:$0xff]
        %v4515 = vld [vmem:[#allocation13 + $0xc8] sm:$0xff]
        %v4516 = vld [vmem:[#allocation13 + $0xd0] sm:$0xff]
        %v4517 = vld [vmem:[#allocation13 + $0xd8] sm:$0xff]
        %v4518 = vld [vmem:[#allocation13 + $0xe0] sm:$0xff]
        %v4519 = vld [vmem:[#allocation13 + $0xe8] sm:$0xff]
        %v4520 = vld [vmem:[#allocation13 + $0xf0] sm:$0xff]
        %v4521 = vld [vmem:[#allocation13 + $0xf8] sm:$0xff]
        %v4522 = vlaneseq
        %v4523 = vshrl.u32 %v4522, 7
        %v4524 = vsub.s32 7, %v4523
        %v4525 = vrot.slane %v547, %v4524
        %v4526 = vlaneseq
        %v4527 = vshrl.u32 %v4526, 7
        %v4528 = vsub.s32 7, %v4527
        %v4529 = vrot.slane %v548, %v4528
        %v4530 = vlaneseq
        %v4531 = vshrl.u32 %v4530, 7
        %v4532 = vsub.s32 7, %v4531
        %v4533 = vrot.slane %v549, %v4532
        %v4534 = vlaneseq
        %v4535 = vshrl.u32 %v4534, 7
        %v4536 = vsub.s32 7, %v4535
        %v4537 = vrot.slane %v550, %v4536
        %v4570 = vunpack.c.l.b16 %v4490
        %v4571 = vunpack.c.h.b16 %v4490
        %v4572 = vunpack.c.l.b16 %v4491
        %v4573 = vunpack.c.h.b16 %v4491
        %v4574 = vunpack.c.l.b16 %v4492
        %v4575 = vunpack.c.h.b16 %v4492
        %v4576 = vunpack.c.l.b16 %v4493
        %v4577 = vunpack.c.h.b16 %v4493
        %v4578 = vunpack.c.l.b16 %v4494
        %v4579 = vunpack.c.h.b16 %v4494
        %v4580 = vunpack.c.l.b16 %v4495
        %v4581 = vunpack.c.h.b16 %v4495
        %v4582 = vunpack.c.l.b16 %v4496
        %v4583 = vunpack.c.h.b16 %v4496
        %v4584 = vunpack.c.l.b16 %v4497
        %v4585 = vunpack.c.h.b16 %v4497
        %v4586 = vunpack.c.l.b16 %v4498
        %v4587 = vunpack.c.h.b16 %v4498
        %v4588 = vunpack.c.l.b16 %v4499
        %v4589 = vunpack.c.h.b16 %v4499
        %v4590 = vunpack.c.l.b16 %v4500
        %v4591 = vunpack.c.h.b16 %v4500
        %v4592 = vunpack.c.l.b16 %v4501
        %v4593 = vunpack.c.h.b16 %v4501
        %v4594 = vunpack.c.l.b16 %v4502
        %v4595 = vunpack.c.h.b16 %v4502
        %v4596 = vunpack.c.l.b16 %v4503
        %v4597 = vunpack.c.h.b16 %v4503
        %v4598 = vunpack.c.l.b16 %v4504
        %v4599 = vunpack.c.h.b16 %v4504
        %v4600 = vunpack.c.l.b16 %v4505
        %v4601 = vunpack.c.h.b16 %v4505
        %v4602 = vunpack.c.l.b16 %v4506
        %v4603 = vunpack.c.h.b16 %v4506
        %v4604 = vunpack.c.l.b16 %v4507
        %v4605 = vunpack.c.h.b16 %v4507
        %v4606 = vunpack.c.l.b16 %v4508
        %v4607 = vunpack.c.h.b16 %v4508
        %v4608 = vunpack.c.l.b16 %v4509
        %v4609 = vunpack.c.h.b16 %v4509
        %v4610 = vunpack.c.l.b16 %v4510
        %v4611 = vunpack.c.h.b16 %v4510
        %v4612 = vunpack.c.l.b16 %v4511
        %v4613 = vunpack.c.h.b16 %v4511
        %v4614 = vunpack.c.l.b16 %v4512
        %v4615 = vunpack.c.h.b16 %v4512
        %v4616 = vunpack.c.l.b16 %v4513
        %v4617 = vunpack.c.h.b16 %v4513
        %v4618 = vunpack.c.l.b16 %v4514
        %v4619 = vunpack.c.h.b16 %v4514
        %v4620 = vunpack.c.l.b16 %v4515
        %v4621 = vunpack.c.h.b16 %v4515
        %v4622 = vunpack.c.l.b16 %v4516
        %v4623 = vunpack.c.h.b16 %v4516
        %v4624 = vunpack.c.l.b16 %v4517
        %v4625 = vunpack.c.h.b16 %v4517
        %v4626 = vunpack.c.l.b16 %v4518
        %v4627 = vunpack.c.h.b16 %v4518
        %v4628 = vunpack.c.l.b16 %v4519
        %v4629 = vunpack.c.h.b16 %v4519
        %v4630 = vunpack.c.l.b16 %v4520
        %v4631 = vunpack.c.h.b16 %v4520
        %v4632 = vunpack.c.l.b16 %v4521
        %v4633 = vunpack.c.h.b16 %v4521
        %v4634 = vpack.c.b16 %v4574, %v4570
        %v4635 = vpack.c.b16 %v4575, %v4571
        %v4636 = vpack.c.b16 %v4576, %v4572
        %v4637 = vpack.c.b16 %v4577, %v4573
        %v4638 = vpack.c.b16 %v4582, %v4578
        %v4639 = vpack.c.b16 %v4583, %v4579
        %v4640 = vpack.c.b16 %v4584, %v4580
        %v4641 = vpack.c.b16 %v4585, %v4581
        %v4642 = vpack.c.b16 %v4590, %v4586
        %v4643 = vpack.c.b16 %v4591, %v4587
        %v4644 = vpack.c.b16 %v4592, %v4588
        %v4645 = vpack.c.b16 %v4593, %v4589
        %v4646 = vpack.c.b16 %v4598, %v4594
        %v4647 = vpack.c.b16 %v4599, %v4595
        %v4648 = vpack.c.b16 %v4600, %v4596
        %v4649 = vpack.c.b16 %v4601, %v4597
        %v4650 = vpack.c.b16 %v4606, %v4602
        %v4651 = vpack.c.b16 %v4607, %v4603
        %v4652 = vpack.c.b16 %v4608, %v4604
        %v4653 = vpack.c.b16 %v4609, %v4605
        %v4654 = vpack.c.b16 %v4614, %v4610
        %v4655 = vpack.c.b16 %v4615, %v4611
        %v4656 = vpack.c.b16 %v4616, %v4612
        %v4657 = vpack.c.b16 %v4617, %v4613
        %v4658 = vpack.c.b16 %v4622, %v4618
        %v4659 = vpack.c.b16 %v4623, %v4619
        %v4660 = vpack.c.b16 %v4624, %v4620
        %v4661 = vpack.c.b16 %v4625, %v4621
        %v4662 = vpack.c.b16 %v4630, %v4626
        %v4663 = vpack.c.b16 %v4631, %v4627
        %v4664 = vpack.c.b16 %v4632, %v4628
        %v4665 = vpack.c.b16 %v4633, %v4629
        %4698 = vmatprep.subr.bf16.mxu0 %v4635
        %4699 = vmatpush1.bf16.msra.mxu0 %v4634
        %4700 = vmatprep.subr.bf16.mxu0 %v4639
        %4701 = vmatpush1.bf16.msra.mxu0 %v4638
        %4702 = vmatprep.subr.bf16.mxu0 %v4643
        %4703 = vmatpush1.bf16.msra.mxu0 %v4642
        %4704 = vmatprep.subr.bf16.mxu0 %v4647
        %4705 = vmatpush1.bf16.msra.mxu0 %v4646
        %4706 = vmatprep.subr.bf16.mxu0 %v4651
        %4707 = vmatpush1.bf16.msra.mxu0 %v4650
        %4708 = vmatprep.subr.bf16.mxu0 %v4655
        %4709 = vmatpush1.bf16.msra.mxu0 %v4654
        %4710 = vmatprep.subr.bf16.mxu0 %v4659
        %4711 = vmatpush1.bf16.msra.mxu0 %v4658
        %4712 = vmatprep.subr.bf16.mxu0 %v4663
        %4713 = vmatpush1.bf16.msra.mxu0 %v4662
        %4714 = vmatprep.subr.bf16.mxu0 0
        %4715 = vmatpush1.bf16.msra.mxu0 0
        %4716 = vmatprep.subr.bf16.mxu0 0
        %4717 = vmatpush1.bf16.msra.mxu0 0
        %4718 = vmatprep.subr.bf16.mxu0 0
        %4719 = vmatpush1.bf16.msra.mxu0 0
        %4720 = vmatprep.subr.bf16.mxu0 0
        %4721 = vmatpush1.bf16.msra.mxu0 0
        %4722 = vmatprep.subr.bf16.mxu0 0
        %4723 = vmatpush1.bf16.msra.mxu0 0
        %4724 = vmatprep.subr.bf16.mxu0 0
        %4725 = vmatpush1.bf16.msra.mxu0 0
        %4726 = vmatprep.subr.bf16.mxu0 0
        %4727 = vmatpush1.bf16.msra.mxu0 0
        %4728 = vmatprep.subr.bf16.mxu0 0
        %4729 = vmatpush1.bf16.msra.mxu0 0
        %4730 = vmatprep.mubr.bf16.mxu0 0
        %4731 = vmatmul.mubr.bf16.gmra.mrb[0].mxu0 %v4474
        %v4732 = vpop.f32.mrb[0].mxu0
        %v4733 = vadd.f32 %v4525, %v4732
        %v4734 = vpop.f32.mrb[0].mxu0
        %v4735 = vadd.f32 %v4529, %v4734
        %v4736 = vpop.f32.mrb[0].mxu0
        %v4737 = vadd.f32 %v4525, %v4736
        %v4738 = vpop.f32.mrb[0].mxu0
        %v4739 = vadd.f32 %v4529, %v4738
        %4740 = vmatprep.mubr.bf16.mxu0 0
        %4741 = vmatmul.mubr.bf16.gmra.mrb[0].mxu0 %v4475
        %v4742 = vpop.f32.mrb[0].mxu0
        %v4743 = vadd.f32 %v4525, %v4742
        %v4744 = vpop.f32.mrb[0].mxu0
        %v4745 = vadd.f32 %v4529, %v4744
        %v4746 = vpop.f32.mrb[0].mxu0
        %v4747 = vadd.f32 %v4525, %v4746
        %v4748 = vpop.f32.mrb[0].mxu0
        %v4749 = vadd.f32 %v4529, %v4748
        %4750 = vmatprep.mubr.bf16.mxu0 0
        %4751 = vmatmul.mubr.bf16.gmra.mrb[0].mxu0 %v4476
        %v4752 = vpop.f32.mrb[0].mxu0
        %v4753 = vadd.f32 %v4525, %v4752
        %v4754 = vpop.f32.mrb[0].mxu0
        %v4755 = vadd.f32 %v4529, %v4754
        %v4756 = vpop.f32.mrb[0].mxu0
        %v4757 = vadd.f32 %v4525, %v4756
        %v4758 = vpop.f32.mrb[0].mxu0
        %v4759 = vadd.f32 %v4529, %v4758
        %4760 = vmatprep.mubr.bf16.mxu0 0
        %4761 = vmatmul.mubr.bf16.gmra.mrb[0].mxu0 %v4477
        %v4762 = vpop.f32.mrb[0].mxu0
        %v4763 = vadd.f32 %v4525, %v4762
        %v4764 = vpop.f32.mrb[0].mxu0
        %v4765 = vadd.f32 %v4529, %v4764
        %v4766 = vpop.f32.mrb[0].mxu0
        %v4767 = vadd.f32 %v4525, %v4766
        %v4768 = vpop.f32.mrb[0].mxu0
        %v4769 = vadd.f32 %v4529, %v4768
        %4770 = vmatprep.mubr.bf16.mxu0 0
        %4771 = vmatmul.mubr.bf16.gmra.mrb[0].mxu0 %v4478
        %v4772 = vpop.f32.mrb[0].mxu0
        %v4773 = vadd.f32 %v4525, %v4772
        %v4774 = vpop.f32.mrb[0].mxu0
        %v4775 = vadd.f32 %v4529, %v4774
        %v4776 = vpop.f32.mrb[0].mxu0
        %v4777 = vadd.f32 %v4525, %v4776
        %v4778 = vpop.f32.mrb[0].mxu0
        %v4779 = vadd.f32 %v4529, %v4778
        %4780 = vmatprep.mubr.bf16.mxu0 0
        %4781 = vmatmul.mubr.bf16.gmra.mrb[0].mxu0 %v4479
        %v4782 = vpop.f32.mrb[0].mxu0
        %v4783 = vadd.f32 %v4525, %v4782
        %v4784 = vpop.f32.mrb[0].mxu0
        %v4785 = vadd.f32 %v4529, %v4784
        %v4786 = vpop.f32.mrb[0].mxu0
        %v4787 = vadd.f32 %v4525, %v4786
        %v4788 = vpop.f32.mrb[0].mxu0
        %v4789 = vadd.f32 %v4529, %v4788
        %4790 = vmatprep.mubr.bf16.mxu0 0
        %4791 = vmatmul.mubr.bf16.gmra.mrb[0].mxu0 %v4480
        %v4792 = vpop.f32.mrb[0].mxu0
        %v4793 = vadd.f32 %v4525, %v4792
        %v4794 = vpop.f32.mrb[0].mxu0
        %v4795 = vadd.f32 %v4529, %v4794
        %v4796 = vpop.f32.mrb[0].mxu0
        %v4797 = vadd.f32 %v4525, %v4796
        %v4798 = vpop.f32.mrb[0].mxu0
        %v4799 = vadd.f32 %v4529, %v4798
        %4800 = vmatprep.mubr.bf16.mxu0 0
        %4801 = vmatmul.mubr.bf16.gmra.mrb[0].mxu0 %v4481
        %v4802 = vpop.f32.mrb[0].mxu0
        %v4803 = vadd.f32 %v4525, %v4802
        %v4804 = vpop.f32.mrb[0].mxu0
        %v4805 = vadd.f32 %v4529, %v4804
        %v4806 = vpop.f32.mrb[0].mxu0
        %v4807 = vadd.f32 %v4525, %v4806
        %v4808 = vpop.f32.mrb[0].mxu0
        %v4809 = vadd.f32 %v4529, %v4808
        %4810 = vmatprep.mubr.bf16.mxu0 0
        %4811 = vmatmul.mubr.bf16.gmra.mrb[0].mxu0 %v4482
        %v4812 = vpop.f32.mrb[0].mxu0
        %v4813 = vadd.f32 %v4525, %v4812
        %v4814 = vpop.f32.mrb[0].mxu0
        %v4815 = vadd.f32 %v4529, %v4814
        %v4816 = vpop.f32.mrb[0].mxu0
        %v4817 = vadd.f32 %v4525, %v4816
        %v4818 = vpop.f32.mrb[0].mxu0
        %v4819 = vadd.f32 %v4529, %v4818
        %4820 = vmatprep.mubr.bf16.mxu0 0
        %4821 = vmatmul.mubr.bf16.gmra.mrb[0].mxu0 %v4483
        %v4822 = vpop.f32.mrb[0].mxu0
        %v4823 = vadd.f32 %v4525, %v4822
        %v4824 = vpop.f32.mrb[0].mxu0
        %v4825 = vadd.f32 %v4529, %v4824
        %v4826 = vpop.f32.mrb[0].mxu0
        %v4827 = vadd.f32 %v4525, %v4826
        %v4828 = vpop.f32.mrb[0].mxu0
        %v4829 = vadd.f32 %v4529, %v4828
        %4830 = vmatprep.mubr.bf16.mxu0 0
        %4831 = vmatmul.mubr.bf16.gmra.mrb[0].mxu0 %v4484
        %v4832 = vpop.f32.mrb[0].mxu0
        %v4833 = vadd.f32 %v4525, %v4832
        %v4834 = vpop.f32.mrb[0].mxu0
        %v4835 = vadd.f32 %v4529, %v4834
        %v4836 = vpop.f32.mrb[0].mxu0
        %v4837 = vadd.f32 %v4525, %v4836
        %v4838 = vpop.f32.mrb[0].mxu0
        %v4839 = vadd.f32 %v4529, %v4838
        %4840 = vmatprep.mubr.bf16.mxu0 0
        %4841 = vmatmul.mubr.bf16.gmra.mrb[0].mxu0 %v4485
        %v4842 = vpop.f32.mrb[0].mxu0
        %v4843 = vadd.f32 %v4525, %v4842
        %v4844 = vpop.f32.mrb[0].mxu0
        %v4845 = vadd.f32 %v4529, %v4844
        %v4846 = vpop.f32.mrb[0].mxu0
        %v4847 = vadd.f32 %v4525, %v4846
        %v4848 = vpop.f32.mrb[0].mxu0
        %v4849 = vadd.f32 %v4529, %v4848
        %4850 = vmatprep.mubr.bf16.mxu0 0
        %4851 = vmatmul.mubr.bf16.gmra.mrb[0].mxu0 %v4486
        %v4852 = vpop.f32.mrb[0].mxu0
        %v4853 = vadd.f32 %v4525, %v4852
        %v4854 = vpop.f32.mrb[0].mxu0
        %v4855 = vadd.f32 %v4529, %v4854
        %v4856 = vpop.f32.mrb[0].mxu0
        %v4857 = vadd.f32 %v4525, %v4856
        %v4858 = vpop.f32.mrb[0].mxu0
        %v4859 = vadd.f32 %v4529, %v4858
        %4860 = vmatprep.mubr.bf16.mxu0 0
        %4861 = vmatmul.mubr.bf16.gmra.mrb[0].mxu0 %v4487
        %v4862 = vpop.f32.mrb[0].mxu0
        %v4863 = vadd.f32 %v4525, %v4862
        %v4864 = vpop.f32.mrb[0].mxu0
        %v4865 = vadd.f32 %v4529, %v4864
        %v4866 = vpop.f32.mrb[0].mxu0
        %v4867 = vadd.f32 %v4525, %v4866
        %v4868 = vpop.f32.mrb[0].mxu0
        %v4869 = vadd.f32 %v4529, %v4868
        %4870 = vmatprep.mubr.bf16.mxu0 0
        %4871 = vmatmul.mubr.bf16.gmra.mrb[0].mxu0 %v4488
        %v4872 = vpop.f32.mrb[0].mxu0
        %v4873 = vadd.f32 %v4525, %v4872
        %v4874 = vpop.f32.mrb[0].mxu0
        %v4875 = vadd.f32 %v4529, %v4874
        %v4876 = vpop.f32.mrb[0].mxu0
        %v4877 = vadd.f32 %v4525, %v4876
        %v4878 = vpop.f32.mrb[0].mxu0
        %v4879 = vadd.f32 %v4529, %v4878
        %4880 = vmatprep.mubr.bf16.mxu0 0
        %4881 = vmatmul.mubr.bf16.gmra.mrb[0].mxu0 %v4489
        %v4882 = vpop.f32.mrb[0].mxu0
        %v4883 = vadd.f32 %v4525, %v4882
        %v4884 = vpop.f32.mrb[0].mxu0
        %v4885 = vadd.f32 %v4529, %v4884
        %v4886 = vpop.f32.mrb[0].mxu0
        %v4887 = vadd.f32 %v4525, %v4886
        %v4888 = vpop.f32.mrb[0].mxu0
        %v4889 = vadd.f32 %v4529, %v4888
        %4890 = vdwg.mxu0
        %4891 = vmatprep.subr.bf16.mxu0 %v4637
        %4892 = vmatpush1.bf16.msra.mxu0 %v4636
        %4893 = vmatprep.subr.bf16.mxu0 %v4641
        %4894 = vmatpush1.bf16.msra.mxu0 %v4640
        %4895 = vmatprep.subr.bf16.mxu0 %v4645
        %4896 = vmatpush1.bf16.msra.mxu0 %v4644
        %4897 = vmatprep.subr.bf16.mxu0 %v4649
        %4898 = vmatpush1.bf16.msra.mxu0 %v4648
        %4899 = vmatprep.subr.bf16.mxu0 %v4653
        %4900 = vmatpush1.bf16.msra.mxu0 %v4652
        %4901 = vmatprep.subr.bf16.mxu0 %v4657
        %4902 = vmatpush1.bf16.msra.mxu0 %v4656
        %4903 = vmatprep.subr.bf16.mxu0 %v4661
        %4904 = vmatpush1.bf16.msra.mxu0 %v4660
        %4905 = vmatprep.subr.bf16.mxu0 %v4665
        %4906 = vmatpush1.bf16.msra.mxu0 %v4664
        %4907 = vmatprep.subr.bf16.mxu0 0
        %4908 = vmatpush1.bf16.msra.mxu0 0
        %4909 = vmatprep.subr.bf16.mxu0 0
        %4910 = vmatpush1.bf16.msra.mxu0 0
        %4911 = vmatprep.subr.bf16.mxu0 0
        %4912 = vmatpush1.bf16.msra.mxu0 0
        %4913 = vmatprep.subr.bf16.mxu0 0
        %4914 = vmatpush1.bf16.msra.mxu0 0
        %4915 = vmatprep.subr.bf16.mxu0 0
        %4916 = vmatpush1.bf16.msra.mxu0 0
        %4917 = vmatprep.subr.bf16.mxu0 0
        %4918 = vmatpush1.bf16.msra.mxu0 0
        %4919 = vmatprep.subr.bf16.mxu0 0
        %4920 = vmatpush1.bf16.msra.mxu0 0
        %4921 = vmatprep.subr.bf16.mxu0 0
        %4922 = vmatpush1.bf16.msra.mxu0 0
        %4923 = vmatprep.mubr.bf16.mxu0 0
        %4924 = vmatmul.mubr.bf16.gmra.mrb[0].mxu0 %v4474
        %v4925 = vpop.f32.mrb[0].mxu0
        %v4926 = vadd.f32 %v4533, %v4925
        %v4927 = vpop.f32.mrb[0].mxu0
        %v4928 = vadd.f32 %v4537, %v4927
        %v4929 = vpop.f32.mrb[0].mxu0
        %v4930 = vadd.f32 %v4533, %v4929
        %v4931 = vpop.f32.mrb[0].mxu0
        %v4932 = vadd.f32 %v4537, %v4931
        %4933 = vmatprep.mubr.bf16.mxu0 0
        %4934 = vmatmul.mubr.bf16.gmra.mrb[0].mxu0 %v4475
        %v4935 = vpop.f32.mrb[0].mxu0
        %v4936 = vadd.f32 %v4533, %v4935
        %v4937 = vpop.f32.mrb[0].mxu0
        %v4938 = vadd.f32 %v4537, %v4937
        %v4939 = vpop.f32.mrb[0].mxu0
        %v4940 = vadd.f32 %v4533, %v4939
        %v4941 = vpop.f32.mrb[0].mxu0
        %v4942 = vadd.f32 %v4537, %v4941
        %4943 = vmatprep.mubr.bf16.mxu0 0
        %4944 = vmatmul.mubr.bf16.gmra.mrb[0].mxu0 %v4476
        %v4945 = vpop.f32.mrb[0].mxu0
        %v4946 = vadd.f32 %v4533, %v4945
        %v4947 = vpop.f32.mrb[0].mxu0
        %v4948 = vadd.f32 %v4537, %v4947
        %v4949 = vpop.f32.mrb[0].mxu0
        %v4950 = vadd.f32 %v4533, %v4949
        %v4951 = vpop.f32.mrb[0].mxu0
        %v4952 = vadd.f32 %v4537, %v4951
        %4953 = vmatprep.mubr.bf16.mxu0 0
        %4954 = vmatmul.mubr.bf16.gmra.mrb[0].mxu0 %v4477
        %v4955 = vpop.f32.mrb[0].mxu0
        %v4956 = vadd.f32 %v4533, %v4955
        %v4957 = vpop.f32.mrb[0].mxu0
        %v4958 = vadd.f32 %v4537, %v4957
        %v4959 = vpop.f32.mrb[0].mxu0
        %v4960 = vadd.f32 %v4533, %v4959
        %v4961 = vpop.f32.mrb[0].mxu0
        %v4962 = vadd.f32 %v4537, %v4961
        %4963 = vmatprep.mubr.bf16.mxu0 0
        %4964 = vmatmul.mubr.bf16.gmra.mrb[0].mxu0 %v4478
        %v4965 = vpop.f32.mrb[0].mxu0
        %v4966 = vadd.f32 %v4533, %v4965
        %v4967 = vpop.f32.mrb[0].mxu0
        %v4968 = vadd.f32 %v4537, %v4967
        %v4969 = vpop.f32.mrb[0].mxu0
        %v4970 = vadd.f32 %v4533, %v4969
        %v4971 = vpop.f32.mrb[0].mxu0
        %v4972 = vadd.f32 %v4537, %v4971
        %4973 = vmatprep.mubr.bf16.mxu0 0
        %4974 = vmatmul.mubr.bf16.gmra.mrb[0].mxu0 %v4479
        %v4975 = vpop.f32.mrb[0].mxu0
        %v4976 = vadd.f32 %v4533, %v4975
        %v4977 = vpop.f32.mrb[0].mxu0
        %v4978 = vadd.f32 %v4537, %v4977
        %v4979 = vpop.f32.mrb[0].mxu0
        %v4980 = vadd.f32 %v4533, %v4979
        %v4981 = vpop.f32.mrb[0].mxu0
        %v4982 = vadd.f32 %v4537, %v4981
        %4983 = vmatprep.mubr.bf16.mxu0 0
        %4984 = vmatmul.mubr.bf16.gmra.mrb[0].mxu0 %v4480
        %v4985 = vpop.f32.mrb[0].mxu0
        %v4986 = vadd.f32 %v4533, %v4985
        %v4987 = vpop.f32.mrb[0].mxu0
        %v4988 = vadd.f32 %v4537, %v4987
        %v4989 = vpop.f32.mrb[0].mxu0
        %v4990 = vadd.f32 %v4533, %v4989
        %v4991 = vpop.f32.mrb[0].mxu0
        %v4992 = vadd.f32 %v4537, %v4991
        %4993 = vmatprep.mubr.bf16.mxu0 0
        %4994 = vmatmul.mubr.bf16.gmra.mrb[0].mxu0 %v4481
        %v4995 = vpop.f32.mrb[0].mxu0
        %v4996 = vadd.f32 %v4533, %v4995
        %v4997 = vpop.f32.mrb[0].mxu0
        %v4998 = vadd.f32 %v4537, %v4997
        %v4999 = vpop.f32.mrb[0].mxu0
        %v5000 = vadd.f32 %v4533, %v4999
        %v5001 = vpop.f32.mrb[0].mxu0
        %v5002 = vadd.f32 %v4537, %v5001
        %5003 = vmatprep.mubr.bf16.mxu0 0
        %5004 = vmatmul.mubr.bf16.gmra.mrb[0].mxu0 %v4482
        %v5005 = vpop.f32.mrb[0].mxu0
        %v5006 = vadd.f32 %v4533, %v5005
        %v5007 = vpop.f32.mrb[0].mxu0
        %v5008 = vadd.f32 %v4537, %v5007
        %v5009 = vpop.f32.mrb[0].mxu0
        %v5010 = vadd.f32 %v4533, %v5009
        %v5011 = vpop.f32.mrb[0].mxu0
        %v5012 = vadd.f32 %v4537, %v5011
        %5013 = vmatprep.mubr.bf16.mxu0 0
        %5014 = vmatmul.mubr.bf16.gmra.mrb[0].mxu0 %v4483
        %v5015 = vpop.f32.mrb[0].mxu0
        %v5016 = vadd.f32 %v4533, %v5015
        %v5017 = vpop.f32.mrb[0].mxu0
        %v5018 = vadd.f32 %v4537, %v5017
        %v5019 = vpop.f32.mrb[0].mxu0
        %v5020 = vadd.f32 %v4533, %v5019
        %v5021 = vpop.f32.mrb[0].mxu0
        %v5022 = vadd.f32 %v4537, %v5021
        %5023 = vmatprep.mubr.bf16.mxu0 0
        %5024 = vmatmul.mubr.bf16.gmra.mrb[0].mxu0 %v4484
        %v5025 = vpop.f32.mrb[0].mxu0
        %v5026 = vadd.f32 %v4533, %v5025
        %v5027 = vpop.f32.mrb[0].mxu0
        %v5028 = vadd.f32 %v4537, %v5027
        %v5029 = vpop.f32.mrb[0].mxu0
        %v5030 = vadd.f32 %v4533, %v5029
        %v5031 = vpop.f32.mrb[0].mxu0
        %v5032 = vadd.f32 %v4537, %v5031
        %5033 = vmatprep.mubr.bf16.mxu0 0
        %5034 = vmatmul.mubr.bf16.gmra.mrb[0].mxu0 %v4485
        %v5035 = vpop.f32.mrb[0].mxu0
        %v5036 = vadd.f32 %v4533, %v5035
        %v5037 = vpop.f32.mrb[0].mxu0
        %v5038 = vadd.f32 %v4537, %v5037
        %v5039 = vpop.f32.mrb[0].mxu0
        %v5040 = vadd.f32 %v4533, %v5039
        %v5041 = vpop.f32.mrb[0].mxu0
        %v5042 = vadd.f32 %v4537, %v5041
        %5043 = vmatprep.mubr.bf16.mxu0 0
        %5044 = vmatmul.mubr.bf16.gmra.mrb[0].mxu0 %v4486
        %v5045 = vpop.f32.mrb[0].mxu0
        %v5046 = vadd.f32 %v4533, %v5045
        %v5047 = vpop.f32.mrb[0].mxu0
        %v5048 = vadd.f32 %v4537, %v5047
        %v5049 = vpop.f32.mrb[0].mxu0
        %v5050 = vadd.f32 %v4533, %v5049
        %v5051 = vpop.f32.mrb[0].mxu0
        %v5052 = vadd.f32 %v4537, %v5051
        %5053 = vmatprep.mubr.bf16.mxu0 0
        %5054 = vmatmul.mubr.bf16.gmra.mrb[0].mxu0 %v4487
        %v5055 = vpop.f32.mrb[0].mxu0
        %v5056 = vadd.f32 %v4533, %v5055
        %v5057 = vpop.f32.mrb[0].mxu0
        %v5058 = vadd.f32 %v4537, %v5057
        %v5059 = vpop.f32.mrb[0].mxu0
        %v5060 = vadd.f32 %v4533, %v5059
        %v5061 = vpop.f32.mrb[0].mxu0
        %v5062 = vadd.f32 %v4537, %v5061
        %5063 = vmatprep.mubr.bf16.mxu0 0
        %5064 = vmatmul.mubr.bf16.gmra.mrb[0].mxu0 %v4488
        %v5065 = vpop.f32.mrb[0].mxu0
        %v5066 = vadd.f32 %v4533, %v5065
        %v5067 = vpop.f32.mrb[0].mxu0
        %v5068 = vadd.f32 %v4537, %v5067
        %v5069 = vpop.f32.mrb[0].mxu0
        %v5070 = vadd.f32 %v4533, %v5069
        %v5071 = vpop.f32.mrb[0].mxu0
        %v5072 = vadd.f32 %v4537, %v5071
        %5073 = vmatprep.mubr.bf16.mxu0 0
        %5074 = vmatmul.mubr.bf16.gmra.mrb[0].mxu0 %v4489
        %v5075 = vpop.f32.mrb[0].mxu0
        %v5076 = vadd.f32 %v4533, %v5075
        %v5077 = vpop.f32.mrb[0].mxu0
        %v5078 = vadd.f32 %v4537, %v5077
        %v5079 = vpop.f32.mrb[0].mxu0
        %v5080 = vadd.f32 %v4533, %v5079
        %v5081 = vpop.f32.mrb[0].mxu0
        %v5082 = vadd.f32 %v4537, %v5081
        %5083 = vdwg.mxu0
        %v5084 = vpack.c.bf16 %v4054, %v4053
        %v5085 = vpack.c.bf16 %v4056, %v4055
        %v5086 = vpack.c.bf16 %v4058, %v4057
        %v5087 = vpack.c.bf16 %v4060, %v4059
        %v5088 = vpack.c.bf16 %v4062, %v4061
        %v5089 = vpack.c.bf16 %v4064, %v4063
        %v5090 = vpack.c.bf16 %v4066, %v4065
        %v5091 = vpack.c.bf16 %v4068, %v4067
        %v5092 = vpack.c.bf16 %v4070, %v4069
        %v5093 = vpack.c.bf16 %v4072, %v4071
        %v5094 = vpack.c.bf16 %v4074, %v4073
        %v5095 = vpack.c.bf16 %v4076, %v4075
        %v5096 = vpack.c.bf16 %v4078, %v4077
        %v5097 = vpack.c.bf16 %v4080, %v4079
        %v5098 = vpack.c.bf16 %v4082, %v4081
        %v5099 = vpack.c.bf16 %v4084, %v4083
        %v5100 = vld [vmem:[#allocation14] sm:$0xf]
        %v5101 = vld [vmem:[#allocation14 + $0x4] sm:$0xf]
        %v5102 = vld [vmem:[#allocation14 + $0x8] sm:$0xf]
        %v5103 = vld [vmem:[#allocation14 + $0xc] sm:$0xf]
        %v5104 = vld [vmem:[#allocation14 + $0x10] sm:$0xf]
        %v5105 = vld [vmem:[#allocation14 + $0x14] sm:$0xf]
        %v5106 = vld [vmem:[#allocation14 + $0x18] sm:$0xf]
        %v5107 = vld [vmem:[#allocation14 + $0x1c] sm:$0xf]
        %v5108 = vld [vmem:[#allocation14 + $0x20] sm:$0xf]
        %v5109 = vld [vmem:[#allocation14 + $0x24] sm:$0xf]
        %v5110 = vld [vmem:[#allocation14 + $0x28] sm:$0xf]
        %v5111 = vld [vmem:[#allocation14 + $0x2c] sm:$0xf]
        %v5112 = vld [vmem:[#allocation14 + $0x30] sm:$0xf]
        %v5113 = vld [vmem:[#allocation14 + $0x34] sm:$0xf]
        %v5114 = vld [vmem:[#allocation14 + $0x38] sm:$0xf]
        %v5115 = vld [vmem:[#allocation14 + $0x3c] sm:$0xf]
        %v5116 = vpack.c.bf16 %v4737, %v4733
        %v5117 = vpack.c.bf16 %v4739, %v4735
        %v5118 = vpack.c.bf16 %v4930, %v4926
        %v5119 = vpack.c.bf16 %v4932, %v4928
        %v5120 = vpack.c.bf16 %v4747, %v4743
        %v5121 = vpack.c.bf16 %v4749, %v4745
        %v5122 = vpack.c.bf16 %v4940, %v4936
        %v5123 = vpack.c.bf16 %v4942, %v4938
        %v5124 = vpack.c.bf16 %v4757, %v4753
        %v5125 = vpack.c.bf16 %v4759, %v4755
        %v5126 = vpack.c.bf16 %v4950, %v4946
        %v5127 = vpack.c.bf16 %v4952, %v4948
        %v5128 = vpack.c.bf16 %v4767, %v4763
        %v5129 = vpack.c.bf16 %v4769, %v4765
        %v5130 = vpack.c.bf16 %v4960, %v4956
        %v5131 = vpack.c.bf16 %v4962, %v4958
        %v5132 = vpack.c.bf16 %v4777, %v4773
        %v5133 = vpack.c.bf16 %v4779, %v4775
        %v5134 = vpack.c.bf16 %v4970, %v4966
        %v5135 = vpack.c.bf16 %v4972, %v4968
        %v5136 = vpack.c.bf16 %v4787, %v4783
        %v5137 = vpack.c.bf16 %v4789, %v4785
        %v5138 = vpack.c.bf16 %v4980, %v4976
        %v5139 = vpack.c.bf16 %v4982, %v4978
        %v5140 = vpack.c.bf16 %v4797, %v4793
        %v5141 = vpack.c.bf16 %v4799, %v4795
        %v5142 = vpack.c.bf16 %v4990, %v4986
        %v5143 = vpack.c.bf16 %v4992, %v4988
        %v5144 = vpack.c.bf16 %v4807, %v4803
        %v5145 = vpack.c.bf16 %v4809, %v4805
        %v5146 = vpack.c.bf16 %v5000, %v4996
        %v5147 = vpack.c.bf16 %v5002, %v4998
        %v5148 = vpack.c.bf16 %v4817, %v4813
        %v5149 = vpack.c.bf16 %v4819, %v4815
        %v5150 = vpack.c.bf16 %v5010, %v5006
        %v5151 = vpack.c.bf16 %v5012, %v5008
        %v5152 = vpack.c.bf16 %v4827, %v4823
        %v5153 = vpack.c.bf16 %v4829, %v4825
        %v5154 = vpack.c.bf16 %v5020, %v5016
        %v5155 = vpack.c.bf16 %v5022, %v5018
        %v5156 = vpack.c.bf16 %v4837, %v4833
        %v5157 = vpack.c.bf16 %v4839, %v4835
        %v5158 = vpack.c.bf16 %v5030, %v5026
        %v5159 = vpack.c.bf16 %v5032, %v5028
        %v5160 = vpack.c.bf16 %v4847, %v4843
        %v5161 = vpack.c.bf16 %v4849, %v4845
        %v5162 = vpack.c.bf16 %v5040, %v5036
        %v5163 = vpack.c.bf16 %v5042, %v5038
        %v5164 = vpack.c.bf16 %v4857, %v4853
        %v5165 = vpack.c.bf16 %v4859, %v4855
        %v5166 = vpack.c.bf16 %v5050, %v5046
        %v5167 = vpack.c.bf16 %v5052, %v5048
        %v5168 = vpack.c.bf16 %v4867, %v4863
        %v5169 = vpack.c.bf16 %v4869, %v4865
        %v5170 = vpack.c.bf16 %v5060, %v5056
        %v5171 = vpack.c.bf16 %v5062, %v5058
        %v5172 = vpack.c.bf16 %v4877, %v4873
        %v5173 = vpack.c.bf16 %v4879, %v4875
        %v5174 = vpack.c.bf16 %v5070, %v5066
        %v5175 = vpack.c.bf16 %v5072, %v5068
        %v5176 = vpack.c.bf16 %v4887, %v4883
        %v5177 = vpack.c.bf16 %v4889, %v4885
        %v5178 = vpack.c.bf16 %v5080, %v5076
        %v5179 = vpack.c.bf16 %v5082, %v5078
        %v5180 = vld [vmem:[#allocation16] sm:$0xf]
        %v5181 = vld [vmem:[#allocation16 + $0x4] sm:$0xf]
        %v5182 = vld [vmem:[#allocation16 + $0x8] sm:$0xf]
        %v5183 = vld [vmem:[#allocation16 + $0xc] sm:$0xf]
        %v5184 = vld [vmem:[#allocation16 + $0x10] sm:$0xf]
        %v5185 = vld [vmem:[#allocation16 + $0x14] sm:$0xf]
        %v5186 = vld [vmem:[#allocation16 + $0x18] sm:$0xf]
        %v5187 = vld [vmem:[#allocation16 + $0x1c] sm:$0xf]
        %v5188 = vld [vmem:[#allocation16 + $0x20] sm:$0xf]
        %v5189 = vld [vmem:[#allocation16 + $0x24] sm:$0xf]
        %v5190 = vld [vmem:[#allocation16 + $0x28] sm:$0xf]
        %v5191 = vld [vmem:[#allocation16 + $0x2c] sm:$0xf]
        %v5192 = vld [vmem:[#allocation16 + $0x30] sm:$0xf]
        %v5193 = vld [vmem:[#allocation16 + $0x34] sm:$0xf]
        %v5194 = vld [vmem:[#allocation16 + $0x38] sm:$0xf]
        %v5195 = vld [vmem:[#allocation16 + $0x3c] sm:$0xf]
        %v5196 = vld [vmem:[#allocation16 + $0x40] sm:$0xf]
        %v5197 = vld [vmem:[#allocation16 + $0x44] sm:$0xf]
        %v5198 = vld [vmem:[#allocation16 + $0x48] sm:$0xf]
        %v5199 = vld [vmem:[#allocation16 + $0x4c] sm:$0xf]
        %v5200 = vld [vmem:[#allocation16 + $0x50] sm:$0xf]
        %v5201 = vld [vmem:[#allocation16 + $0x54] sm:$0xf]
        %v5202 = vld [vmem:[#allocation16 + $0x58] sm:$0xf]
        %v5203 = vld [vmem:[#allocation16 + $0x5c] sm:$0xf]
        %v5204 = vld [vmem:[#allocation16 + $0x60] sm:$0xf]
        %v5205 = vld [vmem:[#allocation16 + $0x64] sm:$0xf]
        %v5206 = vld [vmem:[#allocation16 + $0x68] sm:$0xf]
        %v5207 = vld [vmem:[#allocation16 + $0x6c] sm:$0xf]
        %v5208 = vld [vmem:[#allocation16 + $0x70] sm:$0xf]
        %v5209 = vld [vmem:[#allocation16 + $0x74] sm:$0xf]
        %v5210 = vld [vmem:[#allocation16 + $0x78] sm:$0xf]
        %v5211 = vld [vmem:[#allocation16 + $0x7c] sm:$0xf]
        %v5212 = vld [vmem:[#allocation16 + $0x80] sm:$0xf]
        %v5213 = vld [vmem:[#allocation16 + $0x84] sm:$0xf]
        %v5214 = vld [vmem:[#allocation16 + $0x88] sm:$0xf]
        %v5215 = vld [vmem:[#allocation16 + $0x8c] sm:$0xf]
        %v5216 = vld [vmem:[#allocation16 + $0x90] sm:$0xf]
        %v5217 = vld [vmem:[#allocation16 + $0x94] sm:$0xf]
        %v5218 = vld [vmem:[#allocation16 + $0x98] sm:$0xf]
        %v5219 = vld [vmem:[#allocation16 + $0x9c] sm:$0xf]
        %v5220 = vld [vmem:[#allocation16 + $0xa0] sm:$0xf]
        %v5221 = vld [vmem:[#allocation16 + $0xa4] sm:$0xf]
        %v5222 = vld [vmem:[#allocation16 + $0xa8] sm:$0xf]
        %v5223 = vld [vmem:[#allocation16 + $0xac] sm:$0xf]
        %v5224 = vld [vmem:[#allocation16 + $0xb0] sm:$0xf]
        %v5225 = vld [vmem:[#allocation16 + $0xb4] sm:$0xf]
        %v5226 = vld [vmem:[#allocation16 + $0xb8] sm:$0xf]
        %v5227 = vld [vmem:[#allocation16 + $0xbc] sm:$0xf]
        %v5228 = vld [vmem:[#allocation16 + $0xc0] sm:$0xf]
        %v5229 = vld [vmem:[#allocation16 + $0xc4] sm:$0xf]
        %v5230 = vld [vmem:[#allocation16 + $0xc8] sm:$0xf]
        %v5231 = vld [vmem:[#allocation16 + $0xcc] sm:$0xf]
        %v5232 = vld [vmem:[#allocation16 + $0xd0] sm:$0xf]
        %v5233 = vld [vmem:[#allocation16 + $0xd4] sm:$0xf]
        %v5234 = vld [vmem:[#allocation16 + $0xd8] sm:$0xf]
        %v5235 = vld [vmem:[#allocation16 + $0xdc] sm:$0xf]
        %v5236 = vld [vmem:[#allocation16 + $0xe0] sm:$0xf]
        %v5237 = vld [vmem:[#allocation16 + $0xe4] sm:$0xf]
        %v5238 = vld [vmem:[#allocation16 + $0xe8] sm:$0xf]
        %v5239 = vld [vmem:[#allocation16 + $0xec] sm:$0xf]
        %v5240 = vld [vmem:[#allocation16 + $0xf0] sm:$0xf]
        %v5241 = vld [vmem:[#allocation16 + $0xf4] sm:$0xf]
        %v5242 = vld [vmem:[#allocation16 + $0xf8] sm:$0xf]
        %v5243 = vld [vmem:[#allocation16 + $0xfc] sm:$0xf]
        %v5308 = vunpack.c.l.b16 %v5180
        %v5309 = vunpack.c.l.b16 %v5181
        %v5310 = vunpack.c.l.b16 %v5182
        %v5311 = vunpack.c.l.b16 %v5183
        %v5312 = vunpack.c.l.b16 %v5184
        %v5313 = vunpack.c.l.b16 %v5185
        %v5314 = vunpack.c.l.b16 %v5186
        %v5315 = vunpack.c.l.b16 %v5187
        %v5316 = vunpack.c.l.b16 %v5188
        %v5317 = vunpack.c.l.b16 %v5189
        %v5318 = vunpack.c.l.b16 %v5190
        %v5319 = vunpack.c.l.b16 %v5191
        %v5320 = vunpack.c.l.b16 %v5192
        %v5321 = vunpack.c.l.b16 %v5193
        %v5322 = vunpack.c.l.b16 %v5194
        %v5323 = vunpack.c.l.b16 %v5195
        %v5324 = vunpack.c.l.b16 %v5196
        %v5325 = vunpack.c.l.b16 %v5197
        %v5326 = vunpack.c.l.b16 %v5198
        %v5327 = vunpack.c.l.b16 %v5199
        %v5328 = vunpack.c.l.b16 %v5200
        %v5329 = vunpack.c.l.b16 %v5201
        %v5330 = vunpack.c.l.b16 %v5202
        %v5331 = vunpack.c.l.b16 %v5203
        %v5332 = vunpack.c.l.b16 %v5204
        %v5333 = vunpack.c.l.b16 %v5205
        %v5334 = vunpack.c.l.b16 %v5206
        %v5335 = vunpack.c.l.b16 %v5207
        %v5336 = vunpack.c.l.b16 %v5208
        %v5337 = vunpack.c.l.b16 %v5209
        %v5338 = vunpack.c.l.b16 %v5210
        %v5339 = vunpack.c.l.b16 %v5211
        %v5340 = vunpack.c.l.b16 %v5212
        %v5341 = vunpack.c.l.b16 %v5213
        %v5342 = vunpack.c.l.b16 %v5214
        %v5343 = vunpack.c.l.b16 %v5215
        %v5344 = vunpack.c.l.b16 %v5216
        %v5345 = vunpack.c.l.b16 %v5217
        %v5346 = vunpack.c.l.b16 %v5218
        %v5347 = vunpack.c.l.b16 %v5219
        %v5348 = vunpack.c.l.b16 %v5220
        %v5349 = vunpack.c.l.b16 %v5221
        %v5350 = vunpack.c.l.b16 %v5222
        %v5351 = vunpack.c.l.b16 %v5223
        %v5352 = vunpack.c.l.b16 %v5224
        %v5353 = vunpack.c.l.b16 %v5225
        %v5354 = vunpack.c.l.b16 %v5226
        %v5355 = vunpack.c.l.b16 %v5227
        %v5356 = vunpack.c.l.b16 %v5228
        %v5357 = vunpack.c.l.b16 %v5229
        %v5358 = vunpack.c.l.b16 %v5230
        %v5359 = vunpack.c.l.b16 %v5231
        %v5360 = vunpack.c.l.b16 %v5232
        %v5361 = vunpack.c.l.b16 %v5233
        %v5362 = vunpack.c.l.b16 %v5234
        %v5363 = vunpack.c.l.b16 %v5235
        %v5364 = vunpack.c.l.b16 %v5236
        %v5365 = vunpack.c.l.b16 %v5237
        %v5366 = vunpack.c.l.b16 %v5238
        %v5367 = vunpack.c.l.b16 %v5239
        %v5368 = vunpack.c.l.b16 %v5240
        %v5369 = vunpack.c.l.b16 %v5241
        %v5370 = vunpack.c.l.b16 %v5242
        %v5371 = vunpack.c.l.b16 %v5243
        %v5372 = vpack.c.b16 %v5309, %v5308
        %v5373 = vpack.c.b16 %v5311, %v5310
        %v5374 = vpack.c.b16 %v5313, %v5312
        %v5375 = vpack.c.b16 %v5315, %v5314
        %v5376 = vpack.c.b16 %v5317, %v5316
        %v5377 = vpack.c.b16 %v5319, %v5318
        %v5378 = vpack.c.b16 %v5321, %v5320
        %v5379 = vpack.c.b16 %v5323, %v5322
        %v5380 = vpack.c.b16 %v5325, %v5324
        %v5381 = vpack.c.b16 %v5327, %v5326
        %v5382 = vpack.c.b16 %v5329, %v5328
        %v5383 = vpack.c.b16 %v5331, %v5330
        %v5384 = vpack.c.b16 %v5333, %v5332
        %v5385 = vpack.c.b16 %v5335, %v5334
        %v5386 = vpack.c.b16 %v5337, %v5336
        %v5387 = vpack.c.b16 %v5339, %v5338
        %v5388 = vpack.c.b16 %v5341, %v5340
        %v5389 = vpack.c.b16 %v5343, %v5342
        %v5390 = vpack.c.b16 %v5345, %v5344
        %v5391 = vpack.c.b16 %v5347, %v5346
        %v5392 = vpack.c.b16 %v5349, %v5348
        %v5393 = vpack.c.b16 %v5351, %v5350
        %v5394 = vpack.c.b16 %v5353, %v5352
        %v5395 = vpack.c.b16 %v5355, %v5354
        %v5396 = vpack.c.b16 %v5357, %v5356
        %v5397 = vpack.c.b16 %v5359, %v5358
        %v5398 = vpack.c.b16 %v5361, %v5360
        %v5399 = vpack.c.b16 %v5363, %v5362
        %v5400 = vpack.c.b16 %v5365, %v5364
        %v5401 = vpack.c.b16 %v5367, %v5366
        %v5402 = vpack.c.b16 %v5369, %v5368
        %v5403 = vpack.c.b16 %v5371, %v5370
        %5436 = vmatprep.subr.bf16.mxu0 0
        %5437 = vmatpush1.bf16.msra.mxu0 %v5372
        %5438 = vmatprep.subr.bf16.mxu0 0
        %5439 = vmatpush1.bf16.msra.mxu0 %v5373
        %5440 = vmatprep.subr.bf16.mxu0 0
        %5441 = vmatpush1.bf16.msra.mxu0 %v5374
        %5442 = vmatprep.subr.bf16.mxu0 0
        %5443 = vmatpush1.bf16.msra.mxu0 %v5375
        %5444 = vmatprep.subr.bf16.mxu0 0
        %5445 = vmatpush1.bf16.msra.mxu0 %v5376
        %5446 = vmatprep.subr.bf16.mxu0 0
        %5447 = vmatpush1.bf16.msra.mxu0 %v5377
        %5448 = vmatprep.subr.bf16.mxu0 0
        %5449 = vmatpush1.bf16.msra.mxu0 %v5378
        %5450 = vmatprep.subr.bf16.mxu0 0
        %5451 = vmatpush1.bf16.msra.mxu0 %v5379
        %5452 = vmatprep.subr.bf16.mxu0 0
        %5453 = vmatpush1.bf16.msra.mxu0 %v5380
        %5454 = vmatprep.subr.bf16.mxu0 0
        %5455 = vmatpush1.bf16.msra.mxu0 %v5381
        %5456 = vmatprep.subr.bf16.mxu0 0
        %5457 = vmatpush1.bf16.msra.mxu0 %v5382
        %5458 = vmatprep.subr.bf16.mxu0 0
        %5459 = vmatpush1.bf16.msra.mxu0 %v5383
        %5460 = vmatprep.subr.bf16.mxu0 0
        %5461 = vmatpush1.bf16.msra.mxu0 %v5384
        %5462 = vmatprep.subr.bf16.mxu0 0
        %5463 = vmatpush1.bf16.msra.mxu0 %v5385
        %5464 = vmatprep.subr.bf16.mxu0 0
        %5465 = vmatpush1.bf16.msra.mxu0 %v5386
        %5466 = vmatprep.subr.bf16.mxu0 0
        %5467 = vmatpush1.bf16.msra.mxu0 %v5387
        %5468 = vmatprep.mubr.bf16.mxu0 %v5117
        %5469 = vmatmul.mubr.bf16.gmra.mrb[0].mxu0 %v5116
        %v5470 = vpop.f32.mrb[0].mxu0
        %v5471 = vadd.f32 0.0, %v5470
        %v5472 = vpop.f32.mrb[0].mxu0
        %v5473 = vpop.f32.mrb[0].mxu0
        %v5474 = vadd.f32 0.0, %v5473
        %v5475 = vpop.f32.mrb[0].mxu0
        %5476 = vmatprep.mubr.bf16.mxu0 %v5121
        %5477 = vmatmul.mubr.bf16.gmra.mrb[0].mxu0 %v5120
        %v5478 = vpop.f32.mrb[0].mxu0
        %v5479 = vadd.f32 0.0, %v5478
        %v5480 = vpop.f32.mrb[0].mxu0
        %v5481 = vpop.f32.mrb[0].mxu0
        %v5482 = vadd.f32 0.0, %v5481
        %v5483 = vpop.f32.mrb[0].mxu0
        %5484 = vmatprep.mubr.bf16.mxu0 %v5125
        %5485 = vmatmul.mubr.bf16.gmra.mrb[0].mxu0 %v5124
        %v5486 = vpop.f32.mrb[0].mxu0
        %v5487 = vadd.f32 0.0, %v5486
        %v5488 = vpop.f32.mrb[0].mxu0
        %v5489 = vpop.f32.mrb[0].mxu0
        %v5490 = vadd.f32 0.0, %v5489
        %v5491 = vpop.f32.mrb[0].mxu0
        %5492 = vmatprep.mubr.bf16.mxu0 %v5129
        %5493 = vmatmul.mubr.bf16.gmra.mrb[0].mxu0 %v5128
        %v5494 = vpop.f32.mrb[0].mxu0
        %v5495 = vadd.f32 0.0, %v5494
        %v5496 = vpop.f32.mrb[0].mxu0
        %v5497 = vpop.f32.mrb[0].mxu0
        %v5498 = vadd.f32 0.0, %v5497
        %v5499 = vpop.f32.mrb[0].mxu0
        %5500 = vmatprep.mubr.bf16.mxu0 %v5133
        %5501 = vmatmul.mubr.bf16.gmra.mrb[0].mxu0 %v5132
        %v5502 = vpop.f32.mrb[0].mxu0
        %v5503 = vadd.f32 0.0, %v5502
        %v5504 = vpop.f32.mrb[0].mxu0
        %v5505 = vpop.f32.mrb[0].mxu0
        %v5506 = vadd.f32 0.0, %v5505
        %v5507 = vpop.f32.mrb[0].mxu0
        %5508 = vmatprep.mubr.bf16.mxu0 %v5137
        %5509 = vmatmul.mubr.bf16.gmra.mrb[0].mxu0 %v5136
        %v5510 = vpop.f32.mrb[0].mxu0
        %v5511 = vadd.f32 0.0, %v5510
        %v5512 = vpop.f32.mrb[0].mxu0
        %v5513 = vpop.f32.mrb[0].mxu0
        %v5514 = vadd.f32 0.0, %v5513
        %v5515 = vpop.f32.mrb[0].mxu0
        %5516 = vmatprep.mubr.bf16.mxu0 %v5141
        %5517 = vmatmul.mubr.bf16.gmra.mrb[0].mxu0 %v5140
        %v5518 = vpop.f32.mrb[0].mxu0
        %v5519 = vadd.f32 0.0, %v5518
        %v5520 = vpop.f32.mrb[0].mxu0
        %v5521 = vpop.f32.mrb[0].mxu0
        %v5522 = vadd.f32 0.0, %v5521
        %v5523 = vpop.f32.mrb[0].mxu0
        %5524 = vmatprep.mubr.bf16.mxu0 %v5145
        %5525 = vmatmul.mubr.bf16.gmra.mrb[0].mxu0 %v5144
        %v5526 = vpop.f32.mrb[0].mxu0
        %v5527 = vadd.f32 0.0, %v5526
        %v5528 = vpop.f32.mrb[0].mxu0
        %v5529 = vpop.f32.mrb[0].mxu0
        %v5530 = vadd.f32 0.0, %v5529
        %v5531 = vpop.f32.mrb[0].mxu0
        %5532 = vmatprep.mubr.bf16.mxu0 %v5149
        %5533 = vmatmul.mubr.bf16.gmra.mrb[0].mxu0 %v5148
        %v5534 = vpop.f32.mrb[0].mxu0
        %v5535 = vadd.f32 0.0, %v5534
        %v5536 = vpop.f32.mrb[0].mxu0
        %v5537 = vpop.f32.mrb[0].mxu0
        %v5538 = vadd.f32 0.0, %v5537
        %v5539 = vpop.f32.mrb[0].mxu0
        %5540 = vmatprep.mubr.bf16.mxu0 %v5153
        %5541 = vmatmul.mubr.bf16.gmra.mrb[0].mxu0 %v5152
        %v5542 = vpop.f32.mrb[0].mxu0
        %v5543 = vadd.f32 0.0, %v5542
        %v5544 = vpop.f32.mrb[0].mxu0
        %v5545 = vpop.f32.mrb[0].mxu0
        %v5546 = vadd.f32 0.0, %v5545
        %v5547 = vpop.f32.mrb[0].mxu0
        %5548 = vmatprep.mubr.bf16.mxu0 %v5157
        %5549 = vmatmul.mubr.bf16.gmra.mrb[0].mxu0 %v5156
        %v5550 = vpop.f32.mrb[0].mxu0
        %v5551 = vadd.f32 0.0, %v5550
        %v5552 = vpop.f32.mrb[0].mxu0
        %v5553 = vpop.f32.mrb[0].mxu0
        %v5554 = vadd.f32 0.0, %v5553
        %v5555 = vpop.f32.mrb[0].mxu0
        %5556 = vmatprep.mubr.bf16.mxu0 %v5161
        %5557 = vmatmul.mubr.bf16.gmra.mrb[0].mxu0 %v5160
        %v5558 = vpop.f32.mrb[0].mxu0
        %v5559 = vadd.f32 0.0, %v5558
        %v5560 = vpop.f32.mrb[0].mxu0
        %v5561 = vpop.f32.mrb[0].mxu0
        %v5562 = vadd.f32 0.0, %v5561
        %v5563 = vpop.f32.mrb[0].mxu0
        %5564 = vmatprep.mubr.bf16.mxu0 %v5165
        %5565 = vmatmul.mubr.bf16.gmra.mrb[0].mxu0 %v5164
        %v5566 = vpop.f32.mrb[0].mxu0
        %v5567 = vadd.f32 0.0, %v5566
        %v5568 = vpop.f32.mrb[0].mxu0
        %v5569 = vpop.f32.mrb[0].mxu0
        %v5570 = vadd.f32 0.0, %v5569
        %v5571 = vpop.f32.mrb[0].mxu0
        %5572 = vmatprep.mubr.bf16.mxu0 %v5169
        %5573 = vmatmul.mubr.bf16.gmra.mrb[0].mxu0 %v5168
        %v5574 = vpop.f32.mrb[0].mxu0
        %v5575 = vadd.f32 0.0, %v5574
        %v5576 = vpop.f32.mrb[0].mxu0
        %v5577 = vpop.f32.mrb[0].mxu0
        %v5578 = vadd.f32 0.0, %v5577
        %v5579 = vpop.f32.mrb[0].mxu0
        %5580 = vmatprep.mubr.bf16.mxu0 %v5173
        %5581 = vmatmul.mubr.bf16.gmra.mrb[0].mxu0 %v5172
        %v5582 = vpop.f32.mrb[0].mxu0
        %v5583 = vadd.f32 0.0, %v5582
        %v5584 = vpop.f32.mrb[0].mxu0
        %v5585 = vpop.f32.mrb[0].mxu0
        %v5586 = vadd.f32 0.0, %v5585
        %v5587 = vpop.f32.mrb[0].mxu0
        %5588 = vmatprep.mubr.bf16.mxu0 %v5177
        %5589 = vmatmul.mubr.bf16.gmra.mrb[0].mxu0 %v5176
        %v5590 = vpop.f32.mrb[0].mxu0
        %v5591 = vadd.f32 0.0, %v5590
        %v5592 = vpop.f32.mrb[0].mxu0
        %v5593 = vpop.f32.mrb[0].mxu0
        %v5594 = vadd.f32 0.0, %v5593
        %v5595 = vpop.f32.mrb[0].mxu0
        %5596 = vdwg.mxu0
        %5597 = vmatprep.subr.bf16.mxu0 0
        %5598 = vmatpush1.bf16.msra.mxu0 %v5388
        %5599 = vmatprep.subr.bf16.mxu0 0
        %5600 = vmatpush1.bf16.msra.mxu0 %v5389
        %5601 = vmatprep.subr.bf16.mxu0 0
        %5602 = vmatpush1.bf16.msra.mxu0 %v5390
        %5603 = vmatprep.subr.bf16.mxu0 0
        %5604 = vmatpush1.bf16.msra.mxu0 %v5391
        %5605 = vmatprep.subr.bf16.mxu0 0
        %5606 = vmatpush1.bf16.msra.mxu0 %v5392
        %5607 = vmatprep.subr.bf16.mxu0 0
        %5608 = vmatpush1.bf16.msra.mxu0 %v5393
        %5609 = vmatprep.subr.bf16.mxu0 0
        %5610 = vmatpush1.bf16.msra.mxu0 %v5394
        %5611 = vmatprep.subr.bf16.mxu0 0
        %5612 = vmatpush1.bf16.msra.mxu0 %v5395
        %5613 = vmatprep.subr.bf16.mxu0 0
        %5614 = vmatpush1.bf16.msra.mxu0 %v5396
        %5615 = vmatprep.subr.bf16.mxu0 0
        %5616 = vmatpush1.bf16.msra.mxu0 %v5397
        %5617 = vmatprep.subr.bf16.mxu0 0
        %5618 = vmatpush1.bf16.msra.mxu0 %v5398
        %5619 = vmatprep.subr.bf16.mxu0 0
        %5620 = vmatpush1.bf16.msra.mxu0 %v5399
        %5621 = vmatprep.subr.bf16.mxu0 0
        %5622 = vmatpush1.bf16.msra.mxu0 %v5400
        %5623 = vmatprep.subr.bf16.mxu0 0
        %5624 = vmatpush1.bf16.msra.mxu0 %v5401
        %5625 = vmatprep.subr.bf16.mxu0 0
        %5626 = vmatpush1.bf16.msra.mxu0 %v5402
        %5627 = vmatprep.subr.bf16.mxu0 0
        %5628 = vmatpush1.bf16.msra.mxu0 %v5403
        %5629 = vmatprep.mubr.bf16.mxu0 %v5119
        %5630 = vmatmul.mubr.bf16.gmra.mrb[0].mxu0 %v5118
        %v5631 = vpop.f32.mrb[0].mxu0
        %v5632 = vadd.f32 %v5471, %v5631
        %v5633 = vpop.f32.mrb[0].mxu0
        %v5634 = vpop.f32.mrb[0].mxu0
        %v5635 = vadd.f32 %v5474, %v5634
        %v5636 = vpop.f32.mrb[0].mxu0
        %5637 = vmatprep.mubr.bf16.mxu0 %v5123
        %5638 = vmatmul.mubr.bf16.gmra.mrb[0].mxu0 %v5122
        %v5639 = vpop.f32.mrb[0].mxu0
        %v5640 = vadd.f32 %v5479, %v5639
        %v5641 = vpop.f32.mrb[0].mxu0
        %v5642 = vpop.f32.mrb[0].mxu0
        %v5643 = vadd.f32 %v5482, %v5642
        %v5644 = vpop.f32.mrb[0].mxu0
        %5645 = vmatprep.mubr.bf16.mxu0 %v5127
        %5646 = vmatmul.mubr.bf16.gmra.mrb[0].mxu0 %v5126
        %v5647 = vpop.f32.mrb[0].mxu0
        %v5648 = vadd.f32 %v5487, %v5647
        %v5649 = vpop.f32.mrb[0].mxu0
        %v5650 = vpop.f32.mrb[0].mxu0
        %v5651 = vadd.f32 %v5490, %v5650
        %v5652 = vpop.f32.mrb[0].mxu0
        %5653 = vmatprep.mubr.bf16.mxu0 %v5131
        %5654 = vmatmul.mubr.bf16.gmra.mrb[0].mxu0 %v5130
        %v5655 = vpop.f32.mrb[0].mxu0
        %v5656 = vadd.f32 %v5495, %v5655
        %v5657 = vpop.f32.mrb[0].mxu0
        %v5658 = vpop.f32.mrb[0].mxu0
        %v5659 = vadd.f32 %v5498, %v5658
        %v5660 = vpop.f32.mrb[0].mxu0
        %5661 = vmatprep.mubr.bf16.mxu0 %v5135
        %5662 = vmatmul.mubr.bf16.gmra.mrb[0].mxu0 %v5134
        %v5663 = vpop.f32.mrb[0].mxu0
        %v5664 = vadd.f32 %v5503, %v5663
        %v5665 = vpop.f32.mrb[0].mxu0
        %v5666 = vpop.f32.mrb[0].mxu0
        %v5667 = vadd.f32 %v5506, %v5666
        %v5668 = vpop.f32.mrb[0].mxu0
        %5669 = vmatprep.mubr.bf16.mxu0 %v5139
        %5670 = vmatmul.mubr.bf16.gmra.mrb[0].mxu0 %v5138
        %v5671 = vpop.f32.mrb[0].mxu0
        %v5672 = vadd.f32 %v5511, %v5671
        %v5673 = vpop.f32.mrb[0].mxu0
        %v5674 = vpop.f32.mrb[0].mxu0
        %v5675 = vadd.f32 %v5514, %v5674
        %v5676 = vpop.f32.mrb[0].mxu0
        %5677 = vmatprep.mubr.bf16.mxu0 %v5143
        %5678 = vmatmul.mubr.bf16.gmra.mrb[0].mxu0 %v5142
        %v5679 = vpop.f32.mrb[0].mxu0
        %v5680 = vadd.f32 %v5519, %v5679
        %v5681 = vpop.f32.mrb[0].mxu0
        %v5682 = vpop.f32.mrb[0].mxu0
        %v5683 = vadd.f32 %v5522, %v5682
        %v5684 = vpop.f32.mrb[0].mxu0
        %5685 = vmatprep.mubr.bf16.mxu0 %v5147
        %5686 = vmatmul.mubr.bf16.gmra.mrb[0].mxu0 %v5146
        %v5687 = vpop.f32.mrb[0].mxu0
        %v5688 = vadd.f32 %v5527, %v5687
        %v5689 = vpop.f32.mrb[0].mxu0
        %v5690 = vpop.f32.mrb[0].mxu0
        %v5691 = vadd.f32 %v5530, %v5690
        %v5692 = vpop.f32.mrb[0].mxu0
        %5693 = vmatprep.mubr.bf16.mxu0 %v5151
        %5694 = vmatmul.mubr.bf16.gmra.mrb[0].mxu0 %v5150
        %v5695 = vpop.f32.mrb[0].mxu0
        %v5696 = vadd.f32 %v5535, %v5695
        %v5697 = vpop.f32.mrb[0].mxu0
        %v5698 = vpop.f32.mrb[0].mxu0
        %v5699 = vadd.f32 %v5538, %v5698
        %v5700 = vpop.f32.mrb[0].mxu0
        %5701 = vmatprep.mubr.bf16.mxu0 %v5155
        %5702 = vmatmul.mubr.bf16.gmra.mrb[0].mxu0 %v5154
        %v5703 = vpop.f32.mrb[0].mxu0
        %v5704 = vadd.f32 %v5543, %v5703
        %v5705 = vpop.f32.mrb[0].mxu0
        %v5706 = vpop.f32.mrb[0].mxu0
        %v5707 = vadd.f32 %v5546, %v5706
        %v5708 = vpop.f32.mrb[0].mxu0
        %5709 = vmatprep.mubr.bf16.mxu0 %v5159
        %5710 = vmatmul.mubr.bf16.gmra.mrb[0].mxu0 %v5158
        %v5711 = vpop.f32.mrb[0].mxu0
        %v5712 = vadd.f32 %v5551, %v5711
        %v5713 = vpop.f32.mrb[0].mxu0
        %v5714 = vpop.f32.mrb[0].mxu0
        %v5715 = vadd.f32 %v5554, %v5714
        %v5716 = vpop.f32.mrb[0].mxu0
        %5717 = vmatprep.mubr.bf16.mxu0 %v5163
        %5718 = vmatmul.mubr.bf16.gmra.mrb[0].mxu0 %v5162
        %v5719 = vpop.f32.mrb[0].mxu0
        %v5720 = vadd.f32 %v5559, %v5719
        %v5721 = vpop.f32.mrb[0].mxu0
        %v5722 = vpop.f32.mrb[0].mxu0
        %v5723 = vadd.f32 %v5562, %v5722
        %v5724 = vpop.f32.mrb[0].mxu0
        %5725 = vmatprep.mubr.bf16.mxu0 %v5167
        %5726 = vmatmul.mubr.bf16.gmra.mrb[0].mxu0 %v5166
        %v5727 = vpop.f32.mrb[0].mxu0
        %v5728 = vadd.f32 %v5567, %v5727
        %v5729 = vpop.f32.mrb[0].mxu0
        %v5730 = vpop.f32.mrb[0].mxu0
        %v5731 = vadd.f32 %v5570, %v5730
        %v5732 = vpop.f32.mrb[0].mxu0
        %5733 = vmatprep.mubr.bf16.mxu0 %v5171
        %5734 = vmatmul.mubr.bf16.gmra.mrb[0].mxu0 %v5170
        %v5735 = vpop.f32.mrb[0].mxu0
        %v5736 = vadd.f32 %v5575, %v5735
        %v5737 = vpop.f32.mrb[0].mxu0
        %v5738 = vpop.f32.mrb[0].mxu0
        %v5739 = vadd.f32 %v5578, %v5738
        %v5740 = vpop.f32.mrb[0].mxu0
        %5741 = vmatprep.mubr.bf16.mxu0 %v5175
        %5742 = vmatmul.mubr.bf16.gmra.mrb[0].mxu0 %v5174
        %v5743 = vpop.f32.mrb[0].mxu0
        %v5744 = vadd.f32 %v5583, %v5743
        %v5745 = vpop.f32.mrb[0].mxu0
        %v5746 = vpop.f32.mrb[0].mxu0
        %v5747 = vadd.f32 %v5586, %v5746
        %v5748 = vpop.f32.mrb[0].mxu0
        %5749 = vmatprep.mubr.bf16.mxu0 %v5179
        %5750 = vmatmul.mubr.bf16.gmra.mrb[0].mxu0 %v5178
        %v5751 = vpop.f32.mrb[0].mxu0
        %v5752 = vadd.f32 %v5591, %v5751
        %v5753 = vpop.f32.mrb[0].mxu0
        %v5754 = vpop.f32.mrb[0].mxu0
        %v5755 = vadd.f32 %v5594, %v5754
        %v5756 = vpop.f32.mrb[0].mxu0
        %5757 = vdwg.mxu0
        %v5774 = vunpack.c.l.b16 %v5100
        %v5775 = vunpack.c.l.b16 %v5101
        %v5776 = vunpack.c.l.b16 %v5102
        %v5777 = vunpack.c.l.b16 %v5103
        %v5778 = vunpack.c.l.b16 %v5104
        %v5779 = vunpack.c.l.b16 %v5105
        %v5780 = vunpack.c.l.b16 %v5106
        %v5781 = vunpack.c.l.b16 %v5107
        %v5782 = vunpack.c.l.b16 %v5108
        %v5783 = vunpack.c.l.b16 %v5109
        %v5784 = vunpack.c.l.b16 %v5110
        %v5785 = vunpack.c.l.b16 %v5111
        %v5786 = vunpack.c.l.b16 %v5112
        %v5787 = vunpack.c.l.b16 %v5113
        %v5788 = vunpack.c.l.b16 %v5114
        %v5789 = vunpack.c.l.b16 %v5115
        %v5790 = vpack.c.b16 %v5775, %v5774
        %v5791 = vpack.c.b16 %v5777, %v5776
        %v5792 = vpack.c.b16 %v5779, %v5778
        %v5793 = vpack.c.b16 %v5781, %v5780
        %v5794 = vpack.c.b16 %v5783, %v5782
        %v5795 = vpack.c.b16 %v5785, %v5784
        %v5796 = vpack.c.b16 %v5787, %v5786
        %v5797 = vpack.c.b16 %v5789, %v5788
        %5806 = vmatprep.subr.bf16.mxu0 0
        %5807 = vmatpush1.bf16.msra.mxu0 %v5790
        %5808 = vmatprep.subr.bf16.mxu0 0
        %5809 = vmatpush1.bf16.msra.mxu0 %v5791
        %5810 = vmatprep.subr.bf16.mxu0 0
        %5811 = vmatpush1.bf16.msra.mxu0 %v5792
        %5812 = vmatprep.subr.bf16.mxu0 0
        %5813 = vmatpush1.bf16.msra.mxu0 %v5793
        %5814 = vmatprep.subr.bf16.mxu0 0
        %5815 = vmatpush1.bf16.msra.mxu0 %v5794
        %5816 = vmatprep.subr.bf16.mxu0 0
        %5817 = vmatpush1.bf16.msra.mxu0 %v5795
        %5818 = vmatprep.subr.bf16.mxu0 0
        %5819 = vmatpush1.bf16.msra.mxu0 %v5796
        %5820 = vmatprep.subr.bf16.mxu0 0
        %5821 = vmatpush1.bf16.msra.mxu0 %v5797
        %5822 = vmatprep.subr.bf16.mxu0 0
        %5823 = vmatpush1.bf16.msra.mxu0 0
        %5824 = vmatprep.subr.bf16.mxu0 0
        %5825 = vmatpush1.bf16.msra.mxu0 0
        %5826 = vmatprep.subr.bf16.mxu0 0
        %5827 = vmatpush1.bf16.msra.mxu0 0
        %5828 = vmatprep.subr.bf16.mxu0 0
        %5829 = vmatpush1.bf16.msra.mxu0 0
        %5830 = vmatprep.subr.bf16.mxu0 0
        %5831 = vmatpush1.bf16.msra.mxu0 0
        %5832 = vmatprep.subr.bf16.mxu0 0
        %5833 = vmatpush1.bf16.msra.mxu0 0
        %5834 = vmatprep.subr.bf16.mxu0 0
        %5835 = vmatpush1.bf16.msra.mxu0 0
        %5836 = vmatprep.subr.bf16.mxu0 0
        %5837 = vmatpush1.bf16.msra.mxu0 0
        %5838 = vmatprep.mubr.bf16.mxu0 0
        %5839 = vmatmul.mubr.bf16.gmra.mrb[0].mxu0 %v5084
        %v5840 = vpop.f32.mrb[0].mxu0
        %v5841 = vadd.f32 %v5632, %v5840
        %v5842 = vpop.f32.mrb[0].mxu0
        %v5843 = vpop.f32.mrb[0].mxu0
        %v5844 = vadd.f32 %v5635, %v5843
        %v5845 = vpop.f32.mrb[0].mxu0
        %5846 = vmatprep.mubr.bf16.mxu0 0
        %5847 = vmatmul.mubr.bf16.gmra.mrb[0].mxu0 %v5085
        %v5848 = vpop.f32.mrb[0].mxu0
        %v5849 = vadd.f32 %v5640, %v5848
        %v5850 = vpop.f32.mrb[0].mxu0
        %v5851 = vpop.f32.mrb[0].mxu0
        %v5852 = vadd.f32 %v5643, %v5851
        %v5853 = vpop.f32.mrb[0].mxu0
        %5854 = vmatprep.mubr.bf16.mxu0 0
        %5855 = vmatmul.mubr.bf16.gmra.mrb[0].mxu0 %v5086
        %v5856 = vpop.f32.mrb[0].mxu0
        %v5857 = vadd.f32 %v5648, %v5856
        %v5858 = vpop.f32.mrb[0].mxu0
        %v5859 = vpop.f32.mrb[0].mxu0
        %v5860 = vadd.f32 %v5651, %v5859
        %v5861 = vpop.f32.mrb[0].mxu0
        %5862 = vmatprep.mubr.bf16.mxu0 0
        %5863 = vmatmul.mubr.bf16.gmra.mrb[0].mxu0 %v5087
        %v5864 = vpop.f32.mrb[0].mxu0
        %v5865 = vadd.f32 %v5656, %v5864
        %v5866 = vpop.f32.mrb[0].mxu0
        %v5867 = vpop.f32.mrb[0].mxu0
        %v5868 = vadd.f32 %v5659, %v5867
        %v5869 = vpop.f32.mrb[0].mxu0
        %5870 = vmatprep.mubr.bf16.mxu0 0
        %5871 = vmatmul.mubr.bf16.gmra.mrb[0].mxu0 %v5088
        %v5872 = vpop.f32.mrb[0].mxu0
        %v5873 = vadd.f32 %v5664, %v5872
        %v5874 = vpop.f32.mrb[0].mxu0
        %v5875 = vpop.f32.mrb[0].mxu0
        %v5876 = vadd.f32 %v5667, %v5875
        %v5877 = vpop.f32.mrb[0].mxu0
        %5878 = vmatprep.mubr.bf16.mxu0 0
        %5879 = vmatmul.mubr.bf16.gmra.mrb[0].mxu0 %v5089
        %v5880 = vpop.f32.mrb[0].mxu0
        %v5881 = vadd.f32 %v5672, %v5880
        %v5882 = vpop.f32.mrb[0].mxu0
        %v5883 = vpop.f32.mrb[0].mxu0
        %v5884 = vadd.f32 %v5675, %v5883
        %v5885 = vpop.f32.mrb[0].mxu0
        %5886 = vmatprep.mubr.bf16.mxu0 0
        %5887 = vmatmul.mubr.bf16.gmra.mrb[0].mxu0 %v5090
        %v5888 = vpop.f32.mrb[0].mxu0
        %v5889 = vadd.f32 %v5680, %v5888
        %v5890 = vpop.f32.mrb[0].mxu0
        %v5891 = vpop.f32.mrb[0].mxu0
        %v5892 = vadd.f32 %v5683, %v5891
        %v5893 = vpop.f32.mrb[0].mxu0
        %5894 = vmatprep.mubr.bf16.mxu0 0
        %5895 = vmatmul.mubr.bf16.gmra.mrb[0].mxu0 %v5091
        %v5896 = vpop.f32.mrb[0].mxu0
        %v5897 = vadd.f32 %v5688, %v5896
        %v5898 = vpop.f32.mrb[0].mxu0
        %v5899 = vpop.f32.mrb[0].mxu0
        %v5900 = vadd.f32 %v5691, %v5899
        %v5901 = vpop.f32.mrb[0].mxu0
        %5902 = vmatprep.mubr.bf16.mxu0 0
        %5903 = vmatmul.mubr.bf16.gmra.mrb[0].mxu0 %v5092
        %v5904 = vpop.f32.mrb[0].mxu0
        %v5905 = vadd.f32 %v5696, %v5904
        %v5906 = vpop.f32.mrb[0].mxu0
        %v5907 = vpop.f32.mrb[0].mxu0
        %v5908 = vadd.f32 %v5699, %v5907
        %v5909 = vpop.f32.mrb[0].mxu0
        %5910 = vmatprep.mubr.bf16.mxu0 0
        %5911 = vmatmul.mubr.bf16.gmra.mrb[0].mxu0 %v5093
        %v5912 = vpop.f32.mrb[0].mxu0
        %v5913 = vadd.f32 %v5704, %v5912
        %v5914 = vpop.f32.mrb[0].mxu0
        %v5915 = vpop.f32.mrb[0].mxu0
        %v5916 = vadd.f32 %v5707, %v5915
        %v5917 = vpop.f32.mrb[0].mxu0
        %5918 = vmatprep.mubr.bf16.mxu0 0
        %5919 = vmatmul.mubr.bf16.gmra.mrb[0].mxu0 %v5094
        %v5920 = vpop.f32.mrb[0].mxu0
        %v5921 = vadd.f32 %v5712, %v5920
        %v5922 = vpop.f32.mrb[0].mxu0
        %v5923 = vpop.f32.mrb[0].mxu0
        %v5924 = vadd.f32 %v5715, %v5923
        %v5925 = vpop.f32.mrb[0].mxu0
        %5926 = vmatprep.mubr.bf16.mxu0 0
        %5927 = vmatmul.mubr.bf16.gmra.mrb[0].mxu0 %v5095
        %v5928 = vpop.f32.mrb[0].mxu0
        %v5929 = vadd.f32 %v5720, %v5928
        %v5930 = vpop.f32.mrb[0].mxu0
        %v5931 = vpop.f32.mrb[0].mxu0
        %v5932 = vadd.f32 %v5723, %v5931
        %v5933 = vpop.f32.mrb[0].mxu0
        %5934 = vmatprep.mubr.bf16.mxu0 0
        %5935 = vmatmul.mubr.bf16.gmra.mrb[0].mxu0 %v5096
        %v5936 = vpop.f32.mrb[0].mxu0
        %v5937 = vadd.f32 %v5728, %v5936
        %v5938 = vpop.f32.mrb[0].mxu0
        %v5939 = vpop.f32.mrb[0].mxu0
        %v5940 = vadd.f32 %v5731, %v5939
        %v5941 = vpop.f32.mrb[0].mxu0
        %5942 = vmatprep.mubr.bf16.mxu0 0
        %5943 = vmatmul.mubr.bf16.gmra.mrb[0].mxu0 %v5097
        %v5944 = vpop.f32.mrb[0].mxu0
        %v5945 = vadd.f32 %v5736, %v5944
        %v5946 = vpop.f32.mrb[0].mxu0
        %v5947 = vpop.f32.mrb[0].mxu0
        %v5948 = vadd.f32 %v5739, %v5947
        %v5949 = vpop.f32.mrb[0].mxu0
        %5950 = vmatprep.mubr.bf16.mxu0 0
        %5951 = vmatmul.mubr.bf16.gmra.mrb[0].mxu0 %v5098
        %v5952 = vpop.f32.mrb[0].mxu0
        %v5953 = vadd.f32 %v5744, %v5952
        %v5954 = vpop.f32.mrb[0].mxu0
        %v5955 = vpop.f32.mrb[0].mxu0
        %v5956 = vadd.f32 %v5747, %v5955
        %v5957 = vpop.f32.mrb[0].mxu0
        %5958 = vmatprep.mubr.bf16.mxu0 0
        %5959 = vmatmul.mubr.bf16.gmra.mrb[0].mxu0 %v5099
        %v5960 = vpop.f32.mrb[0].mxu0
        %v5961 = vadd.f32 %v5752, %v5960
        %v5962 = vpop.f32.mrb[0].mxu0
        %v5963 = vpop.f32.mrb[0].mxu0
        %v5964 = vadd.f32 %v5755, %v5963
        %v5965 = vpop.f32.mrb[0].mxu0
        %5966 = vdwg.mxu0
        %v5967 = vlaneseq
        %v5968 = vshrl.u32 %v5967, 7
        %v5969 = vsub.s32 4, %v5968
        %v5970 = vrot.slane %v547, %v5969
        %v5971 = vadd.f32 %v5841, %v5970
        %v5972 = vadd.f32 %v5844, %v5970
        %v5973 = vadd.f32 %v5849, %v5970
        %v5974 = vadd.f32 %v5852, %v5970
        %v5975 = vadd.f32 %v5857, %v5970
        %v5976 = vadd.f32 %v5860, %v5970
        %v5977 = vadd.f32 %v5865, %v5970
        %v5978 = vadd.f32 %v5868, %v5970
        %v5979 = vadd.f32 %v5873, %v5970
        %v5980 = vadd.f32 %v5876, %v5970
        %v5981 = vadd.f32 %v5881, %v5970
        %v5982 = vadd.f32 %v5884, %v5970
        %v5983 = vadd.f32 %v5889, %v5970
        %v5984 = vadd.f32 %v5892, %v5970
        %v5985 = vadd.f32 %v5897, %v5970
        %v5986 = vadd.f32 %v5900, %v5970
        %v5987 = vadd.f32 %v5905, %v5970
        %v5988 = vadd.f32 %v5908, %v5970
        %v5989 = vadd.f32 %v5913, %v5970
        %v5990 = vadd.f32 %v5916, %v5970
        %v5991 = vadd.f32 %v5921, %v5970
        %v5992 = vadd.f32 %v5924, %v5970
        %v5993 = vadd.f32 %v5929, %v5970
        %v5994 = vadd.f32 %v5932, %v5970
        %v5995 = vadd.f32 %v5937, %v5970
        %v5996 = vadd.f32 %v5940, %v5970
        %v5997 = vadd.f32 %v5945, %v5970
        %v5998 = vadd.f32 %v5948, %v5970
        %v5999 = vadd.f32 %v5953, %v5970
        %v6000 = vadd.f32 %v5956, %v5970
        %v6001 = vadd.f32 %v5961, %v5970
        %v6002 = vadd.f32 %v5964, %v5970
        %v6003 = vld [vmem:[%s462] sm:$0xff]
        %v6004 = vld [vmem:[%s462 + $0x8] sm:$0xff]
        %v6005 = vld [vmem:[%s462 + $0x10] sm:$0xff]
        %v6006 = vld [vmem:[%s462 + $0x18] sm:$0xff]
        %v6007 = vld [vmem:[%s462 + $0x20] sm:$0xff]
        %v6008 = vld [vmem:[%s462 + $0x28] sm:$0xff]
        %v6009 = vld [vmem:[%s462 + $0x30] sm:$0xff]
        %v6010 = vld [vmem:[%s462 + $0x38] sm:$0xff]
        %v6011 = vld [vmem:[%s462 + $0x40] sm:$0xff]
        %v6012 = vld [vmem:[%s462 + $0x48] sm:$0xff]
        %v6013 = vld [vmem:[%s462 + $0x50] sm:$0xff]
        %v6014 = vld [vmem:[%s462 + $0x58] sm:$0xff]
        %v6015 = vld [vmem:[%s462 + $0x60] sm:$0xff]
        %v6016 = vld [vmem:[%s462 + $0x68] sm:$0xff]
        %v6017 = vld [vmem:[%s462 + $0x70] sm:$0xff]
        %v6018 = vld [vmem:[%s462 + $0x78] sm:$0xff]
        %v6019 = vld [vmem:[%s462 + $0x80] sm:$0xff]
        %v6020 = vld [vmem:[%s462 + $0x88] sm:$0xff]
        %v6021 = vld [vmem:[%s462 + $0x90] sm:$0xff]
        %v6022 = vld [vmem:[%s462 + $0x98] sm:$0xff]
        %v6023 = vld [vmem:[%s462 + $0xa0] sm:$0xff]
        %v6024 = vld [vmem:[%s462 + $0xa8] sm:$0xff]
        %v6025 = vld [vmem:[%s462 + $0xb0] sm:$0xff]
        %v6026 = vld [vmem:[%s462 + $0xb8] sm:$0xff]
        %v6027 = vld [vmem:[%s462 + $0xc0] sm:$0xff]
        %v6028 = vld [vmem:[%s462 + $0xc8] sm:$0xff]
        %v6029 = vld [vmem:[%s462 + $0xd0] sm:$0xff]
        %v6030 = vld [vmem:[%s462 + $0xd8] sm:$0xff]
        %v6031 = vld [vmem:[%s462 + $0xe0] sm:$0xff]
        %v6032 = vld [vmem:[%s462 + $0xe8] sm:$0xff]
        %v6033 = vld [vmem:[%s462 + $0xf0] sm:$0xff]
        %v6034 = vld [vmem:[%s462 + $0xf8] sm:$0xff]
        %v6035 = vlaneseq
        %v6036 = vshrl.u32 %v6035, 7
        %v6037 = vsub.s32 5, %v6036
        %v6038 = vrot.slane %v547, %v6037
        %v6039 = vmul.f32 %v6038, %v6003
        %v6040 = vmul.f32 %v6038, %v6004
        %v6041 = vmul.f32 %v6038, %v6005
        %v6042 = vmul.f32 %v6038, %v6006
        %v6043 = vmul.f32 %v6038, %v6007
        %v6044 = vmul.f32 %v6038, %v6008
        %v6045 = vmul.f32 %v6038, %v6009
        %v6046 = vmul.f32 %v6038, %v6010
        %v6047 = vmul.f32 %v6038, %v6011
        %v6048 = vmul.f32 %v6038, %v6012
        %v6049 = vmul.f32 %v6038, %v6013
        %v6050 = vmul.f32 %v6038, %v6014
        %v6051 = vmul.f32 %v6038, %v6015
        %v6052 = vmul.f32 %v6038, %v6016
        %v6053 = vmul.f32 %v6038, %v6017
        %v6054 = vmul.f32 %v6038, %v6018
        %v6055 = vmul.f32 %v6038, %v6019
        %v6056 = vmul.f32 %v6038, %v6020
        %v6057 = vmul.f32 %v6038, %v6021
        %v6058 = vmul.f32 %v6038, %v6022
        %v6059 = vmul.f32 %v6038, %v6023
        %v6060 = vmul.f32 %v6038, %v6024
        %v6061 = vmul.f32 %v6038, %v6025
        %v6062 = vmul.f32 %v6038, %v6026
        %v6063 = vmul.f32 %v6038, %v6027
        %v6064 = vmul.f32 %v6038, %v6028
        %v6065 = vmul.f32 %v6038, %v6029
        %v6066 = vmul.f32 %v6038, %v6030
        %v6067 = vmul.f32 %v6038, %v6031
        %v6068 = vmul.f32 %v6038, %v6032
        %v6069 = vmul.f32 %v6038, %v6033
        %v6070 = vmul.f32 %v6038, %v6034
        %v6071 = vadd.f32 %v5971, %v6039
        %v6072 = vadd.f32 %v5972, %v6040
        %v6073 = vadd.f32 %v5973, %v6041
        %v6074 = vadd.f32 %v5974, %v6042
        %v6075 = vadd.f32 %v5975, %v6043
        %v6076 = vadd.f32 %v5976, %v6044
        %v6077 = vadd.f32 %v5977, %v6045
        %v6078 = vadd.f32 %v5978, %v6046
        %v6079 = vadd.f32 %v5979, %v6047
        %v6080 = vadd.f32 %v5980, %v6048
        %v6081 = vadd.f32 %v5981, %v6049
        %v6082 = vadd.f32 %v5982, %v6050
        %v6083 = vadd.f32 %v5983, %v6051
        %v6084 = vadd.f32 %v5984, %v6052
        %v6085 = vadd.f32 %v5985, %v6053
        %v6086 = vadd.f32 %v5986, %v6054
        %v6087 = vadd.f32 %v5987, %v6055
        %v6088 = vadd.f32 %v5988, %v6056
        %v6089 = vadd.f32 %v5989, %v6057
        %v6090 = vadd.f32 %v5990, %v6058
        %v6091 = vadd.f32 %v5991, %v6059
        %v6092 = vadd.f32 %v5992, %v6060
        %v6093 = vadd.f32 %v5993, %v6061
        %v6094 = vadd.f32 %v5994, %v6062
        %v6095 = vadd.f32 %v5995, %v6063
        %v6096 = vadd.f32 %v5996, %v6064
        %v6097 = vadd.f32 %v5997, %v6065
        %v6098 = vadd.f32 %v5998, %v6066
        %v6099 = vadd.f32 %v5999, %v6067
        %v6100 = vadd.f32 %v6000, %v6068
        %v6101 = vadd.f32 %v6001, %v6069
        %v6102 = vadd.f32 %v6002, %v6070
        %v6103 = vmax.f32 %v6071, 0.0
        %v6104 = vmax.f32 %v6072, 0.0
        %v6105 = vmax.f32 %v6073, 0.0
        %v6106 = vmax.f32 %v6074, 0.0
        %v6107 = vmax.f32 %v6075, 0.0
        %v6108 = vmax.f32 %v6076, 0.0
        %v6109 = vmax.f32 %v6077, 0.0
        %v6110 = vmax.f32 %v6078, 0.0
        %v6111 = vmax.f32 %v6079, 0.0
        %v6112 = vmax.f32 %v6080, 0.0
        %v6113 = vmax.f32 %v6081, 0.0
        %v6114 = vmax.f32 %v6082, 0.0
        %v6115 = vmax.f32 %v6083, 0.0
        %v6116 = vmax.f32 %v6084, 0.0
        %v6117 = vmax.f32 %v6085, 0.0
        %v6118 = vmax.f32 %v6086, 0.0
        %v6119 = vmax.f32 %v6087, 0.0
        %v6120 = vmax.f32 %v6088, 0.0
        %v6121 = vmax.f32 %v6089, 0.0
        %v6122 = vmax.f32 %v6090, 0.0
        %v6123 = vmax.f32 %v6091, 0.0
        %v6124 = vmax.f32 %v6092, 0.0
        %v6125 = vmax.f32 %v6093, 0.0
        %v6126 = vmax.f32 %v6094, 0.0
        %v6127 = vmax.f32 %v6095, 0.0
        %v6128 = vmax.f32 %v6096, 0.0
        %v6129 = vmax.f32 %v6097, 0.0
        %v6130 = vmax.f32 %v6098, 0.0
        %v6131 = vmax.f32 %v6099, 0.0
        %v6132 = vmax.f32 %v6100, 0.0
        %v6133 = vmax.f32 %v6101, 0.0
        %v6134 = vmax.f32 %v6102, 0.0
        %6135 = vst [vmem:[%s541] sm:$0xff] %v6103
        %6136 = vst [vmem:[%s541 + $0x8] sm:$0xff] %v6104
        %6137 = vst [vmem:[%s541 + $0x10] sm:$0xff] %v6105
        %6138 = vst [vmem:[%s541 + $0x18] sm:$0xff] %v6106
        %6139 = vst [vmem:[%s541 + $0x20] sm:$0xff] %v6107
        %6140 = vst [vmem:[%s541 + $0x28] sm:$0xff] %v6108
        %6141 = vst [vmem:[%s541 + $0x30] sm:$0xff] %v6109
        %6142 = vst [vmem:[%s541 + $0x38] sm:$0xff] %v6110
        %6143 = vst [vmem:[%s541 + $0x40] sm:$0xff] %v6111
        %6144 = vst [vmem:[%s541 + $0x48] sm:$0xff] %v6112
        %6145 = vst [vmem:[%s541 + $0x50] sm:$0xff] %v6113
        %6146 = vst [vmem:[%s541 + $0x58] sm:$0xff] %v6114
        %6147 = vst [vmem:[%s541 + $0x60] sm:$0xff] %v6115
        %6148 = vst [vmem:[%s541 + $0x68] sm:$0xff] %v6116
        %6149 = vst [vmem:[%s541 + $0x70] sm:$0xff] %v6117
        %6150 = vst [vmem:[%s541 + $0x78] sm:$0xff] %v6118
        %6151 = vst [vmem:[%s541 + $0x80] sm:$0xff] %v6119
        %6152 = vst [vmem:[%s541 + $0x88] sm:$0xff] %v6120
        %6153 = vst [vmem:[%s541 + $0x90] sm:$0xff] %v6121
        %6154 = vst [vmem:[%s541 + $0x98] sm:$0xff] %v6122
        %6155 = vst [vmem:[%s541 + $0xa0] sm:$0xff] %v6123
        %6156 = vst [vmem:[%s541 + $0xa8] sm:$0xff] %v6124
        %6157 = vst [vmem:[%s541 + $0xb0] sm:$0xff] %v6125
        %6158 = vst [vmem:[%s541 + $0xb8] sm:$0xff] %v6126
        %6159 = vst [vmem:[%s541 + $0xc0] sm:$0xff] %v6127
        %6160 = vst [vmem:[%s541 + $0xc8] sm:$0xff] %v6128
        %6161 = vst [vmem:[%s541 + $0xd0] sm:$0xff] %v6129
        %6162 = vst [vmem:[%s541 + $0xd8] sm:$0xff] %v6130
        %6163 = vst [vmem:[%s541 + $0xe0] sm:$0xff] %v6131
        %6164 = vst [vmem:[%s541 + $0xe8] sm:$0xff] %v6132
        %6165 = vst [vmem:[%s541 + $0xf0] sm:$0xff] %v6133
        %6166 = vst [vmem:[%s541 + $0xf8] sm:$0xff] %v6134
        %s6167 = sand.u32 %s266, 1
        %s6168 = scalar_lea.sflag [#allocation4], %s6167
        %s6169 = sand.u32 %s266, 1
        %s6170 = smul.addr %s6169, 256
        %s6171 = scalar_lea.vmem [#allocation17], %s6170
        // Predicated region
        $region97: #{tpu_custom_call.1} parent=59 // pred_check
          %p6172 = pneg %p276
        $region98: #{tpu_custom_call.1} parent=59 // pred_check_branch
          %6174 = sbr.rel (%p6172) target = $region100
        $region99: #{tpu_custom_call.1} parent=59 // pred_region
          %s6175 = smul.u32 32, %s33
          %s6177 = ssub.s32 4096, 4096
          %6178 = vsyncadd %s6168, %s6177
          %s6179 = smul.addr %s6175, 128
          %s6180 = scalar_lea.hbm %s10, %s6179
          %s6181 = sshll.u32 %s6171, 4
          %s6182 = int_to_ptr.vmem [resolvable:$true] %s6181
          %6187 = dma.vmem_to_hbm [thread:$0]  %s6182, 4096, %s6180, %s6168, 128, 128, 8
        $region100: #{tpu_custom_call.1} parent=59 // pred_fallthru
          _
      $region60: #{tpu_custom_call.1} parent=5 // pred_fallthru
        _
      %p6188 = scmp.le.s32.totalorder 2, %s28
      // Predicated region
      $region101: #{tpu_custom_call.1} parent=5 // pred_check
        %p6189 = pneg %p6188
      $region102: #{tpu_custom_call.1} parent=5 // pred_check_branch
        %6191 = sbr.rel (%p6189) target = $region104
      $region103: #{tpu_custom_call.1} parent=5 // pred_region
        %s6192 = ssub.s32 %s28, 2
        // Predicated region
        $region105: #{tpu_custom_call.1} parent=103 // pred_check
          %p6193 = pneg %p282
        $region106: #{tpu_custom_call.1} parent=103 // pred_check_branch
          %6195 = sbr.rel (%p6193) target = $region108
        $region107: #{tpu_custom_call.1} parent=103 // pred_region
          %s6196 = sand.u32 %s267, 1
          %s6197 = scalar_lea.sflag [#allocation4], %s6196
          %s6198 = sand.u32 %s267, 1
          %s6199 = smul.addr %s6198, 256
          %s6200 = scalar_lea.vmem [#allocation17], %s6199
          %6201 = dma.done %s6197, 4096
        $region108: #{tpu_custom_call.1} parent=103 // pred_fallthru
          _
      $region104: #{tpu_custom_call.1} parent=5 // pred_fallthru
        _
    $region6: #{tpu_custom_call.1} parent=1 // loop_footer
      %s32 = sadd.s32 1, %s28
    $region7: #{tpu_custom_call.1} parent=1 // loop_footer_branch
      %27 = sbr.rel target = $region3
    $region8: #{tpu_custom_call.1} parent=1 // loop_exit
      _
    %6202 = vsyncpa [#allocation3], 1
    %s6203 = scalar_lea.sflag [#allocation3], 1
    %6204 = vsyncpa %s6203, 1
    %6205 = vsyncpa [#allocation6], 1
    %s6206 = scalar_lea.sflag [#allocation6], 1
    %6207 = vsyncpa %s6206, 1
    %6208 = vsyncpa [#allocation9], 1
    %6209 = vsyncpa [#allocation12], 1
    %6210 = vsyncpa [#allocation15], 1
    %6211 = vsyncpa [#allocation4], 1
    %s6212 = scalar_lea.sflag [#allocation4], 1
    %6213 = vsyncpa %s6212, 1

</llo_original>
